<compile_context>
chip_gen: v7x
topology: tpu7x:2x2x1
jax: 0.10.0
libtpu: 0.0.40
codegen_flags: <defaults>
</compile_context>

<pallas_src>
import jax
import jax.numpy as jnp
import numpy as np
from jax.experimental import pallas as pl
from jax.experimental.pallas import tpu as pltpu

K = 7                    # AttentionGate kernel size
PAD = K // 2             # padding = int(k / 2) = 3
LAM = 1e-4               # SimAM e_lambda
FUSED_ZPOOL_MAX_C = 64   # unroll limit for the fused single-pass ZPool


def _tree_reduce(op, xs):
    """Pairwise (tree) reduction -> ILP on the VALU instead of a serial chain."""
    xs = list(xs)
    while len(xs) > 1:
        nxt = [op(xs[i], xs[i + 1]) for i in range(0, len(xs) - 1, 2)]
        if len(xs) % 2:
            nxt.append(xs[-1])
        xs = nxt
    return xs[0]


def _branch(zp_max, zp_mean, w_ref, b_ref, pad_ref):
    """AttentionGate (7x7 conv on the 2-channel ZPool map) + SimAM + sigmoid.

    zp_max, zp_mean : (Bt, R, Cc) f32 ZPool max / mean maps.
    w_ref           : (2*K*K,) f32 SMEM, flattened conv weight [chan, ki, kj].
    b_ref           : (1,)     f32 SMEM conv bias.
    pad_ref         : (2, Bt, R + 2*PAD, Cc + 2*PAD) f32 VMEM scratch.
    Returns (Bt, R, Cc) f32 : sigmoid(SimAM(conv(ZPool map))).
    """
    bt, rs, cs = zp_max.shape
    rp, cp = rs + 2 * PAD, cs + 2 * PAD

    # Zero only the 3-wide halo; the interior is fully overwritten below.
    # (Not hoisted to step 0: scratch is per-core, see header comment.)
    zrow = jnp.zeros((2, bt, PAD, cp), jnp.float32)
    zcol = jnp.zeros((2, bt, rs, PAD), jnp.float32)
    pad_ref[:, :, 0:PAD, :] = zrow
    pad_ref[:, :, PAD + rs:rp, :] = zrow
    pad_ref[:, :, PAD:PAD + rs, 0:PAD] = zcol
    pad_ref[:, :, PAD:PAD + rs, PAD + cs:cp] = zcol
    pad_ref[0, :, PAD:PAD + rs, PAD:PAD + cs] = zp_max
    pad_ref[1, :, PAD:PAD + rs, PAD:PAD + cs] = zp_mean

    # Conv2d(2, 1, k=7, stride=1, pad=3), unrolled cross-correlation.
    # Per kj: 14 weighted rows summed with a pairwise tree at full padded
    # width, then a single lane-offset slice; kj partials are also tree-summed.
    row_vregs = bt * (-(-rs // 8)) * (-(-cp // 128))
    preload = 2 * K * row_vregs <= 40        # keep rows live only if they fit vregs
    rows = ([pad_ref[c, :, ki:ki + rs, :] for c in range(2) for ki in range(K)]
            if preload else None)

    parts = []
    for kj in range(K):
        terms = []
        for c in range(2):
            for ki in range(K):
                r = rows[c * K + ki] if preload else pad_ref[c, :, ki:ki + rs, :]
                terms.append(w_ref[c * K * K + ki * K + kj] * r)
        s = _tree_reduce(jnp.add, terms)
        parts.append(s[:, :, kj:kj + cs])
    acc = _tree_reduce(jnp.add, parts) + b_ref[0]

    # SimAM on the single-channel map: per-batch reductions over (R, Cc).
    def _sum2(v):
        return jnp.sum(jnp.sum(v, axis=2, keepdims=True), axis=1, keepdims=True)

    n = rs * cs - 1
    mu = _sum2(acc) * (1.0 / (rs * cs))
    d = (acc - mu) ** 2
    inv_den = 1.0 / (4.0 * (_sum2(d) * (1.0 / n) + LAM))     # (Bt,1,1) tiny divide
    y = d * inv_den + 0.5
    sim = acc * jax.nn.sigmoid(y)

    # outer .sigmoid() of the branch
    return jax.nn.sigmoid(sim)


def _eta_kernel(x_ref, wcw_ref, bcw_ref, whc_ref, bhc_ref, whw_ref, bhw_ref,
                out_ref, pad_cw, pad_hc, pad_hw):
    bt, C, H, W = x_ref.shape

    # ---- Fused ZPool: one pass over x yields all six branch maps. ----------
    if C <= FUSED_ZPOOL_MAX_C:
        nacc = min(4, C)                      # 4 partial accumulators -> VALU ILP
        hw_max_p = [None] * nacc
        hw_sum_p = [None] * nacc
        cw_max_l, cw_sum_l, ch_max_l, ch_sum_l = [], [], [], []
        for c in range(C):
            xc = x_ref[:, c, :, :]            # (bt, H, W) -- each element read once
            a = c % nacc
            hw_max_p[a] = xc if hw_max_p[a] is None else jnp.maximum(hw_max_p[a], xc)
            hw_sum_p[a] = xc if hw_sum_p[a] is None else hw_sum_p[a] + xc
            cw_max_l.append(jnp.max(xc, axis=1))      # (bt, W)  reduce over H
            cw_sum_l.append(jnp.sum(xc, axis=1))
            ch_max_l.append(jnp.max(xc, axis=2))      # (bt, H)  reduce over W
            ch_sum_l.append(jnp.sum(xc, axis=2))
        hw_max = _tree_reduce(jnp.maximum, [p for p in hw_max_p if p is not None])
        hw_sum = _tree_reduce(jnp.add, [p for p in hw_sum_p if p is not None])
        cw_max = jnp.stack(cw_max_l, axis=1)          # (bt, C, W)
        cw_sum = jnp.stack(cw_sum_l, axis=1)
        ch_max = jnp.stack(ch_max_l, axis=1)          # (bt, C, H)
        ch_sum = jnp.stack(ch_sum_l, axis=1)
    else:
        # Large C: avoid unrolling a huge channel loop; plain reductions.
        x = x_ref[...]
        hw_max, hw_sum = jnp.max(x, axis=1), jnp.sum(x, axis=1)
        cw_max, cw_sum = jnp.max(x, axis=2), jnp.sum(x, axis=2)
        ch_max, ch_sum = jnp.max(x, axis=3), jnp.sum(x, axis=3)

    # hw branch: ZPool over C; cw branch: ZPool over H; hc branch: ZPool over W
    # (hc runs on the (C, H)-transposed map with a spatially transposed weight).
    att_hw = _branch(hw_max, hw_sum * (1.0 / C), whw_ref, bhw_ref, pad_hw)  # (bt,H,W)
    att_cw = _branch(cw_max, cw_sum * (1.0 / H), wcw_ref, bcw_ref, pad_cw)  # (bt,C,W)
    att_ch = _branch(ch_max, ch_sum * (1.0 / W), whc_ref, bhc_ref, pad_hc)  # (bt,C,H)

    third = 1.0 / 3.0
    hw3, cw3, ch3 = att_hw * third, att_cw * third, att_ch * third

    # out[b, c, h, w] = att_hw[b,h,w]/3 + att_cw[b,c,w]/3 + att_ch[b,c,h]/3
    if len(out_ref.shape) == 3:
        # Lane-dense (bt, C, H*W) output: build per-h chunks and concatenate
        # along lanes so the final store (and HBM writeback) is dense.
        chunks = [hw3[:, h, :][:, None, :] + cw3 + ch3[:, :, h][:, :, None]
                  for h in range(H)]
        out_ref[...] = jnp.concatenate(chunks, axis=-1)
    else:
        out_ref[...] = (hw3[:, None, :, :] + cw3[:, :, None, :]
                        + ch3[:, :, :, None])


def eta_forward(x, params):
    """ETA forward. x: (B, C, H, W) float32. Returns (B, C, H, W) float32."""
    B, C, H, W = x.shape
    w_cw, b_cw, w_hc, b_hc, w_hw, b_hw = params
    x = x.astype(jnp.float32)

    # hc branch runs on the (C, H)-transposed ZPool map inside the kernel, so
    # its 7x7 weight is spatially transposed here (free: 98 floats).
    w_hc_t = jnp.transpose(w_hc, (0, 1, 3, 2))
    flat = lambda w: w.reshape(-1).astype(jnp.float32)   # (1,2,K,K) -> (2*K*K,)

    # ---- generation-aware budgets -----------------------------------------
    try:
        vmem_phys = int(pltpu.get_tpu_info().vmem_capacity_bytes)
    except Exception:
        vmem_phys = 64 << 20                      # conservative (v7x per-TC)
    if vmem_phys >= (100 << 20):                  # v5e / v6e: 128 MiB per core
        block_budget, vmem_cap = 12 << 20, 96 << 20
    else:                                         # v7x (64 MiB per TC) or unknown
        block_budget, vmem_cap = 5 << 20, 48 << 20

    per_b = C * H * W * 4

    def vmem_needed(bt):
        blk = bt * per_b
        hw_m = (H + 2 * PAD) * (W + 2 * PAD)
        cw_m = (C + 2 * PAD) * (W + 2 * PAD)
        ch_m = (C + 2 * PAD) * (H + 2 * PAD)
        maps = 4 * bt * (hw_m + cw_m + ch_m)      # one channel of each pad scratch
        big = 4 * bt * max(hw_m, cw_m, ch_m)
        temps = 16 * big + blk                    # ~14 conv rows + partials + combine
        return 2 * blk + 2 * blk + 2 * maps + temps   # double-buffered in + out

    # ---- batch tiling (cdiv grid; ragged last block allowed) ---------------
    bt = max(1, min(B, block_budget // max(per_b, 1)))
    if B >= 2:
        bt = min(bt, (B + 1) // 2)                # keep >= 2 steps -> both v7x TCs
    while bt > 1 and vmem_needed(bt) > (vmem_cap * 3) // 4:
        bt -= 1
    # prefer an exact divisor of B near the budget point (avoids ragged block)
    bt_div = max(d for d in range(1, bt + 1) if B % d == 0)
    if 2 * bt_div >= bt:
        bt = bt_div
    steps = -(-B // bt)
    grid = (steps,)

    vmem_limit = int(min(vmem_cap, max(32 << 20, 2 * vmem_needed(bt))))

    # ---- lane-dense output when W < 128 ------------------------------------
    flat_out = W < 128
    if flat_out:
        out_struct = jax.ShapeDtypeStruct((B, C, H * W), jnp.float32)
        out_spec = pl.BlockSpec((bt, C, H * W), lambda i: (i, 0, 0))
    else:
        out_struct = jax.ShapeDtypeStruct((B, C, H, W), jnp.float32)
        out_spec = pl.BlockSpec((bt, C, H, W), lambda i: (i, 0, 0, 0))

    smem = pl.BlockSpec(memory_space=pltpu.MemorySpace.SMEM)
    grid_spec = pltpu.PrefetchScalarGridSpec(
        num_scalar_prefetch=0,
        grid=grid,
        in_specs=[
            pl.BlockSpec((bt, C, H, W), lambda i: (i, 0, 0, 0)),
            smem, smem,   # cw weight / bias
            smem, smem,   # hc weight (spatially transposed) / bias
            smem, smem,   # hw weight / bias
        ],
        out_specs=out_spec,
        scratch_shapes=[
            pltpu.VMEM((2, bt, C + 2 * PAD, W + 2 * PAD), jnp.float32),  # cw pad
            pltpu.VMEM((2, bt, C + 2 * PAD, H + 2 * PAD), jnp.float32),  # hc pad
            pltpu.VMEM((2, bt, H + 2 * PAD, W + 2 * PAD), jnp.float32),  # hw pad
        ],
    )

    out = pl.pallas_call(
        _eta_kernel,
        out_shape=out_struct,
        grid_spec=grid_spec,
        compiler_params=pltpu.CompilerParams(
            dimension_semantics=("parallel",),
            vmem_limit_bytes=vmem_limit),
    )(x,
      flat(w_cw), b_cw.astype(jnp.float32),
      flat(w_hc_t), b_hc.astype(jnp.float32),
      flat(w_hw), b_hw.astype(jnp.float32))

    if flat_out:
        out = out.reshape(B, C, H, W)   # free: contiguous row-major reshape
    return out


# ----------------------------- pure-JAX reference -----------------------------
def _ref_attention_gate(xin, w, b):
    zp = jnp.stack([xin.max(axis=1), xin.mean(axis=1)], axis=1)  # (B,2,Hs,Ws)
    out = jax.lax.conv_general_dilated(
        zp, w, window_strides=(1, 1), padding=((PAD, PAD), (PAD, PAD)),
        dimension_numbers=("NCHW", "OIHW", "NCHW"))
    return out + b[None, :, None, None]


def _ref_simam(v, lam=LAM):
    _, _, h, w = v.shape
    n = h * w - 1
    mu = v.mean(axis=(2, 3), keepdims=True)
    d = (v - mu) ** 2
    y = d / (4.0 * (d.sum(axis=(2, 3), keepdims=True) / n + lam)) + 0.5
    return v * jax.nn.sigmoid(y)


def eta_reference(x, params):
    w_cw, b_cw, w_hc, b_hc, w_hw, b_hw = params
    xp1 = jnp.transpose(x, (0, 2, 1, 3))
    o1 = jax.nn.sigmoid(_ref_simam(_ref_attention_gate(xp1, w_cw, b_cw)))
    o11 = jnp.transpose(o1, (0, 2, 1, 3))
    xp2 = jnp.transpose(x, (0, 3, 2, 1))
    o2 = jax.nn.sigmoid(_ref_simam(_ref_attention_gate(xp2, w_hc, b_hc)))
    o21 = jnp.transpose(o2, (0, 3, 2, 1))
    o3 = jax.nn.sigmoid(_ref_simam(_ref_attention_gate(x, w_hw, b_hw)))
    return (1.0 / 3.0) * (o3 + o11 + o21)


if __name__ == "__main__":
    B, C, H, W = 2, 4, 16, 16
    key = jax.random.PRNGKey(0)
    kx, k1, k2, k3 = jax.random.split(key, 4)

    x = jax.random.normal(kx, (B, C, H, W), dtype=jnp.float32)

    # Deterministic synthetic parameters (Conv2d(2, 1, 7, padding=3) per gate).
    w_cw = 0.05 * jax.random.normal(k1, (1, 2, K, K), dtype=jnp.float32)
    w_hc = 0.05 * jax.random.normal(k2, (1, 2, K, K), dtype=jnp.float32)
    w_hw = 0.05 * jax.random.normal(k3, (1, 2, K, K), dtype=jnp.float32)
    b_cw = jnp.array([0.02], dtype=jnp.float32)
    b_hc = jnp.array([-0.01], dtype=jnp.float32)
    b_hw = jnp.array([0.03], dtype=jnp.float32)
    params = (w_cw, b_cw, w_hc, b_hc, w_hw, b_hw)

    out = jax.block_until_ready(eta_forward(x, params))
    ref = jax.block_until_ready(eta_reference(x, params))

    assert out.shape == (B, C, H, W)
    np.testing.assert_allclose(np.asarray(out), np.asarray(ref), rtol=1e-3, atol=1e-3)

    print("KERNEL_OK")
</pallas_src>

<mosaic_0001>
module attributes {stable_mosaic.version = 11 : i64} {
  func.func @_eta_kernel(%arg0: i32, %arg1: memref<1x4x16x16xf32, #tpu.memory_space<vmem>>, %arg2: memref<98xf32, #tpu.memory_space<smem>>, %arg3: memref<1xf32, #tpu.memory_space<smem>>, %arg4: memref<98xf32, #tpu.memory_space<smem>>, %arg5: memref<1xf32, #tpu.memory_space<smem>>, %arg6: memref<98xf32, #tpu.memory_space<smem>>, %arg7: memref<1xf32, #tpu.memory_space<smem>>, %arg8: memref<1x4x256xf32, #tpu.memory_space<vmem>>, %arg9: memref<2x1x10x22xf32, #tpu.memory_space<vmem>>, %arg10: memref<2x1x10x22xf32, #tpu.memory_space<vmem>>, %arg11: memref<2x1x22x22xf32, #tpu.memory_space<vmem>>) attributes {dimension_semantics = [#tpu.dimension_semantics<parallel>], iteration_bounds = array<i64: 2>, scalar_prefetch = 0 : i64, scratch_operands = 3 : i64, tpu.core_type = #tpu.core_type<tc>, window_params = [{transform_indices = @transform_0, window_bounds = array<i64: 1, 4, 16, 16>}, {transform_indices = @transform_1, window_bounds = array<i64: 98>}, {transform_indices = @transform_2, window_bounds = array<i64: 1>}, {transform_indices = @transform_3, window_bounds = array<i64: 98>}, {transform_indices = @transform_4, window_bounds = array<i64: 1>}, {transform_indices = @transform_5, window_bounds = array<i64: 98>}, {transform_indices = @transform_6, window_bounds = array<i64: 1>}, {transform_indices = @transform_7, window_bounds = array<i64: 1, 4, 256>}]} {
    %c0 = arith.constant 0 : index
    %c0_0 = arith.constant 0 : index
    %c0_1 = arith.constant 0 : index
    %c0_2 = arith.constant 0 : index
    %0 = vector.load %arg1[%c0, %c0_0, %c0_1, %c0_2] : memref<1x4x16x16xf32, #tpu.memory_space<vmem>>, vector<1x1x16x16xf32>
    %1 = vector.shape_cast %0 : vector<1x1x16x16xf32> to vector<1x16x16xf32>
    %cst = arith.constant dense<0xFF800000> : vector<1x16xf32>
    %2 = vector.multi_reduction <maximumf>, %1, %cst [1] : vector<1x16x16xf32> to vector<1x16xf32>
    %cst_3 = arith.constant dense<0.000000e+00> : vector<1x16xf32>
    %3 = vector.multi_reduction <add>, %1, %cst_3 [1] : vector<1x16x16xf32> to vector<1x16xf32>
    %cst_4 = arith.constant dense<0xFF800000> : vector<1x16xf32>
    %4 = vector.multi_reduction <maximumf>, %1, %cst_4 [2] : vector<1x16x16xf32> to vector<1x16xf32>
    %cst_5 = arith.constant dense<0.000000e+00> : vector<1x16xf32>
    %5 = vector.multi_reduction <add>, %1, %cst_5 [2] : vector<1x16x16xf32> to vector<1x16xf32>
    %c0_6 = arith.constant 0 : index
    %c1 = arith.constant 1 : index
    %c0_7 = arith.constant 0 : index
    %c0_8 = arith.constant 0 : index
    %6 = vector.load %arg1[%c0_6, %c1, %c0_7, %c0_8] : memref<1x4x16x16xf32, #tpu.memory_space<vmem>>, vector<1x1x16x16xf32>
    %7 = vector.shape_cast %6 : vector<1x1x16x16xf32> to vector<1x16x16xf32>
    %cst_9 = arith.constant dense<0xFF800000> : vector<1x16xf32>
    %8 = vector.multi_reduction <maximumf>, %7, %cst_9 [1] : vector<1x16x16xf32> to vector<1x16xf32>
    %cst_10 = arith.constant dense<0.000000e+00> : vector<1x16xf32>
    %9 = vector.multi_reduction <add>, %7, %cst_10 [1] : vector<1x16x16xf32> to vector<1x16xf32>
    %cst_11 = arith.constant dense<0xFF800000> : vector<1x16xf32>
    %10 = vector.multi_reduction <maximumf>, %7, %cst_11 [2] : vector<1x16x16xf32> to vector<1x16xf32>
    %cst_12 = arith.constant dense<0.000000e+00> : vector<1x16xf32>
    %11 = vector.multi_reduction <add>, %7, %cst_12 [2] : vector<1x16x16xf32> to vector<1x16xf32>
    %c0_13 = arith.constant 0 : index
    %c2 = arith.constant 2 : index
    %c0_14 = arith.constant 0 : index
    %c0_15 = arith.constant 0 : index
    %12 = vector.load %arg1[%c0_13, %c2, %c0_14, %c0_15] : memref<1x4x16x16xf32, #tpu.memory_space<vmem>>, vector<1x1x16x16xf32>
    %13 = vector.shape_cast %12 : vector<1x1x16x16xf32> to vector<1x16x16xf32>
    %cst_16 = arith.constant dense<0xFF800000> : vector<1x16xf32>
    %14 = vector.multi_reduction <maximumf>, %13, %cst_16 [1] : vector<1x16x16xf32> to vector<1x16xf32>
    %cst_17 = arith.constant dense<0.000000e+00> : vector<1x16xf32>
    %15 = vector.multi_reduction <add>, %13, %cst_17 [1] : vector<1x16x16xf32> to vector<1x16xf32>
    %cst_18 = arith.constant dense<0xFF800000> : vector<1x16xf32>
    %16 = vector.multi_reduction <maximumf>, %13, %cst_18 [2] : vector<1x16x16xf32> to vector<1x16xf32>
    %cst_19 = arith.constant dense<0.000000e+00> : vector<1x16xf32>
    %17 = vector.multi_reduction <add>, %13, %cst_19 [2] : vector<1x16x16xf32> to vector<1x16xf32>
    %c0_20 = arith.constant 0 : index
    %c3 = arith.constant 3 : index
    %c0_21 = arith.constant 0 : index
    %c0_22 = arith.constant 0 : index
    %18 = vector.load %arg1[%c0_20, %c3, %c0_21, %c0_22] : memref<1x4x16x16xf32, #tpu.memory_space<vmem>>, vector<1x1x16x16xf32>
    %19 = vector.shape_cast %18 : vector<1x1x16x16xf32> to vector<1x16x16xf32>
    %cst_23 = arith.constant dense<0xFF800000> : vector<1x16xf32>
    %20 = vector.multi_reduction <maximumf>, %19, %cst_23 [1] : vector<1x16x16xf32> to vector<1x16xf32>
    %cst_24 = arith.constant dense<0.000000e+00> : vector<1x16xf32>
    %21 = vector.multi_reduction <add>, %19, %cst_24 [1] : vector<1x16x16xf32> to vector<1x16xf32>
    %cst_25 = arith.constant dense<0xFF800000> : vector<1x16xf32>
    %22 = vector.multi_reduction <maximumf>, %19, %cst_25 [2] : vector<1x16x16xf32> to vector<1x16xf32>
    %cst_26 = arith.constant dense<0.000000e+00> : vector<1x16xf32>
    %23 = vector.multi_reduction <add>, %19, %cst_26 [2] : vector<1x16x16xf32> to vector<1x16xf32>
    %24 = arith.maximumf %1, %7 : vector<1x16x16xf32>
    %25 = arith.maximumf %13, %19 : vector<1x16x16xf32>
    %26 = arith.maximumf %24, %25 : vector<1x16x16xf32>
    %27 = arith.addf %1, %7 : vector<1x16x16xf32>
    %28 = arith.addf %13, %19 : vector<1x16x16xf32>
    %29 = arith.addf %27, %28 : vector<1x16x16xf32>
    %30 = vector.shape_cast %2 : vector<1x16xf32> to vector<1x1x16xf32>
    %31 = vector.shape_cast %8 : vector<1x16xf32> to vector<1x1x16xf32>
    %32 = vector.shape_cast %14 : vector<1x16xf32> to vector<1x1x16xf32>
    %33 = vector.shape_cast %20 : vector<1x16xf32> to vector<1x1x16xf32>
    %34 = tpu.concatenate %30, %31, %32, %33 in 1 : vector<1x1x16xf32>, vector<1x1x16xf32>, vector<1x1x16xf32>, vector<1x1x16xf32> -> vector<1x4x16xf32>
    %35 = vector.shape_cast %3 : vector<1x16xf32> to vector<1x1x16xf32>
    %36 = vector.shape_cast %9 : vector<1x16xf32> to vector<1x1x16xf32>
    %37 = vector.shape_cast %15 : vector<1x16xf32> to vector<1x1x16xf32>
    %38 = vector.shape_cast %21 : vector<1x16xf32> to vector<1x1x16xf32>
    %39 = tpu.concatenate %35, %36, %37, %38 in 1 : vector<1x1x16xf32>, vector<1x1x16xf32>, vector<1x1x16xf32>, vector<1x1x16xf32> -> vector<1x4x16xf32>
    %40 = vector.shape_cast %4 : vector<1x16xf32> to vector<1x1x16xf32>
    %41 = vector.shape_cast %10 : vector<1x16xf32> to vector<1x1x16xf32>
    %42 = vector.shape_cast %16 : vector<1x16xf32> to vector<1x1x16xf32>
    %43 = vector.shape_cast %22 : vector<1x16xf32> to vector<1x1x16xf32>
    %44 = tpu.concatenate %40, %41, %42, %43 in 1 : vector<1x1x16xf32>, vector<1x1x16xf32>, vector<1x1x16xf32>, vector<1x1x16xf32> -> vector<1x4x16xf32>
    %45 = vector.shape_cast %5 : vector<1x16xf32> to vector<1x1x16xf32>
    %46 = vector.shape_cast %11 : vector<1x16xf32> to vector<1x1x16xf32>
    %47 = vector.shape_cast %17 : vector<1x16xf32> to vector<1x1x16xf32>
    %48 = vector.shape_cast %23 : vector<1x16xf32> to vector<1x1x16xf32>
    %49 = tpu.concatenate %45, %46, %47, %48 in 1 : vector<1x1x16xf32>, vector<1x1x16xf32>, vector<1x1x16xf32>, vector<1x1x16xf32> -> vector<1x4x16xf32>
    %cst_27 = arith.constant 2.500000e-01 : f32
    %50 = vector.broadcast %cst_27 : f32 to vector<1x16x16xf32>
    %51 = arith.mulf %29, %50 : vector<1x16x16xf32>
    %cst_28 = arith.constant 0.000000e+00 : f32
    %52 = vector.broadcast %cst_28 : f32 to vector<2x1x3x22xf32>
    %cst_29 = arith.constant 0.000000e+00 : f32
    %53 = vector.broadcast %cst_29 : f32 to vector<2x1x16x3xf32>
    %c0_30 = arith.constant 0 : index
    %c0_31 = arith.constant 0 : index
    %c0_32 = arith.constant 0 : index
    %c0_33 = arith.constant 0 : index
    %54 = vector.load %arg11[%c0_30, %c0_31, %c0_32, %c0_33] : memref<2x1x22x22xf32, #tpu.memory_space<vmem>>, vector<2x1x3x22xf32>
    tpu.vector_store %arg11[%c0_30, %c0_31, %c0_32, %c0_33], %52 {strides = array<i32>} : memref<2x1x22x22xf32, #tpu.memory_space<vmem>>, vector<2x1x3x22xf32>,
    %c0_34 = arith.constant 0 : index
    %c0_35 = arith.constant 0 : index
    %c19 = arith.constant 19 : index
    %c0_36 = arith.constant 0 : index
    %55 = vector.load %arg11[%c0_34, %c0_35, %c19, %c0_36] : memref<2x1x22x22xf32, #tpu.memory_space<vmem>>, vector<2x1x3x22xf32>
    tpu.vector_store %arg11[%c0_34, %c0_35, %c19, %c0_36], %52 {strides = array<i32>} : memref<2x1x22x22xf32, #tpu.memory_space<vmem>>, vector<2x1x3x22xf32>,
    %c0_37 = arith.constant 0 : index
    %c0_38 = arith.constant 0 : index
    %c3_39 = arith.constant 3 : index
    %c0_40 = arith.constant 0 : index
    %56 = vector.load %arg11[%c0_37, %c0_38, %c3_39, %c0_40] : memref<2x1x22x22xf32, #tpu.memory_space<vmem>>, vector<2x1x16x3xf32>
    tpu.vector_store %arg11[%c0_37, %c0_38, %c3_39, %c0_40], %53 {strides = array<i32>} : memref<2x1x22x22xf32, #tpu.memory_space<vmem>>, vector<2x1x16x3xf32>,
    %c0_41 = arith.constant 0 : index
    %c0_42 = arith.constant 0 : index
    %c3_43 = arith.constant 3 : index
    %c19_44 = arith.constant 19 : index
    %57 = vector.load %arg11[%c0_41, %c0_42, %c3_43, %c19_44] : memref<2x1x22x22xf32, #tpu.memory_space<vmem>>, vector<2x1x16x3xf32>
    tpu.vector_store %arg11[%c0_41, %c0_42, %c3_43, %c19_44], %53 {strides = array<i32>} : memref<2x1x22x22xf32, #tpu.memory_space<vmem>>, vector<2x1x16x3xf32>,
    %c0_45 = arith.constant 0 : index
    %c0_46 = arith.constant 0 : index
    %c3_47 = arith.constant 3 : index
    %c3_48 = arith.constant 3 : index
    %58 = vector.load %arg11[%c0_45, %c0_46, %c3_47, %c3_48] : memref<2x1x22x22xf32, #tpu.memory_space<vmem>>, vector<1x1x16x16xf32>
    %59 = vector.shape_cast %58 : vector<1x1x16x16xf32> to vector<1x16x16xf32>
    %60 = vector.shape_cast %26 : vector<1x16x16xf32> to vector<1x1x16x16xf32>
    tpu.vector_store %arg11[%c0_45, %c0_46, %c3_47, %c3_48], %60 {strides = array<i32>} : memref<2x1x22x22xf32, #tpu.memory_space<vmem>>, vector<1x1x16x16xf32>,
    %c1_49 = arith.constant 1 : index
    %c0_50 = arith.constant 0 : index
    %c3_51 = arith.constant 3 : index
    %c3_52 = arith.constant 3 : index
    %61 = vector.load %arg11[%c1_49, %c0_50, %c3_51, %c3_52] : memref<2x1x22x22xf32, #tpu.memory_space<vmem>>, vector<1x1x16x16xf32>
    %62 = vector.shape_cast %61 : vector<1x1x16x16xf32> to vector<1x16x16xf32>
    %63 = vector.shape_cast %51 : vector<1x16x16xf32> to vector<1x1x16x16xf32>
    tpu.vector_store %arg11[%c1_49, %c0_50, %c3_51, %c3_52], %63 {strides = array<i32>} : memref<2x1x22x22xf32, #tpu.memory_space<vmem>>, vector<1x1x16x16xf32>,
    %c0_53 = arith.constant 0 : index
    %c0_54 = arith.constant 0 : index
    %c0_55 = arith.constant 0 : index
    %c0_56 = arith.constant 0 : index
    %64 = vector.load %arg11[%c0_53, %c0_54, %c0_55, %c0_56] : memref<2x1x22x22xf32, #tpu.memory_space<vmem>>, vector<1x1x16x22xf32>
    %65 = vector.shape_cast %64 : vector<1x1x16x22xf32> to vector<1x16x22xf32>
    %c0_57 = arith.constant 0 : index
    %c0_58 = arith.constant 0 : index
    %c1_59 = arith.constant 1 : index
    %c0_60 = arith.constant 0 : index
    %66 = vector.load %arg11[%c0_57, %c0_58, %c1_59, %c0_60] : memref<2x1x22x22xf32, #tpu.memory_space<vmem>>, vector<1x1x16x22xf32>
    %67 = vector.shape_cast %66 : vector<1x1x16x22xf32> to vector<1x16x22xf32>
    %c0_61 = arith.constant 0 : index
    %c0_62 = arith.constant 0 : index
    %c2_63 = arith.constant 2 : index
    %c0_64 = arith.constant 0 : index
    %68 = vector.load %arg11[%c0_61, %c0_62, %c2_63, %c0_64] : memref<2x1x22x22xf32, #tpu.memory_space<vmem>>, vector<1x1x16x22xf32>
    %69 = vector.shape_cast %68 : vector<1x1x16x22xf32> to vector<1x16x22xf32>
    %c0_65 = arith.constant 0 : index
    %c0_66 = arith.constant 0 : index
    %c3_67 = arith.constant 3 : index
    %c0_68 = arith.constant 0 : index
    %70 = vector.load %arg11[%c0_65, %c0_66, %c3_67, %c0_68] : memref<2x1x22x22xf32, #tpu.memory_space<vmem>>, vector<1x1x16x22xf32>
    %71 = vector.shape_cast %70 : vector<1x1x16x22xf32> to vector<1x16x22xf32>
    %c0_69 = arith.constant 0 : index
    %c0_70 = arith.constant 0 : index
    %c4 = arith.constant 4 : index
    %c0_71 = arith.constant 0 : index
    %72 = vector.load %arg11[%c0_69, %c0_70, %c4, %c0_71] : memref<2x1x22x22xf32, #tpu.memory_space<vmem>>, vector<1x1x16x22xf32>
    %73 = vector.shape_cast %72 : vector<1x1x16x22xf32> to vector<1x16x22xf32>
    %c0_72 = arith.constant 0 : index
    %c0_73 = arith.constant 0 : index
    %c5 = arith.constant 5 : index
    %c0_74 = arith.constant 0 : index
    %74 = vector.load %arg11[%c0_72, %c0_73, %c5, %c0_74] : memref<2x1x22x22xf32, #tpu.memory_space<vmem>>, vector<1x1x16x22xf32>
    %75 = vector.shape_cast %74 : vector<1x1x16x22xf32> to vector<1x16x22xf32>
    %c0_75 = arith.constant 0 : index
    %c0_76 = arith.constant 0 : index
    %c6 = arith.constant 6 : index
    %c0_77 = arith.constant 0 : index
    %76 = vector.load %arg11[%c0_75, %c0_76, %c6, %c0_77] : memref<2x1x22x22xf32, #tpu.memory_space<vmem>>, vector<1x1x16x22xf32>
    %77 = vector.shape_cast %76 : vector<1x1x16x22xf32> to vector<1x16x22xf32>
    %c1_78 = arith.constant 1 : index
    %c0_79 = arith.constant 0 : index
    %c0_80 = arith.constant 0 : index
    %c0_81 = arith.constant 0 : index
    %78 = vector.load %arg11[%c1_78, %c0_79, %c0_80, %c0_81] : memref<2x1x22x22xf32, #tpu.memory_space<vmem>>, vector<1x1x16x22xf32>
    %79 = vector.shape_cast %78 : vector<1x1x16x22xf32> to vector<1x16x22xf32>
    %c1_82 = arith.constant 1 : index
    %c0_83 = arith.constant 0 : index
    %c1_84 = arith.constant 1 : index
    %c0_85 = arith.constant 0 : index
    %80 = vector.load %arg11[%c1_82, %c0_83, %c1_84, %c0_85] : memref<2x1x22x22xf32, #tpu.memory_space<vmem>>, vector<1x1x16x22xf32>
    %81 = vector.shape_cast %80 : vector<1x1x16x22xf32> to vector<1x16x22xf32>
    %c1_86 = arith.constant 1 : index
    %c0_87 = arith.constant 0 : index
    %c2_88 = arith.constant 2 : index
    %c0_89 = arith.constant 0 : index
    %82 = vector.load %arg11[%c1_86, %c0_87, %c2_88, %c0_89] : memref<2x1x22x22xf32, #tpu.memory_space<vmem>>, vector<1x1x16x22xf32>
    %83 = vector.shape_cast %82 : vector<1x1x16x22xf32> to vector<1x16x22xf32>
    %c1_90 = arith.constant 1 : index
    %c0_91 = arith.constant 0 : index
    %c3_92 = arith.constant 3 : index
    %c0_93 = arith.constant 0 : index
    %84 = vector.load %arg11[%c1_90, %c0_91, %c3_92, %c0_93] : memref<2x1x22x22xf32, #tpu.memory_space<vmem>>, vector<1x1x16x22xf32>
    %85 = vector.shape_cast %84 : vector<1x1x16x22xf32> to vector<1x16x22xf32>
    %c1_94 = arith.constant 1 : index
    %c0_95 = arith.constant 0 : index
    %c4_96 = arith.constant 4 : index
    %c0_97 = arith.constant 0 : index
    %86 = vector.load %arg11[%c1_94, %c0_95, %c4_96, %c0_97] : memref<2x1x22x22xf32, #tpu.memory_space<vmem>>, vector<1x1x16x22xf32>
    %87 = vector.shape_cast %86 : vector<1x1x16x22xf32> to vector<1x16x22xf32>
    %c1_98 = arith.constant 1 : index
    %c0_99 = arith.constant 0 : index
    %c5_100 = arith.constant 5 : index
    %c0_101 = arith.constant 0 : index
    %88 = vector.load %arg11[%c1_98, %c0_99, %c5_100, %c0_101] : memref<2x1x22x22xf32, #tpu.memory_space<vmem>>, vector<1x1x16x22xf32>
    %89 = vector.shape_cast %88 : vector<1x1x16x22xf32> to vector<1x16x22xf32>
    %c1_102 = arith.constant 1 : index
    %c0_103 = arith.constant 0 : index
    %c6_104 = arith.constant 6 : index
    %c0_105 = arith.constant 0 : index
    %90 = vector.load %arg11[%c1_102, %c0_103, %c6_104, %c0_105] : memref<2x1x22x22xf32, #tpu.memory_space<vmem>>, vector<1x1x16x22xf32>
    %91 = vector.shape_cast %90 : vector<1x1x16x22xf32> to vector<1x16x22xf32>
    %c0_106 = arith.constant 0 : index
    %92 = memref.load %arg6[%c0_106] : memref<98xf32, #tpu.memory_space<smem>>
    %93 = vector.broadcast %92 : f32 to vector<1x16x22xf32>
    %94 = arith.mulf %93, %65 : vector<1x16x22xf32>
    %c7 = arith.constant 7 : index
    %95 = memref.load %arg6[%c7] : memref<98xf32, #tpu.memory_space<smem>>
    %96 = vector.broadcast %95 : f32 to vector<1x16x22xf32>
    %97 = arith.mulf %96, %67 : vector<1x16x22xf32>
    %c14 = arith.constant 14 : index
    %98 = memref.load %arg6[%c14] : memref<98xf32, #tpu.memory_space<smem>>
    %99 = vector.broadcast %98 : f32 to vector<1x16x22xf32>
    %100 = arith.mulf %99, %69 : vector<1x16x22xf32>
    %c21 = arith.constant 21 : index
    %101 = memref.load %arg6[%c21] : memref<98xf32, #tpu.memory_space<smem>>
    %102 = vector.broadcast %101 : f32 to vector<1x16x22xf32>
    %103 = arith.mulf %102, %71 : vector<1x16x22xf32>
    %c28 = arith.constant 28 : index
    %104 = memref.load %arg6[%c28] : memref<98xf32, #tpu.memory_space<smem>>
    %105 = vector.broadcast %104 : f32 to vector<1x16x22xf32>
    %106 = arith.mulf %105, %73 : vector<1x16x22xf32>
    %c35 = arith.constant 35 : index
    %107 = memref.load %arg6[%c35] : memref<98xf32, #tpu.memory_space<smem>>
    %108 = vector.broadcast %107 : f32 to vector<1x16x22xf32>
    %109 = arith.mulf %108, %75 : vector<1x16x22xf32>
    %c42 = arith.constant 42 : index
    %110 = memref.load %arg6[%c42] : memref<98xf32, #tpu.memory_space<smem>>
    %111 = vector.broadcast %110 : f32 to vector<1x16x22xf32>
    %112 = arith.mulf %111, %77 : vector<1x16x22xf32>
    %c49 = arith.constant 49 : index
    %113 = memref.load %arg6[%c49] : memref<98xf32, #tpu.memory_space<smem>>
    %114 = vector.broadcast %113 : f32 to vector<1x16x22xf32>
    %115 = arith.mulf %114, %79 : vector<1x16x22xf32>
    %c56 = arith.constant 56 : index
    %116 = memref.load %arg6[%c56] : memref<98xf32, #tpu.memory_space<smem>>
    %117 = vector.broadcast %116 : f32 to vector<1x16x22xf32>
    %118 = arith.mulf %117, %81 : vector<1x16x22xf32>
    %c63 = arith.constant 63 : index
    %119 = memref.load %arg6[%c63] : memref<98xf32, #tpu.memory_space<smem>>
    %120 = vector.broadcast %119 : f32 to vector<1x16x22xf32>
    %121 = arith.mulf %120, %83 : vector<1x16x22xf32>
    %c70 = arith.constant 70 : index
    %122 = memref.load %arg6[%c70] : memref<98xf32, #tpu.memory_space<smem>>
    %123 = vector.broadcast %122 : f32 to vector<1x16x22xf32>
    %124 = arith.mulf %123, %85 : vector<1x16x22xf32>
    %c77 = arith.constant 77 : index
    %125 = memref.load %arg6[%c77] : memref<98xf32, #tpu.memory_space<smem>>
    %126 = vector.broadcast %125 : f32 to vector<1x16x22xf32>
    %127 = arith.mulf %126, %87 : vector<1x16x22xf32>
    %c84 = arith.constant 84 : index
    %128 = memref.load %arg6[%c84] : memref<98xf32, #tpu.memory_space<smem>>
    %129 = vector.broadcast %128 : f32 to vector<1x16x22xf32>
    %130 = arith.mulf %129, %89 : vector<1x16x22xf32>
    %c91 = arith.constant 91 : index
    %131 = memref.load %arg6[%c91] : memref<98xf32, #tpu.memory_space<smem>>
    %132 = vector.broadcast %131 : f32 to vector<1x16x22xf32>
    %133 = arith.mulf %132, %91 : vector<1x16x22xf32>
    %134 = arith.addf %94, %97 : vector<1x16x22xf32>
    %135 = arith.addf %100, %103 : vector<1x16x22xf32>
    %136 = arith.addf %106, %109 : vector<1x16x22xf32>
    %137 = arith.addf %112, %115 : vector<1x16x22xf32>
    %138 = arith.addf %118, %121 : vector<1x16x22xf32>
    %139 = arith.addf %124, %127 : vector<1x16x22xf32>
    %140 = arith.addf %130, %133 : vector<1x16x22xf32>
    %141 = arith.addf %134, %135 : vector<1x16x22xf32>
    %142 = arith.addf %136, %137 : vector<1x16x22xf32>
    %143 = arith.addf %138, %139 : vector<1x16x22xf32>
    %144 = arith.addf %141, %142 : vector<1x16x22xf32>
    %145 = arith.addf %143, %140 : vector<1x16x22xf32>
    %146 = arith.addf %144, %145 : vector<1x16x22xf32>
    %147 = vector.extract_strided_slice %146 {offsets = [0, 0, 0], sizes = [1, 16, 16], strides = [1, 1, 1]} : vector<1x16x22xf32> to vector<1x16x16xf32>
    %c1_107 = arith.constant 1 : index
    %148 = memref.load %arg6[%c1_107] : memref<98xf32, #tpu.memory_space<smem>>
    %149 = vector.broadcast %148 : f32 to vector<1x16x22xf32>
    %150 = arith.mulf %149, %65 : vector<1x16x22xf32>
    %c8 = arith.constant 8 : index
    %151 = memref.load %arg6[%c8] : memref<98xf32, #tpu.memory_space<smem>>
    %152 = vector.broadcast %151 : f32 to vector<1x16x22xf32>
    %153 = arith.mulf %152, %67 : vector<1x16x22xf32>
    %c15 = arith.constant 15 : index
    %154 = memref.load %arg6[%c15] : memref<98xf32, #tpu.memory_space<smem>>
    %155 = vector.broadcast %154 : f32 to vector<1x16x22xf32>
    %156 = arith.mulf %155, %69 : vector<1x16x22xf32>
    %c22 = arith.constant 22 : index
    %157 = memref.load %arg6[%c22] : memref<98xf32, #tpu.memory_space<smem>>
    %158 = vector.broadcast %157 : f32 to vector<1x16x22xf32>
    %159 = arith.mulf %158, %71 : vector<1x16x22xf32>
    %c29 = arith.constant 29 : index
    %160 = memref.load %arg6[%c29] : memref<98xf32, #tpu.memory_space<smem>>
    %161 = vector.broadcast %160 : f32 to vector<1x16x22xf32>
    %162 = arith.mulf %161, %73 : vector<1x16x22xf32>
    %c36 = arith.constant 36 : index
    %163 = memref.load %arg6[%c36] : memref<98xf32, #tpu.memory_space<smem>>
    %164 = vector.broadcast %163 : f32 to vector<1x16x22xf32>
    %165 = arith.mulf %164, %75 : vector<1x16x22xf32>
    %c43 = arith.constant 43 : index
    %166 = memref.load %arg6[%c43] : memref<98xf32, #tpu.memory_space<smem>>
    %167 = vector.broadcast %166 : f32 to vector<1x16x22xf32>
    %168 = arith.mulf %167, %77 : vector<1x16x22xf32>
    %c50 = arith.constant 50 : index
    %169 = memref.load %arg6[%c50] : memref<98xf32, #tpu.memory_space<smem>>
    %170 = vector.broadcast %169 : f32 to vector<1x16x22xf32>
    %171 = arith.mulf %170, %79 : vector<1x16x22xf32>
    %c57 = arith.constant 57 : index
    %172 = memref.load %arg6[%c57] : memref<98xf32, #tpu.memory_space<smem>>
    %173 = vector.broadcast %172 : f32 to vector<1x16x22xf32>
    %174 = arith.mulf %173, %81 : vector<1x16x22xf32>
    %c64 = arith.constant 64 : index
    %175 = memref.load %arg6[%c64] : memref<98xf32, #tpu.memory_space<smem>>
    %176 = vector.broadcast %175 : f32 to vector<1x16x22xf32>
    %177 = arith.mulf %176, %83 : vector<1x16x22xf32>
    %c71 = arith.constant 71 : index
    %178 = memref.load %arg6[%c71] : memref<98xf32, #tpu.memory_space<smem>>
    %179 = vector.broadcast %178 : f32 to vector<1x16x22xf32>
    %180 = arith.mulf %179, %85 : vector<1x16x22xf32>
    %c78 = arith.constant 78 : index
    %181 = memref.load %arg6[%c78] : memref<98xf32, #tpu.memory_space<smem>>
    %182 = vector.broadcast %181 : f32 to vector<1x16x22xf32>
    %183 = arith.mulf %182, %87 : vector<1x16x22xf32>
    %c85 = arith.constant 85 : index
    %184 = memref.load %arg6[%c85] : memref<98xf32, #tpu.memory_space<smem>>
    %185 = vector.broadcast %184 : f32 to vector<1x16x22xf32>
    %186 = arith.mulf %185, %89 : vector<1x16x22xf32>
    %c92 = arith.constant 92 : index
    %187 = memref.load %arg6[%c92] : memref<98xf32, #tpu.memory_space<smem>>
    %188 = vector.broadcast %187 : f32 to vector<1x16x22xf32>
    %189 = arith.mulf %188, %91 : vector<1x16x22xf32>
    %190 = arith.addf %150, %153 : vector<1x16x22xf32>
    %191 = arith.addf %156, %159 : vector<1x16x22xf32>
    %192 = arith.addf %162, %165 : vector<1x16x22xf32>
    %193 = arith.addf %168, %171 : vector<1x16x22xf32>
    %194 = arith.addf %174, %177 : vector<1x16x22xf32>
    %195 = arith.addf %180, %183 : vector<1x16x22xf32>
    %196 = arith.addf %186, %189 : vector<1x16x22xf32>
    %197 = arith.addf %190, %191 : vector<1x16x22xf32>
    %198 = arith.addf %192, %193 : vector<1x16x22xf32>
    %199 = arith.addf %194, %195 : vector<1x16x22xf32>
    %200 = arith.addf %197, %198 : vector<1x16x22xf32>
    %201 = arith.addf %199, %196 : vector<1x16x22xf32>
    %202 = arith.addf %200, %201 : vector<1x16x22xf32>
    %203 = vector.extract_strided_slice %202 {offsets = [0, 0, 1], sizes = [1, 16, 16], strides = [1, 1, 1]} : vector<1x16x22xf32> to vector<1x16x16xf32>
    %c2_108 = arith.constant 2 : index
    %204 = memref.load %arg6[%c2_108] : memref<98xf32, #tpu.memory_space<smem>>
    %205 = vector.broadcast %204 : f32 to vector<1x16x22xf32>
    %206 = arith.mulf %205, %65 : vector<1x16x22xf32>
    %c9 = arith.constant 9 : index
    %207 = memref.load %arg6[%c9] : memref<98xf32, #tpu.memory_space<smem>>
    %208 = vector.broadcast %207 : f32 to vector<1x16x22xf32>
    %209 = arith.mulf %208, %67 : vector<1x16x22xf32>
    %c16 = arith.constant 16 : index
    %210 = memref.load %arg6[%c16] : memref<98xf32, #tpu.memory_space<smem>>
    %211 = vector.broadcast %210 : f32 to vector<1x16x22xf32>
    %212 = arith.mulf %211, %69 : vector<1x16x22xf32>
    %c23 = arith.constant 23 : index
    %213 = memref.load %arg6[%c23] : memref<98xf32, #tpu.memory_space<smem>>
    %214 = vector.broadcast %213 : f32 to vector<1x16x22xf32>
    %215 = arith.mulf %214, %71 : vector<1x16x22xf32>
    %c30 = arith.constant 30 : index
    %216 = memref.load %arg6[%c30] : memref<98xf32, #tpu.memory_space<smem>>
    %217 = vector.broadcast %216 : f32 to vector<1x16x22xf32>
    %218 = arith.mulf %217, %73 : vector<1x16x22xf32>
    %c37 = arith.constant 37 : index
    %219 = memref.load %arg6[%c37] : memref<98xf32, #tpu.memory_space<smem>>
    %220 = vector.broadcast %219 : f32 to vector<1x16x22xf32>
    %221 = arith.mulf %220, %75 : vector<1x16x22xf32>
    %c44 = arith.constant 44 : index
    %222 = memref.load %arg6[%c44] : memref<98xf32, #tpu.memory_space<smem>>
    %223 = vector.broadcast %222 : f32 to vector<1x16x22xf32>
    %224 = arith.mulf %223, %77 : vector<1x16x22xf32>
    %c51 = arith.constant 51 : index
    %225 = memref.load %arg6[%c51] : memref<98xf32, #tpu.memory_space<smem>>
    %226 = vector.broadcast %225 : f32 to vector<1x16x22xf32>
    %227 = arith.mulf %226, %79 : vector<1x16x22xf32>
    %c58 = arith.constant 58 : index
    %228 = memref.load %arg6[%c58] : memref<98xf32, #tpu.memory_space<smem>>
    %229 = vector.broadcast %228 : f32 to vector<1x16x22xf32>
    %230 = arith.mulf %229, %81 : vector<1x16x22xf32>
    %c65 = arith.constant 65 : index
    %231 = memref.load %arg6[%c65] : memref<98xf32, #tpu.memory_space<smem>>
    %232 = vector.broadcast %231 : f32 to vector<1x16x22xf32>
    %233 = arith.mulf %232, %83 : vector<1x16x22xf32>
    %c72 = arith.constant 72 : index
    %234 = memref.load %arg6[%c72] : memref<98xf32, #tpu.memory_space<smem>>
    %235 = vector.broadcast %234 : f32 to vector<1x16x22xf32>
    %236 = arith.mulf %235, %85 : vector<1x16x22xf32>
    %c79 = arith.constant 79 : index
    %237 = memref.load %arg6[%c79] : memref<98xf32, #tpu.memory_space<smem>>
    %238 = vector.broadcast %237 : f32 to vector<1x16x22xf32>
    %239 = arith.mulf %238, %87 : vector<1x16x22xf32>
    %c86 = arith.constant 86 : index
    %240 = memref.load %arg6[%c86] : memref<98xf32, #tpu.memory_space<smem>>
    %241 = vector.broadcast %240 : f32 to vector<1x16x22xf32>
    %242 = arith.mulf %241, %89 : vector<1x16x22xf32>
    %c93 = arith.constant 93 : index
    %243 = memref.load %arg6[%c93] : memref<98xf32, #tpu.memory_space<smem>>
    %244 = vector.broadcast %243 : f32 to vector<1x16x22xf32>
    %245 = arith.mulf %244, %91 : vector<1x16x22xf32>
    %246 = arith.addf %206, %209 : vector<1x16x22xf32>
    %247 = arith.addf %212, %215 : vector<1x16x22xf32>
    %248 = arith.addf %218, %221 : vector<1x16x22xf32>
    %249 = arith.addf %224, %227 : vector<1x16x22xf32>
    %250 = arith.addf %230, %233 : vector<1x16x22xf32>
    %251 = arith.addf %236, %239 : vector<1x16x22xf32>
    %252 = arith.addf %242, %245 : vector<1x16x22xf32>
    %253 = arith.addf %246, %247 : vector<1x16x22xf32>
    %254 = arith.addf %248, %249 : vector<1x16x22xf32>
    %255 = arith.addf %250, %251 : vector<1x16x22xf32>
    %256 = arith.addf %253, %254 : vector<1x16x22xf32>
    %257 = arith.addf %255, %252 : vector<1x16x22xf32>
    %258 = arith.addf %256, %257 : vector<1x16x22xf32>
    %259 = vector.extract_strided_slice %258 {offsets = [0, 0, 2], sizes = [1, 16, 16], strides = [1, 1, 1]} : vector<1x16x22xf32> to vector<1x16x16xf32>
    %c3_109 = arith.constant 3 : index
    %260 = memref.load %arg6[%c3_109] : memref<98xf32, #tpu.memory_space<smem>>
    %261 = vector.broadcast %260 : f32 to vector<1x16x22xf32>
    %262 = arith.mulf %261, %65 : vector<1x16x22xf32>
    %c10 = arith.constant 10 : index
    %263 = memref.load %arg6[%c10] : memref<98xf32, #tpu.memory_space<smem>>
    %264 = vector.broadcast %263 : f32 to vector<1x16x22xf32>
    %265 = arith.mulf %264, %67 : vector<1x16x22xf32>
    %c17 = arith.constant 17 : index
    %266 = memref.load %arg6[%c17] : memref<98xf32, #tpu.memory_space<smem>>
    %267 = vector.broadcast %266 : f32 to vector<1x16x22xf32>
    %268 = arith.mulf %267, %69 : vector<1x16x22xf32>
    %c24 = arith.constant 24 : index
    %269 = memref.load %arg6[%c24] : memref<98xf32, #tpu.memory_space<smem>>
    %270 = vector.broadcast %269 : f32 to vector<1x16x22xf32>
    %271 = arith.mulf %270, %71 : vector<1x16x22xf32>
    %c31 = arith.constant 31 : index
    %272 = memref.load %arg6[%c31] : memref<98xf32, #tpu.memory_space<smem>>
    %273 = vector.broadcast %272 : f32 to vector<1x16x22xf32>
    %274 = arith.mulf %273, %73 : vector<1x16x22xf32>
    %c38 = arith.constant 38 : index
    %275 = memref.load %arg6[%c38] : memref<98xf32, #tpu.memory_space<smem>>
    %276 = vector.broadcast %275 : f32 to vector<1x16x22xf32>
    %277 = arith.mulf %276, %75 : vector<1x16x22xf32>
    %c45 = arith.constant 45 : index
    %278 = memref.load %arg6[%c45] : memref<98xf32, #tpu.memory_space<smem>>
    %279 = vector.broadcast %278 : f32 to vector<1x16x22xf32>
    %280 = arith.mulf %279, %77 : vector<1x16x22xf32>
    %c52 = arith.constant 52 : index
    %281 = memref.load %arg6[%c52] : memref<98xf32, #tpu.memory_space<smem>>
    %282 = vector.broadcast %281 : f32 to vector<1x16x22xf32>
    %283 = arith.mulf %282, %79 : vector<1x16x22xf32>
    %c59 = arith.constant 59 : index
    %284 = memref.load %arg6[%c59] : memref<98xf32, #tpu.memory_space<smem>>
    %285 = vector.broadcast %284 : f32 to vector<1x16x22xf32>
    %286 = arith.mulf %285, %81 : vector<1x16x22xf32>
    %c66 = arith.constant 66 : index
    %287 = memref.load %arg6[%c66] : memref<98xf32, #tpu.memory_space<smem>>
    %288 = vector.broadcast %287 : f32 to vector<1x16x22xf32>
    %289 = arith.mulf %288, %83 : vector<1x16x22xf32>
    %c73 = arith.constant 73 : index
    %290 = memref.load %arg6[%c73] : memref<98xf32, #tpu.memory_space<smem>>
    %291 = vector.broadcast %290 : f32 to vector<1x16x22xf32>
    %292 = arith.mulf %291, %85 : vector<1x16x22xf32>
    %c80 = arith.constant 80 : index
    %293 = memref.load %arg6[%c80] : memref<98xf32, #tpu.memory_space<smem>>
    %294 = vector.broadcast %293 : f32 to vector<1x16x22xf32>
    %295 = arith.mulf %294, %87 : vector<1x16x22xf32>
    %c87 = arith.constant 87 : index
    %296 = memref.load %arg6[%c87] : memref<98xf32, #tpu.memory_space<smem>>
    %297 = vector.broadcast %296 : f32 to vector<1x16x22xf32>
    %298 = arith.mulf %297, %89 : vector<1x16x22xf32>
    %c94 = arith.constant 94 : index
    %299 = memref.load %arg6[%c94] : memref<98xf32, #tpu.memory_space<smem>>
    %300 = vector.broadcast %299 : f32 to vector<1x16x22xf32>
    %301 = arith.mulf %300, %91 : vector<1x16x22xf32>
    %302 = arith.addf %262, %265 : vector<1x16x22xf32>
    %303 = arith.addf %268, %271 : vector<1x16x22xf32>
    %304 = arith.addf %274, %277 : vector<1x16x22xf32>
    %305 = arith.addf %280, %283 : vector<1x16x22xf32>
    %306 = arith.addf %286, %289 : vector<1x16x22xf32>
    %307 = arith.addf %292, %295 : vector<1x16x22xf32>
    %308 = arith.addf %298, %301 : vector<1x16x22xf32>
    %309 = arith.addf %302, %303 : vector<1x16x22xf32>
    %310 = arith.addf %304, %305 : vector<1x16x22xf32>
    %311 = arith.addf %306, %307 : vector<1x16x22xf32>
    %312 = arith.addf %309, %310 : vector<1x16x22xf32>
    %313 = arith.addf %311, %308 : vector<1x16x22xf32>
    %314 = arith.addf %312, %313 : vector<1x16x22xf32>
    %315 = vector.extract_strided_slice %314 {offsets = [0, 0, 3], sizes = [1, 16, 16], strides = [1, 1, 1]} : vector<1x16x22xf32> to vector<1x16x16xf32>
    %c4_110 = arith.constant 4 : index
    %316 = memref.load %arg6[%c4_110] : memref<98xf32, #tpu.memory_space<smem>>
    %317 = vector.broadcast %316 : f32 to vector<1x16x22xf32>
    %318 = arith.mulf %317, %65 : vector<1x16x22xf32>
    %c11 = arith.constant 11 : index
    %319 = memref.load %arg6[%c11] : memref<98xf32, #tpu.memory_space<smem>>
    %320 = vector.broadcast %319 : f32 to vector<1x16x22xf32>
    %321 = arith.mulf %320, %67 : vector<1x16x22xf32>
    %c18 = arith.constant 18 : index
    %322 = memref.load %arg6[%c18] : memref<98xf32, #tpu.memory_space<smem>>
    %323 = vector.broadcast %322 : f32 to vector<1x16x22xf32>
    %324 = arith.mulf %323, %69 : vector<1x16x22xf32>
    %c25 = arith.constant 25 : index
    %325 = memref.load %arg6[%c25] : memref<98xf32, #tpu.memory_space<smem>>
    %326 = vector.broadcast %325 : f32 to vector<1x16x22xf32>
    %327 = arith.mulf %326, %71 : vector<1x16x22xf32>
    %c32 = arith.constant 32 : index
    %328 = memref.load %arg6[%c32] : memref<98xf32, #tpu.memory_space<smem>>
    %329 = vector.broadcast %328 : f32 to vector<1x16x22xf32>
    %330 = arith.mulf %329, %73 : vector<1x16x22xf32>
    %c39 = arith.constant 39 : index
    %331 = memref.load %arg6[%c39] : memref<98xf32, #tpu.memory_space<smem>>
    %332 = vector.broadcast %331 : f32 to vector<1x16x22xf32>
    %333 = arith.mulf %332, %75 : vector<1x16x22xf32>
    %c46 = arith.constant 46 : index
    %334 = memref.load %arg6[%c46] : memref<98xf32, #tpu.memory_space<smem>>
    %335 = vector.broadcast %334 : f32 to vector<1x16x22xf32>
    %336 = arith.mulf %335, %77 : vector<1x16x22xf32>
    %c53 = arith.constant 53 : index
    %337 = memref.load %arg6[%c53] : memref<98xf32, #tpu.memory_space<smem>>
    %338 = vector.broadcast %337 : f32 to vector<1x16x22xf32>
    %339 = arith.mulf %338, %79 : vector<1x16x22xf32>
    %c60 = arith.constant 60 : index
    %340 = memref.load %arg6[%c60] : memref<98xf32, #tpu.memory_space<smem>>
    %341 = vector.broadcast %340 : f32 to vector<1x16x22xf32>
    %342 = arith.mulf %341, %81 : vector<1x16x22xf32>
    %c67 = arith.constant 67 : index
    %343 = memref.load %arg6[%c67] : memref<98xf32, #tpu.memory_space<smem>>
    %344 = vector.broadcast %343 : f32 to vector<1x16x22xf32>
    %345 = arith.mulf %344, %83 : vector<1x16x22xf32>
    %c74 = arith.constant 74 : index
    %346 = memref.load %arg6[%c74] : memref<98xf32, #tpu.memory_space<smem>>
    %347 = vector.broadcast %346 : f32 to vector<1x16x22xf32>
    %348 = arith.mulf %347, %85 : vector<1x16x22xf32>
    %c81 = arith.constant 81 : index
    %349 = memref.load %arg6[%c81] : memref<98xf32, #tpu.memory_space<smem>>
    %350 = vector.broadcast %349 : f32 to vector<1x16x22xf32>
    %351 = arith.mulf %350, %87 : vector<1x16x22xf32>
    %c88 = arith.constant 88 : index
    %352 = memref.load %arg6[%c88] : memref<98xf32, #tpu.memory_space<smem>>
    %353 = vector.broadcast %352 : f32 to vector<1x16x22xf32>
    %354 = arith.mulf %353, %89 : vector<1x16x22xf32>
    %c95 = arith.constant 95 : index
    %355 = memref.load %arg6[%c95] : memref<98xf32, #tpu.memory_space<smem>>
    %356 = vector.broadcast %355 : f32 to vector<1x16x22xf32>
    %357 = arith.mulf %356, %91 : vector<1x16x22xf32>
    %358 = arith.addf %318, %321 : vector<1x16x22xf32>
    %359 = arith.addf %324, %327 : vector<1x16x22xf32>
    %360 = arith.addf %330, %333 : vector<1x16x22xf32>
    %361 = arith.addf %336, %339 : vector<1x16x22xf32>
    %362 = arith.addf %342, %345 : vector<1x16x22xf32>
    %363 = arith.addf %348, %351 : vector<1x16x22xf32>
    %364 = arith.addf %354, %357 : vector<1x16x22xf32>
    %365 = arith.addf %358, %359 : vector<1x16x22xf32>
    %366 = arith.addf %360, %361 : vector<1x16x22xf32>
    %367 = arith.addf %362, %363 : vector<1x16x22xf32>
    %368 = arith.addf %365, %366 : vector<1x16x22xf32>
    %369 = arith.addf %367, %364 : vector<1x16x22xf32>
    %370 = arith.addf %368, %369 : vector<1x16x22xf32>
    %371 = vector.extract_strided_slice %370 {offsets = [0, 0, 4], sizes = [1, 16, 16], strides = [1, 1, 1]} : vector<1x16x22xf32> to vector<1x16x16xf32>
    %c5_111 = arith.constant 5 : index
    %372 = memref.load %arg6[%c5_111] : memref<98xf32, #tpu.memory_space<smem>>
    %373 = vector.broadcast %372 : f32 to vector<1x16x22xf32>
    %374 = arith.mulf %373, %65 : vector<1x16x22xf32>
    %c12 = arith.constant 12 : index
    %375 = memref.load %arg6[%c12] : memref<98xf32, #tpu.memory_space<smem>>
    %376 = vector.broadcast %375 : f32 to vector<1x16x22xf32>
    %377 = arith.mulf %376, %67 : vector<1x16x22xf32>
    %c19_112 = arith.constant 19 : index
    %378 = memref.load %arg6[%c19_112] : memref<98xf32, #tpu.memory_space<smem>>
    %379 = vector.broadcast %378 : f32 to vector<1x16x22xf32>
    %380 = arith.mulf %379, %69 : vector<1x16x22xf32>
    %c26 = arith.constant 26 : index
    %381 = memref.load %arg6[%c26] : memref<98xf32, #tpu.memory_space<smem>>
    %382 = vector.broadcast %381 : f32 to vector<1x16x22xf32>
    %383 = arith.mulf %382, %71 : vector<1x16x22xf32>
    %c33 = arith.constant 33 : index
    %384 = memref.load %arg6[%c33] : memref<98xf32, #tpu.memory_space<smem>>
    %385 = vector.broadcast %384 : f32 to vector<1x16x22xf32>
    %386 = arith.mulf %385, %73 : vector<1x16x22xf32>
    %c40 = arith.constant 40 : index
    %387 = memref.load %arg6[%c40] : memref<98xf32, #tpu.memory_space<smem>>
    %388 = vector.broadcast %387 : f32 to vector<1x16x22xf32>
    %389 = arith.mulf %388, %75 : vector<1x16x22xf32>
    %c47 = arith.constant 47 : index
    %390 = memref.load %arg6[%c47] : memref<98xf32, #tpu.memory_space<smem>>
    %391 = vector.broadcast %390 : f32 to vector<1x16x22xf32>
    %392 = arith.mulf %391, %77 : vector<1x16x22xf32>
    %c54 = arith.constant 54 : index
    %393 = memref.load %arg6[%c54] : memref<98xf32, #tpu.memory_space<smem>>
    %394 = vector.broadcast %393 : f32 to vector<1x16x22xf32>
    %395 = arith.mulf %394, %79 : vector<1x16x22xf32>
    %c61 = arith.constant 61 : index
    %396 = memref.load %arg6[%c61] : memref<98xf32, #tpu.memory_space<smem>>
    %397 = vector.broadcast %396 : f32 to vector<1x16x22xf32>
    %398 = arith.mulf %397, %81 : vector<1x16x22xf32>
    %c68 = arith.constant 68 : index
    %399 = memref.load %arg6[%c68] : memref<98xf32, #tpu.memory_space<smem>>
    %400 = vector.broadcast %399 : f32 to vector<1x16x22xf32>
    %401 = arith.mulf %400, %83 : vector<1x16x22xf32>
    %c75 = arith.constant 75 : index
    %402 = memref.load %arg6[%c75] : memref<98xf32, #tpu.memory_space<smem>>
    %403 = vector.broadcast %402 : f32 to vector<1x16x22xf32>
    %404 = arith.mulf %403, %85 : vector<1x16x22xf32>
    %c82 = arith.constant 82 : index
    %405 = memref.load %arg6[%c82] : memref<98xf32, #tpu.memory_space<smem>>
    %406 = vector.broadcast %405 : f32 to vector<1x16x22xf32>
    %407 = arith.mulf %406, %87 : vector<1x16x22xf32>
    %c89 = arith.constant 89 : index
    %408 = memref.load %arg6[%c89] : memref<98xf32, #tpu.memory_space<smem>>
    %409 = vector.broadcast %408 : f32 to vector<1x16x22xf32>
    %410 = arith.mulf %409, %89 : vector<1x16x22xf32>
    %c96 = arith.constant 96 : index
    %411 = memref.load %arg6[%c96] : memref<98xf32, #tpu.memory_space<smem>>
    %412 = vector.broadcast %411 : f32 to vector<1x16x22xf32>
    %413 = arith.mulf %412, %91 : vector<1x16x22xf32>
    %414 = arith.addf %374, %377 : vector<1x16x22xf32>
    %415 = arith.addf %380, %383 : vector<1x16x22xf32>
    %416 = arith.addf %386, %389 : vector<1x16x22xf32>
    %417 = arith.addf %392, %395 : vector<1x16x22xf32>
    %418 = arith.addf %398, %401 : vector<1x16x22xf32>
    %419 = arith.addf %404, %407 : vector<1x16x22xf32>
    %420 = arith.addf %410, %413 : vector<1x16x22xf32>
    %421 = arith.addf %414, %415 : vector<1x16x22xf32>
    %422 = arith.addf %416, %417 : vector<1x16x22xf32>
    %423 = arith.addf %418, %419 : vector<1x16x22xf32>
    %424 = arith.addf %421, %422 : vector<1x16x22xf32>
    %425 = arith.addf %423, %420 : vector<1x16x22xf32>
    %426 = arith.addf %424, %425 : vector<1x16x22xf32>
    %427 = vector.extract_strided_slice %426 {offsets = [0, 0, 5], sizes = [1, 16, 16], strides = [1, 1, 1]} : vector<1x16x22xf32> to vector<1x16x16xf32>
    %c6_113 = arith.constant 6 : index
    %428 = memref.load %arg6[%c6_113] : memref<98xf32, #tpu.memory_space<smem>>
    %429 = vector.broadcast %428 : f32 to vector<1x16x22xf32>
    %430 = arith.mulf %429, %65 : vector<1x16x22xf32>
    %c13 = arith.constant 13 : index
    %431 = memref.load %arg6[%c13] : memref<98xf32, #tpu.memory_space<smem>>
    %432 = vector.broadcast %431 : f32 to vector<1x16x22xf32>
    %433 = arith.mulf %432, %67 : vector<1x16x22xf32>
    %c20 = arith.constant 20 : index
    %434 = memref.load %arg6[%c20] : memref<98xf32, #tpu.memory_space<smem>>
    %435 = vector.broadcast %434 : f32 to vector<1x16x22xf32>
    %436 = arith.mulf %435, %69 : vector<1x16x22xf32>
    %c27 = arith.constant 27 : index
    %437 = memref.load %arg6[%c27] : memref<98xf32, #tpu.memory_space<smem>>
    %438 = vector.broadcast %437 : f32 to vector<1x16x22xf32>
    %439 = arith.mulf %438, %71 : vector<1x16x22xf32>
    %c34 = arith.constant 34 : index
    %440 = memref.load %arg6[%c34] : memref<98xf32, #tpu.memory_space<smem>>
    %441 = vector.broadcast %440 : f32 to vector<1x16x22xf32>
    %442 = arith.mulf %441, %73 : vector<1x16x22xf32>
    %c41 = arith.constant 41 : index
    %443 = memref.load %arg6[%c41] : memref<98xf32, #tpu.memory_space<smem>>
    %444 = vector.broadcast %443 : f32 to vector<1x16x22xf32>
    %445 = arith.mulf %444, %75 : vector<1x16x22xf32>
    %c48 = arith.constant 48 : index
    %446 = memref.load %arg6[%c48] : memref<98xf32, #tpu.memory_space<smem>>
    %447 = vector.broadcast %446 : f32 to vector<1x16x22xf32>
    %448 = arith.mulf %447, %77 : vector<1x16x22xf32>
    %c55 = arith.constant 55 : index
    %449 = memref.load %arg6[%c55] : memref<98xf32, #tpu.memory_space<smem>>
    %450 = vector.broadcast %449 : f32 to vector<1x16x22xf32>
    %451 = arith.mulf %450, %79 : vector<1x16x22xf32>
    %c62 = arith.constant 62 : index
    %452 = memref.load %arg6[%c62] : memref<98xf32, #tpu.memory_space<smem>>
    %453 = vector.broadcast %452 : f32 to vector<1x16x22xf32>
    %454 = arith.mulf %453, %81 : vector<1x16x22xf32>
    %c69 = arith.constant 69 : index
    %455 = memref.load %arg6[%c69] : memref<98xf32, #tpu.memory_space<smem>>
    %456 = vector.broadcast %455 : f32 to vector<1x16x22xf32>
    %457 = arith.mulf %456, %83 : vector<1x16x22xf32>
    %c76 = arith.constant 76 : index
    %458 = memref.load %arg6[%c76] : memref<98xf32, #tpu.memory_space<smem>>
    %459 = vector.broadcast %458 : f32 to vector<1x16x22xf32>
    %460 = arith.mulf %459, %85 : vector<1x16x22xf32>
    %c83 = arith.constant 83 : index
    %461 = memref.load %arg6[%c83] : memref<98xf32, #tpu.memory_space<smem>>
    %462 = vector.broadcast %461 : f32 to vector<1x16x22xf32>
    %463 = arith.mulf %462, %87 : vector<1x16x22xf32>
    %c90 = arith.constant 90 : index
    %464 = memref.load %arg6[%c90] : memref<98xf32, #tpu.memory_space<smem>>
    %465 = vector.broadcast %464 : f32 to vector<1x16x22xf32>
    %466 = arith.mulf %465, %89 : vector<1x16x22xf32>
    %c97 = arith.constant 97 : index
    %467 = memref.load %arg6[%c97] : memref<98xf32, #tpu.memory_space<smem>>
    %468 = vector.broadcast %467 : f32 to vector<1x16x22xf32>
    %469 = arith.mulf %468, %91 : vector<1x16x22xf32>
    %470 = arith.addf %430, %433 : vector<1x16x22xf32>
    %471 = arith.addf %436, %439 : vector<1x16x22xf32>
    %472 = arith.addf %442, %445 : vector<1x16x22xf32>
    %473 = arith.addf %448, %451 : vector<1x16x22xf32>
    %474 = arith.addf %454, %457 : vector<1x16x22xf32>
    %475 = arith.addf %460, %463 : vector<1x16x22xf32>
    %476 = arith.addf %466, %469 : vector<1x16x22xf32>
    %477 = arith.addf %470, %471 : vector<1x16x22xf32>
    %478 = arith.addf %472, %473 : vector<1x16x22xf32>
    %479 = arith.addf %474, %475 : vector<1x16x22xf32>
    %480 = arith.addf %477, %478 : vector<1x16x22xf32>
    %481 = arith.addf %479, %476 : vector<1x16x22xf32>
    %482 = arith.addf %480, %481 : vector<1x16x22xf32>
    %483 = vector.extract_strided_slice %482 {offsets = [0, 0, 6], sizes = [1, 16, 16], strides = [1, 1, 1]} : vector<1x16x22xf32> to vector<1x16x16xf32>
    %484 = arith.addf %147, %203 : vector<1x16x16xf32>
    %485 = arith.addf %259, %315 : vector<1x16x16xf32>
    %486 = arith.addf %371, %427 : vector<1x16x16xf32>
    %487 = arith.addf %484, %485 : vector<1x16x16xf32>
    %488 = arith.addf %486, %483 : vector<1x16x16xf32>
    %489 = arith.addf %487, %488 : vector<1x16x16xf32>
    %c0_114 = arith.constant 0 : index
    %490 = memref.load %arg7[%c0_114] : memref<1xf32, #tpu.memory_space<smem>>
    %491 = vector.broadcast %490 : f32 to vector<1x16x16xf32>
    %492 = arith.addf %489, %491 : vector<1x16x16xf32>
    %cst_115 = arith.constant dense<0.000000e+00> : vector<1x16xf32>
    %493 = vector.multi_reduction <add>, %492, %cst_115 [2] : vector<1x16x16xf32> to vector<1x16xf32>
    %494 = vector.shape_cast %493 : vector<1x16xf32> to vector<1x16x1xf32>
    %cst_116 = arith.constant dense<0.000000e+00> : vector<1x1xf32>
    %495 = vector.multi_reduction <add>, %494, %cst_116 [1] : vector<1x16x1xf32> to vector<1x1xf32>
    %496 = vector.shape_cast %495 : vector<1x1xf32> to vector<1x1x1xf32>
    %cst_117 = arith.constant 3.906250e-03 : f32
    %497 = vector.broadcast %cst_117 : f32 to vector<1x1x1xf32>
    %498 = arith.mulf %496, %497 : vector<1x1x1xf32>
    %499 = vector.broadcast %498 : vector<1x1x1xf32> to vector<1x16x16xf32>
    %500 = arith.subf %492, %499 : vector<1x16x16xf32>
    %501 = arith.mulf %500, %500 : vector<1x16x16xf32>
    %cst_118 = arith.constant dense<0.000000e+00> : vector<1x16xf32>
    %502 = vector.multi_reduction <add>, %501, %cst_118 [2] : vector<1x16x16xf32> to vector<1x16xf32>
    %503 = vector.shape_cast %502 : vector<1x16xf32> to vector<1x16x1xf32>
    %cst_119 = arith.constant dense<0.000000e+00> : vector<1x1xf32>
    %504 = vector.multi_reduction <add>, %503, %cst_119 [1] : vector<1x16x1xf32> to vector<1x1xf32>
    %505 = vector.shape_cast %504 : vector<1x1xf32> to vector<1x1x1xf32>
    %cst_120 = arith.constant 0.00392156886 : f32
    %506 = vector.broadcast %cst_120 : f32 to vector<1x1x1xf32>
    %507 = arith.mulf %505, %506 : vector<1x1x1xf32>
    %cst_121 = arith.constant 9.99999974E-5 : f32
    %508 = vector.broadcast %cst_121 : f32 to vector<1x1x1xf32>
    %509 = arith.addf %507, %508 : vector<1x1x1xf32>
    %cst_122 = arith.constant 4.000000e+00 : f32
    %510 = vector.broadcast %cst_122 : f32 to vector<1x1x1xf32>
    %511 = arith.mulf %510, %509 : vector<1x1x1xf32>
    %cst_123 = arith.constant 1.000000e+00 : f32
    %512 = vector.broadcast %cst_123 : f32 to vector<1x1x1xf32>
    %513 = arith.divf %512, %511 : vector<1x1x1xf32>
    %514 = vector.broadcast %513 : vector<1x1x1xf32> to vector<1x16x16xf32>
    %515 = arith.mulf %501, %514 : vector<1x16x16xf32>
    %cst_124 = arith.constant 5.000000e-01 : f32
    %516 = vector.broadcast %cst_124 : f32 to vector<1x16x16xf32>
    %517 = arith.addf %515, %516 : vector<1x16x16xf32>
    %518 = arith.negf %517 : vector<1x16x16xf32>
    %519 = math.exp %518 : vector<1x16x16xf32>
    %cst_125 = arith.constant 1.000000e+00 : f32
    %520 = vector.broadcast %cst_125 : f32 to vector<1x16x16xf32>
    %521 = arith.addf %520, %519 : vector<1x16x16xf32>
    %522 = arith.divf %520, %521 : vector<1x16x16xf32>
    %523 = arith.mulf %492, %522 : vector<1x16x16xf32>
    %524 = arith.negf %523 : vector<1x16x16xf32>
    %525 = math.exp %524 : vector<1x16x16xf32>
    %cst_126 = arith.constant 1.000000e+00 : f32
    %526 = vector.broadcast %cst_126 : f32 to vector<1x16x16xf32>
    %527 = arith.addf %526, %525 : vector<1x16x16xf32>
    %528 = arith.divf %526, %527 : vector<1x16x16xf32>
    %cst_127 = arith.constant 6.250000e-02 : f32
    %529 = vector.broadcast %cst_127 : f32 to vector<1x4x16xf32>
    %530 = arith.mulf %39, %529 : vector<1x4x16xf32>
    %cst_128 = arith.constant 0.000000e+00 : f32
    %531 = vector.broadcast %cst_128 : f32 to vector<2x1x3x22xf32>
    %cst_129 = arith.constant 0.000000e+00 : f32
    %532 = vector.broadcast %cst_129 : f32 to vector<2x1x4x3xf32>
    %c0_130 = arith.constant 0 : index
    %c0_131 = arith.constant 0 : index
    %c0_132 = arith.constant 0 : index
    %c0_133 = arith.constant 0 : index
    %533 = vector.load %arg9[%c0_130, %c0_131, %c0_132, %c0_133] : memref<2x1x10x22xf32, #tpu.memory_space<vmem>>, vector<2x1x3x22xf32>
    tpu.vector_store %arg9[%c0_130, %c0_131, %c0_132, %c0_133], %531 {strides = array<i32>} : memref<2x1x10x22xf32, #tpu.memory_space<vmem>>, vector<2x1x3x22xf32>,
    %c0_134 = arith.constant 0 : index
    %c0_135 = arith.constant 0 : index
    %c7_136 = arith.constant 7 : index
    %c0_137 = arith.constant 0 : index
    %534 = vector.load %arg9[%c0_134, %c0_135, %c7_136, %c0_137] : memref<2x1x10x22xf32, #tpu.memory_space<vmem>>, vector<2x1x3x22xf32>
    tpu.vector_store %arg9[%c0_134, %c0_135, %c7_136, %c0_137], %531 {strides = array<i32>} : memref<2x1x10x22xf32, #tpu.memory_space<vmem>>, vector<2x1x3x22xf32>,
    %c0_138 = arith.constant 0 : index
    %c0_139 = arith.constant 0 : index
    %c3_140 = arith.constant 3 : index
    %c0_141 = arith.constant 0 : index
    %535 = vector.load %arg9[%c0_138, %c0_139, %c3_140, %c0_141] : memref<2x1x10x22xf32, #tpu.memory_space<vmem>>, vector<2x1x4x3xf32>
    tpu.vector_store %arg9[%c0_138, %c0_139, %c3_140, %c0_141], %532 {strides = array<i32>} : memref<2x1x10x22xf32, #tpu.memory_space<vmem>>, vector<2x1x4x3xf32>,
    %c0_142 = arith.constant 0 : index
    %c0_143 = arith.constant 0 : index
    %c3_144 = arith.constant 3 : index
    %c19_145 = arith.constant 19 : index
    %536 = vector.load %arg9[%c0_142, %c0_143, %c3_144, %c19_145] : memref<2x1x10x22xf32, #tpu.memory_space<vmem>>, vector<2x1x4x3xf32>
    tpu.vector_store %arg9[%c0_142, %c0_143, %c3_144, %c19_145], %532 {strides = array<i32>} : memref<2x1x10x22xf32, #tpu.memory_space<vmem>>, vector<2x1x4x3xf32>,
    %c0_146 = arith.constant 0 : index
    %c0_147 = arith.constant 0 : index
    %c3_148 = arith.constant 3 : index
    %c3_149 = arith.constant 3 : index
    %537 = vector.load %arg9[%c0_146, %c0_147, %c3_148, %c3_149] : memref<2x1x10x22xf32, #tpu.memory_space<vmem>>, vector<1x1x4x16xf32>
    %538 = vector.shape_cast %537 : vector<1x1x4x16xf32> to vector<1x4x16xf32>
    %539 = vector.shape_cast %34 : vector<1x4x16xf32> to vector<1x1x4x16xf32>
    tpu.vector_store %arg9[%c0_146, %c0_147, %c3_148, %c3_149], %539 {strides = array<i32>} : memref<2x1x10x22xf32, #tpu.memory_space<vmem>>, vector<1x1x4x16xf32>,
    %c1_150 = arith.constant 1 : index
    %c0_151 = arith.constant 0 : index
    %c3_152 = arith.constant 3 : index
    %c3_153 = arith.constant 3 : index
    %540 = vector.load %arg9[%c1_150, %c0_151, %c3_152, %c3_153] : memref<2x1x10x22xf32, #tpu.memory_space<vmem>>, vector<1x1x4x16xf32>
    %541 = vector.shape_cast %540 : vector<1x1x4x16xf32> to vector<1x4x16xf32>
    %542 = vector.shape_cast %530 : vector<1x4x16xf32> to vector<1x1x4x16xf32>
    tpu.vector_store %arg9[%c1_150, %c0_151, %c3_152, %c3_153], %542 {strides = array<i32>} : memref<2x1x10x22xf32, #tpu.memory_space<vmem>>, vector<1x1x4x16xf32>,
    %c0_154 = arith.constant 0 : index
    %c0_155 = arith.constant 0 : index
    %c0_156 = arith.constant 0 : index
    %c0_157 = arith.constant 0 : index
    %543 = vector.load %arg9[%c0_154, %c0_155, %c0_156, %c0_157] : memref<2x1x10x22xf32, #tpu.memory_space<vmem>>, vector<1x1x4x22xf32>
    %544 = vector.shape_cast %543 : vector<1x1x4x22xf32> to vector<1x4x22xf32>
    %c0_158 = arith.constant 0 : index
    %c0_159 = arith.constant 0 : index
    %c1_160 = arith.constant 1 : index
    %c0_161 = arith.constant 0 : index
    %545 = vector.load %arg9[%c0_158, %c0_159, %c1_160, %c0_161] : memref<2x1x10x22xf32, #tpu.memory_space<vmem>>, vector<1x1x4x22xf32>
    %546 = vector.shape_cast %545 : vector<1x1x4x22xf32> to vector<1x4x22xf32>
    %c0_162 = arith.constant 0 : index
    %c0_163 = arith.constant 0 : index
    %c2_164 = arith.constant 2 : index
    %c0_165 = arith.constant 0 : index
    %547 = vector.load %arg9[%c0_162, %c0_163, %c2_164, %c0_165] : memref<2x1x10x22xf32, #tpu.memory_space<vmem>>, vector<1x1x4x22xf32>
    %548 = vector.shape_cast %547 : vector<1x1x4x22xf32> to vector<1x4x22xf32>
    %c0_166 = arith.constant 0 : index
    %c0_167 = arith.constant 0 : index
    %c3_168 = arith.constant 3 : index
    %c0_169 = arith.constant 0 : index
    %549 = vector.load %arg9[%c0_166, %c0_167, %c3_168, %c0_169] : memref<2x1x10x22xf32, #tpu.memory_space<vmem>>, vector<1x1x4x22xf32>
    %550 = vector.shape_cast %549 : vector<1x1x4x22xf32> to vector<1x4x22xf32>
    %c0_170 = arith.constant 0 : index
    %c0_171 = arith.constant 0 : index
    %c4_172 = arith.constant 4 : index
    %c0_173 = arith.constant 0 : index
    %551 = vector.load %arg9[%c0_170, %c0_171, %c4_172, %c0_173] : memref<2x1x10x22xf32, #tpu.memory_space<vmem>>, vector<1x1x4x22xf32>
    %552 = vector.shape_cast %551 : vector<1x1x4x22xf32> to vector<1x4x22xf32>
    %c0_174 = arith.constant 0 : index
    %c0_175 = arith.constant 0 : index
    %c5_176 = arith.constant 5 : index
    %c0_177 = arith.constant 0 : index
    %553 = vector.load %arg9[%c0_174, %c0_175, %c5_176, %c0_177] : memref<2x1x10x22xf32, #tpu.memory_space<vmem>>, vector<1x1x4x22xf32>
    %554 = vector.shape_cast %553 : vector<1x1x4x22xf32> to vector<1x4x22xf32>
    %c0_178 = arith.constant 0 : index
    %c0_179 = arith.constant 0 : index
    %c6_180 = arith.constant 6 : index
    %c0_181 = arith.constant 0 : index
    %555 = vector.load %arg9[%c0_178, %c0_179, %c6_180, %c0_181] : memref<2x1x10x22xf32, #tpu.memory_space<vmem>>, vector<1x1x4x22xf32>
    %556 = vector.shape_cast %555 : vector<1x1x4x22xf32> to vector<1x4x22xf32>
    %c1_182 = arith.constant 1 : index
    %c0_183 = arith.constant 0 : index
    %c0_184 = arith.constant 0 : index
    %c0_185 = arith.constant 0 : index
    %557 = vector.load %arg9[%c1_182, %c0_183, %c0_184, %c0_185] : memref<2x1x10x22xf32, #tpu.memory_space<vmem>>, vector<1x1x4x22xf32>
    %558 = vector.shape_cast %557 : vector<1x1x4x22xf32> to vector<1x4x22xf32>
    %c1_186 = arith.constant 1 : index
    %c0_187 = arith.constant 0 : index
    %c1_188 = arith.constant 1 : index
    %c0_189 = arith.constant 0 : index
    %559 = vector.load %arg9[%c1_186, %c0_187, %c1_188, %c0_189] : memref<2x1x10x22xf32, #tpu.memory_space<vmem>>, vector<1x1x4x22xf32>
    %560 = vector.shape_cast %559 : vector<1x1x4x22xf32> to vector<1x4x22xf32>
    %c1_190 = arith.constant 1 : index
    %c0_191 = arith.constant 0 : index
    %c2_192 = arith.constant 2 : index
    %c0_193 = arith.constant 0 : index
    %561 = vector.load %arg9[%c1_190, %c0_191, %c2_192, %c0_193] : memref<2x1x10x22xf32, #tpu.memory_space<vmem>>, vector<1x1x4x22xf32>
    %562 = vector.shape_cast %561 : vector<1x1x4x22xf32> to vector<1x4x22xf32>
    %c1_194 = arith.constant 1 : index
    %c0_195 = arith.constant 0 : index
    %c3_196 = arith.constant 3 : index
    %c0_197 = arith.constant 0 : index
    %563 = vector.load %arg9[%c1_194, %c0_195, %c3_196, %c0_197] : memref<2x1x10x22xf32, #tpu.memory_space<vmem>>, vector<1x1x4x22xf32>
    %564 = vector.shape_cast %563 : vector<1x1x4x22xf32> to vector<1x4x22xf32>
    %c1_198 = arith.constant 1 : index
    %c0_199 = arith.constant 0 : index
    %c4_200 = arith.constant 4 : index
    %c0_201 = arith.constant 0 : index
    %565 = vector.load %arg9[%c1_198, %c0_199, %c4_200, %c0_201] : memref<2x1x10x22xf32, #tpu.memory_space<vmem>>, vector<1x1x4x22xf32>
    %566 = vector.shape_cast %565 : vector<1x1x4x22xf32> to vector<1x4x22xf32>
    %c1_202 = arith.constant 1 : index
    %c0_203 = arith.constant 0 : index
    %c5_204 = arith.constant 5 : index
    %c0_205 = arith.constant 0 : index
    %567 = vector.load %arg9[%c1_202, %c0_203, %c5_204, %c0_205] : memref<2x1x10x22xf32, #tpu.memory_space<vmem>>, vector<1x1x4x22xf32>
    %568 = vector.shape_cast %567 : vector<1x1x4x22xf32> to vector<1x4x22xf32>
    %c1_206 = arith.constant 1 : index
    %c0_207 = arith.constant 0 : index
    %c6_208 = arith.constant 6 : index
    %c0_209 = arith.constant 0 : index
    %569 = vector.load %arg9[%c1_206, %c0_207, %c6_208, %c0_209] : memref<2x1x10x22xf32, #tpu.memory_space<vmem>>, vector<1x1x4x22xf32>
    %570 = vector.shape_cast %569 : vector<1x1x4x22xf32> to vector<1x4x22xf32>
    %c0_210 = arith.constant 0 : index
    %571 = memref.load %arg2[%c0_210] : memref<98xf32, #tpu.memory_space<smem>>
    %572 = vector.broadcast %571 : f32 to vector<1x4x22xf32>
    %573 = arith.mulf %572, %544 : vector<1x4x22xf32>
    %c7_211 = arith.constant 7 : index
    %574 = memref.load %arg2[%c7_211] : memref<98xf32, #tpu.memory_space<smem>>
    %575 = vector.broadcast %574 : f32 to vector<1x4x22xf32>
    %576 = arith.mulf %575, %546 : vector<1x4x22xf32>
    %c14_212 = arith.constant 14 : index
    %577 = memref.load %arg2[%c14_212] : memref<98xf32, #tpu.memory_space<smem>>
    %578 = vector.broadcast %577 : f32 to vector<1x4x22xf32>
    %579 = arith.mulf %578, %548 : vector<1x4x22xf32>
    %c21_213 = arith.constant 21 : index
    %580 = memref.load %arg2[%c21_213] : memref<98xf32, #tpu.memory_space<smem>>
    %581 = vector.broadcast %580 : f32 to vector<1x4x22xf32>
    %582 = arith.mulf %581, %550 : vector<1x4x22xf32>
    %c28_214 = arith.constant 28 : index
    %583 = memref.load %arg2[%c28_214] : memref<98xf32, #tpu.memory_space<smem>>
    %584 = vector.broadcast %583 : f32 to vector<1x4x22xf32>
    %585 = arith.mulf %584, %552 : vector<1x4x22xf32>
    %c35_215 = arith.constant 35 : index
    %586 = memref.load %arg2[%c35_215] : memref<98xf32, #tpu.memory_space<smem>>
    %587 = vector.broadcast %586 : f32 to vector<1x4x22xf32>
    %588 = arith.mulf %587, %554 : vector<1x4x22xf32>
    %c42_216 = arith.constant 42 : index
    %589 = memref.load %arg2[%c42_216] : memref<98xf32, #tpu.memory_space<smem>>
    %590 = vector.broadcast %589 : f32 to vector<1x4x22xf32>
    %591 = arith.mulf %590, %556 : vector<1x4x22xf32>
    %c49_217 = arith.constant 49 : index
    %592 = memref.load %arg2[%c49_217] : memref<98xf32, #tpu.memory_space<smem>>
    %593 = vector.broadcast %592 : f32 to vector<1x4x22xf32>
    %594 = arith.mulf %593, %558 : vector<1x4x22xf32>
    %c56_218 = arith.constant 56 : index
    %595 = memref.load %arg2[%c56_218] : memref<98xf32, #tpu.memory_space<smem>>
    %596 = vector.broadcast %595 : f32 to vector<1x4x22xf32>
    %597 = arith.mulf %596, %560 : vector<1x4x22xf32>
    %c63_219 = arith.constant 63 : index
    %598 = memref.load %arg2[%c63_219] : memref<98xf32, #tpu.memory_space<smem>>
    %599 = vector.broadcast %598 : f32 to vector<1x4x22xf32>
    %600 = arith.mulf %599, %562 : vector<1x4x22xf32>
    %c70_220 = arith.constant 70 : index
    %601 = memref.load %arg2[%c70_220] : memref<98xf32, #tpu.memory_space<smem>>
    %602 = vector.broadcast %601 : f32 to vector<1x4x22xf32>
    %603 = arith.mulf %602, %564 : vector<1x4x22xf32>
    %c77_221 = arith.constant 77 : index
    %604 = memref.load %arg2[%c77_221] : memref<98xf32, #tpu.memory_space<smem>>
    %605 = vector.broadcast %604 : f32 to vector<1x4x22xf32>
    %606 = arith.mulf %605, %566 : vector<1x4x22xf32>
    %c84_222 = arith.constant 84 : index
    %607 = memref.load %arg2[%c84_222] : memref<98xf32, #tpu.memory_space<smem>>
    %608 = vector.broadcast %607 : f32 to vector<1x4x22xf32>
    %609 = arith.mulf %608, %568 : vector<1x4x22xf32>
    %c91_223 = arith.constant 91 : index
    %610 = memref.load %arg2[%c91_223] : memref<98xf32, #tpu.memory_space<smem>>
    %611 = vector.broadcast %610 : f32 to vector<1x4x22xf32>
    %612 = arith.mulf %611, %570 : vector<1x4x22xf32>
    %613 = arith.addf %573, %576 : vector<1x4x22xf32>
    %614 = arith.addf %579, %582 : vector<1x4x22xf32>
    %615 = arith.addf %585, %588 : vector<1x4x22xf32>
    %616 = arith.addf %591, %594 : vector<1x4x22xf32>
    %617 = arith.addf %597, %600 : vector<1x4x22xf32>
    %618 = arith.addf %603, %606 : vector<1x4x22xf32>
    %619 = arith.addf %609, %612 : vector<1x4x22xf32>
    %620 = arith.addf %613, %614 : vector<1x4x22xf32>
    %621 = arith.addf %615, %616 : vector<1x4x22xf32>
    %622 = arith.addf %617, %618 : vector<1x4x22xf32>
    %623 = arith.addf %620, %621 : vector<1x4x22xf32>
    %624 = arith.addf %622, %619 : vector<1x4x22xf32>
    %625 = arith.addf %623, %624 : vector<1x4x22xf32>
    %626 = vector.extract_strided_slice %625 {offsets = [0, 0, 0], sizes = [1, 4, 16], strides = [1, 1, 1]} : vector<1x4x22xf32> to vector<1x4x16xf32>
    %c1_224 = arith.constant 1 : index
    %627 = memref.load %arg2[%c1_224] : memref<98xf32, #tpu.memory_space<smem>>
    %628 = vector.broadcast %627 : f32 to vector<1x4x22xf32>
    %629 = arith.mulf %628, %544 : vector<1x4x22xf32>
    %c8_225 = arith.constant 8 : index
    %630 = memref.load %arg2[%c8_225] : memref<98xf32, #tpu.memory_space<smem>>
    %631 = vector.broadcast %630 : f32 to vector<1x4x22xf32>
    %632 = arith.mulf %631, %546 : vector<1x4x22xf32>
    %c15_226 = arith.constant 15 : index
    %633 = memref.load %arg2[%c15_226] : memref<98xf32, #tpu.memory_space<smem>>
    %634 = vector.broadcast %633 : f32 to vector<1x4x22xf32>
    %635 = arith.mulf %634, %548 : vector<1x4x22xf32>
    %c22_227 = arith.constant 22 : index
    %636 = memref.load %arg2[%c22_227] : memref<98xf32, #tpu.memory_space<smem>>
    %637 = vector.broadcast %636 : f32 to vector<1x4x22xf32>
    %638 = arith.mulf %637, %550 : vector<1x4x22xf32>
    %c29_228 = arith.constant 29 : index
    %639 = memref.load %arg2[%c29_228] : memref<98xf32, #tpu.memory_space<smem>>
    %640 = vector.broadcast %639 : f32 to vector<1x4x22xf32>
    %641 = arith.mulf %640, %552 : vector<1x4x22xf32>
    %c36_229 = arith.constant 36 : index
    %642 = memref.load %arg2[%c36_229] : memref<98xf32, #tpu.memory_space<smem>>
    %643 = vector.broadcast %642 : f32 to vector<1x4x22xf32>
    %644 = arith.mulf %643, %554 : vector<1x4x22xf32>
    %c43_230 = arith.constant 43 : index
    %645 = memref.load %arg2[%c43_230] : memref<98xf32, #tpu.memory_space<smem>>
    %646 = vector.broadcast %645 : f32 to vector<1x4x22xf32>
    %647 = arith.mulf %646, %556 : vector<1x4x22xf32>
    %c50_231 = arith.constant 50 : index
    %648 = memref.load %arg2[%c50_231] : memref<98xf32, #tpu.memory_space<smem>>
    %649 = vector.broadcast %648 : f32 to vector<1x4x22xf32>
    %650 = arith.mulf %649, %558 : vector<1x4x22xf32>
    %c57_232 = arith.constant 57 : index
    %651 = memref.load %arg2[%c57_232] : memref<98xf32, #tpu.memory_space<smem>>
    %652 = vector.broadcast %651 : f32 to vector<1x4x22xf32>
    %653 = arith.mulf %652, %560 : vector<1x4x22xf32>
    %c64_233 = arith.constant 64 : index
    %654 = memref.load %arg2[%c64_233] : memref<98xf32, #tpu.memory_space<smem>>
    %655 = vector.broadcast %654 : f32 to vector<1x4x22xf32>
    %656 = arith.mulf %655, %562 : vector<1x4x22xf32>
    %c71_234 = arith.constant 71 : index
    %657 = memref.load %arg2[%c71_234] : memref<98xf32, #tpu.memory_space<smem>>
    %658 = vector.broadcast %657 : f32 to vector<1x4x22xf32>
    %659 = arith.mulf %658, %564 : vector<1x4x22xf32>
    %c78_235 = arith.constant 78 : index
    %660 = memref.load %arg2[%c78_235] : memref<98xf32, #tpu.memory_space<smem>>
    %661 = vector.broadcast %660 : f32 to vector<1x4x22xf32>
    %662 = arith.mulf %661, %566 : vector<1x4x22xf32>
    %c85_236 = arith.constant 85 : index
    %663 = memref.load %arg2[%c85_236] : memref<98xf32, #tpu.memory_space<smem>>
    %664 = vector.broadcast %663 : f32 to vector<1x4x22xf32>
    %665 = arith.mulf %664, %568 : vector<1x4x22xf32>
    %c92_237 = arith.constant 92 : index
    %666 = memref.load %arg2[%c92_237] : memref<98xf32, #tpu.memory_space<smem>>
    %667 = vector.broadcast %666 : f32 to vector<1x4x22xf32>
    %668 = arith.mulf %667, %570 : vector<1x4x22xf32>
    %669 = arith.addf %629, %632 : vector<1x4x22xf32>
    %670 = arith.addf %635, %638 : vector<1x4x22xf32>
    %671 = arith.addf %641, %644 : vector<1x4x22xf32>
    %672 = arith.addf %647, %650 : vector<1x4x22xf32>
    %673 = arith.addf %653, %656 : vector<1x4x22xf32>
    %674 = arith.addf %659, %662 : vector<1x4x22xf32>
    %675 = arith.addf %665, %668 : vector<1x4x22xf32>
    %676 = arith.addf %669, %670 : vector<1x4x22xf32>
    %677 = arith.addf %671, %672 : vector<1x4x22xf32>
    %678 = arith.addf %673, %674 : vector<1x4x22xf32>
    %679 = arith.addf %676, %677 : vector<1x4x22xf32>
    %680 = arith.addf %678, %675 : vector<1x4x22xf32>
    %681 = arith.addf %679, %680 : vector<1x4x22xf32>
    %682 = vector.extract_strided_slice %681 {offsets = [0, 0, 1], sizes = [1, 4, 16], strides = [1, 1, 1]} : vector<1x4x22xf32> to vector<1x4x16xf32>
    %c2_238 = arith.constant 2 : index
    %683 = memref.load %arg2[%c2_238] : memref<98xf32, #tpu.memory_space<smem>>
    %684 = vector.broadcast %683 : f32 to vector<1x4x22xf32>
    %685 = arith.mulf %684, %544 : vector<1x4x22xf32>
    %c9_239 = arith.constant 9 : index
    %686 = memref.load %arg2[%c9_239] : memref<98xf32, #tpu.memory_space<smem>>
    %687 = vector.broadcast %686 : f32 to vector<1x4x22xf32>
    %688 = arith.mulf %687, %546 : vector<1x4x22xf32>
    %c16_240 = arith.constant 16 : index
    %689 = memref.load %arg2[%c16_240] : memref<98xf32, #tpu.memory_space<smem>>
    %690 = vector.broadcast %689 : f32 to vector<1x4x22xf32>
    %691 = arith.mulf %690, %548 : vector<1x4x22xf32>
    %c23_241 = arith.constant 23 : index
    %692 = memref.load %arg2[%c23_241] : memref<98xf32, #tpu.memory_space<smem>>
    %693 = vector.broadcast %692 : f32 to vector<1x4x22xf32>
    %694 = arith.mulf %693, %550 : vector<1x4x22xf32>
    %c30_242 = arith.constant 30 : index
    %695 = memref.load %arg2[%c30_242] : memref<98xf32, #tpu.memory_space<smem>>
    %696 = vector.broadcast %695 : f32 to vector<1x4x22xf32>
    %697 = arith.mulf %696, %552 : vector<1x4x22xf32>
    %c37_243 = arith.constant 37 : index
    %698 = memref.load %arg2[%c37_243] : memref<98xf32, #tpu.memory_space<smem>>
    %699 = vector.broadcast %698 : f32 to vector<1x4x22xf32>
    %700 = arith.mulf %699, %554 : vector<1x4x22xf32>
    %c44_244 = arith.constant 44 : index
    %701 = memref.load %arg2[%c44_244] : memref<98xf32, #tpu.memory_space<smem>>
    %702 = vector.broadcast %701 : f32 to vector<1x4x22xf32>
    %703 = arith.mulf %702, %556 : vector<1x4x22xf32>
    %c51_245 = arith.constant 51 : index
    %704 = memref.load %arg2[%c51_245] : memref<98xf32, #tpu.memory_space<smem>>
    %705 = vector.broadcast %704 : f32 to vector<1x4x22xf32>
    %706 = arith.mulf %705, %558 : vector<1x4x22xf32>
    %c58_246 = arith.constant 58 : index
    %707 = memref.load %arg2[%c58_246] : memref<98xf32, #tpu.memory_space<smem>>
    %708 = vector.broadcast %707 : f32 to vector<1x4x22xf32>
    %709 = arith.mulf %708, %560 : vector<1x4x22xf32>
    %c65_247 = arith.constant 65 : index
    %710 = memref.load %arg2[%c65_247] : memref<98xf32, #tpu.memory_space<smem>>
    %711 = vector.broadcast %710 : f32 to vector<1x4x22xf32>
    %712 = arith.mulf %711, %562 : vector<1x4x22xf32>
    %c72_248 = arith.constant 72 : index
    %713 = memref.load %arg2[%c72_248] : memref<98xf32, #tpu.memory_space<smem>>
    %714 = vector.broadcast %713 : f32 to vector<1x4x22xf32>
    %715 = arith.mulf %714, %564 : vector<1x4x22xf32>
    %c79_249 = arith.constant 79 : index
    %716 = memref.load %arg2[%c79_249] : memref<98xf32, #tpu.memory_space<smem>>
    %717 = vector.broadcast %716 : f32 to vector<1x4x22xf32>
    %718 = arith.mulf %717, %566 : vector<1x4x22xf32>
    %c86_250 = arith.constant 86 : index
    %719 = memref.load %arg2[%c86_250] : memref<98xf32, #tpu.memory_space<smem>>
    %720 = vector.broadcast %719 : f32 to vector<1x4x22xf32>
    %721 = arith.mulf %720, %568 : vector<1x4x22xf32>
    %c93_251 = arith.constant 93 : index
    %722 = memref.load %arg2[%c93_251] : memref<98xf32, #tpu.memory_space<smem>>
    %723 = vector.broadcast %722 : f32 to vector<1x4x22xf32>
    %724 = arith.mulf %723, %570 : vector<1x4x22xf32>
    %725 = arith.addf %685, %688 : vector<1x4x22xf32>
    %726 = arith.addf %691, %694 : vector<1x4x22xf32>
    %727 = arith.addf %697, %700 : vector<1x4x22xf32>
    %728 = arith.addf %703, %706 : vector<1x4x22xf32>
    %729 = arith.addf %709, %712 : vector<1x4x22xf32>
    %730 = arith.addf %715, %718 : vector<1x4x22xf32>
    %731 = arith.addf %721, %724 : vector<1x4x22xf32>
    %732 = arith.addf %725, %726 : vector<1x4x22xf32>
    %733 = arith.addf %727, %728 : vector<1x4x22xf32>
    %734 = arith.addf %729, %730 : vector<1x4x22xf32>
    %735 = arith.addf %732, %733 : vector<1x4x22xf32>
    %736 = arith.addf %734, %731 : vector<1x4x22xf32>
    %737 = arith.addf %735, %736 : vector<1x4x22xf32>
    %738 = vector.extract_strided_slice %737 {offsets = [0, 0, 2], sizes = [1, 4, 16], strides = [1, 1, 1]} : vector<1x4x22xf32> to vector<1x4x16xf32>
    %c3_252 = arith.constant 3 : index
    %739 = memref.load %arg2[%c3_252] : memref<98xf32, #tpu.memory_space<smem>>
    %740 = vector.broadcast %739 : f32 to vector<1x4x22xf32>
    %741 = arith.mulf %740, %544 : vector<1x4x22xf32>
    %c10_253 = arith.constant 10 : index
    %742 = memref.load %arg2[%c10_253] : memref<98xf32, #tpu.memory_space<smem>>
    %743 = vector.broadcast %742 : f32 to vector<1x4x22xf32>
    %744 = arith.mulf %743, %546 : vector<1x4x22xf32>
    %c17_254 = arith.constant 17 : index
    %745 = memref.load %arg2[%c17_254] : memref<98xf32, #tpu.memory_space<smem>>
    %746 = vector.broadcast %745 : f32 to vector<1x4x22xf32>
    %747 = arith.mulf %746, %548 : vector<1x4x22xf32>
    %c24_255 = arith.constant 24 : index
    %748 = memref.load %arg2[%c24_255] : memref<98xf32, #tpu.memory_space<smem>>
    %749 = vector.broadcast %748 : f32 to vector<1x4x22xf32>
    %750 = arith.mulf %749, %550 : vector<1x4x22xf32>
    %c31_256 = arith.constant 31 : index
    %751 = memref.load %arg2[%c31_256] : memref<98xf32, #tpu.memory_space<smem>>
    %752 = vector.broadcast %751 : f32 to vector<1x4x22xf32>
    %753 = arith.mulf %752, %552 : vector<1x4x22xf32>
    %c38_257 = arith.constant 38 : index
    %754 = memref.load %arg2[%c38_257] : memref<98xf32, #tpu.memory_space<smem>>
    %755 = vector.broadcast %754 : f32 to vector<1x4x22xf32>
    %756 = arith.mulf %755, %554 : vector<1x4x22xf32>
    %c45_258 = arith.constant 45 : index
    %757 = memref.load %arg2[%c45_258] : memref<98xf32, #tpu.memory_space<smem>>
    %758 = vector.broadcast %757 : f32 to vector<1x4x22xf32>
    %759 = arith.mulf %758, %556 : vector<1x4x22xf32>
    %c52_259 = arith.constant 52 : index
    %760 = memref.load %arg2[%c52_259] : memref<98xf32, #tpu.memory_space<smem>>
    %761 = vector.broadcast %760 : f32 to vector<1x4x22xf32>
    %762 = arith.mulf %761, %558 : vector<1x4x22xf32>
    %c59_260 = arith.constant 59 : index
    %763 = memref.load %arg2[%c59_260] : memref<98xf32, #tpu.memory_space<smem>>
    %764 = vector.broadcast %763 : f32 to vector<1x4x22xf32>
    %765 = arith.mulf %764, %560 : vector<1x4x22xf32>
    %c66_261 = arith.constant 66 : index
    %766 = memref.load %arg2[%c66_261] : memref<98xf32, #tpu.memory_space<smem>>
    %767 = vector.broadcast %766 : f32 to vector<1x4x22xf32>
    %768 = arith.mulf %767, %562 : vector<1x4x22xf32>
    %c73_262 = arith.constant 73 : index
    %769 = memref.load %arg2[%c73_262] : memref<98xf32, #tpu.memory_space<smem>>
    %770 = vector.broadcast %769 : f32 to vector<1x4x22xf32>
    %771 = arith.mulf %770, %564 : vector<1x4x22xf32>
    %c80_263 = arith.constant 80 : index
    %772 = memref.load %arg2[%c80_263] : memref<98xf32, #tpu.memory_space<smem>>
    %773 = vector.broadcast %772 : f32 to vector<1x4x22xf32>
    %774 = arith.mulf %773, %566 : vector<1x4x22xf32>
    %c87_264 = arith.constant 87 : index
    %775 = memref.load %arg2[%c87_264] : memref<98xf32, #tpu.memory_space<smem>>
    %776 = vector.broadcast %775 : f32 to vector<1x4x22xf32>
    %777 = arith.mulf %776, %568 : vector<1x4x22xf32>
    %c94_265 = arith.constant 94 : index
    %778 = memref.load %arg2[%c94_265] : memref<98xf32, #tpu.memory_space<smem>>
    %779 = vector.broadcast %778 : f32 to vector<1x4x22xf32>
    %780 = arith.mulf %779, %570 : vector<1x4x22xf32>
    %781 = arith.addf %741, %744 : vector<1x4x22xf32>
    %782 = arith.addf %747, %750 : vector<1x4x22xf32>
    %783 = arith.addf %753, %756 : vector<1x4x22xf32>
    %784 = arith.addf %759, %762 : vector<1x4x22xf32>
    %785 = arith.addf %765, %768 : vector<1x4x22xf32>
    %786 = arith.addf %771, %774 : vector<1x4x22xf32>
    %787 = arith.addf %777, %780 : vector<1x4x22xf32>
    %788 = arith.addf %781, %782 : vector<1x4x22xf32>
    %789 = arith.addf %783, %784 : vector<1x4x22xf32>
    %790 = arith.addf %785, %786 : vector<1x4x22xf32>
    %791 = arith.addf %788, %789 : vector<1x4x22xf32>
    %792 = arith.addf %790, %787 : vector<1x4x22xf32>
    %793 = arith.addf %791, %792 : vector<1x4x22xf32>
    %794 = vector.extract_strided_slice %793 {offsets = [0, 0, 3], sizes = [1, 4, 16], strides = [1, 1, 1]} : vector<1x4x22xf32> to vector<1x4x16xf32>
    %c4_266 = arith.constant 4 : index
    %795 = memref.load %arg2[%c4_266] : memref<98xf32, #tpu.memory_space<smem>>
    %796 = vector.broadcast %795 : f32 to vector<1x4x22xf32>
    %797 = arith.mulf %796, %544 : vector<1x4x22xf32>
    %c11_267 = arith.constant 11 : index
    %798 = memref.load %arg2[%c11_267] : memref<98xf32, #tpu.memory_space<smem>>
    %799 = vector.broadcast %798 : f32 to vector<1x4x22xf32>
    %800 = arith.mulf %799, %546 : vector<1x4x22xf32>
    %c18_268 = arith.constant 18 : index
    %801 = memref.load %arg2[%c18_268] : memref<98xf32, #tpu.memory_space<smem>>
    %802 = vector.broadcast %801 : f32 to vector<1x4x22xf32>
    %803 = arith.mulf %802, %548 : vector<1x4x22xf32>
    %c25_269 = arith.constant 25 : index
    %804 = memref.load %arg2[%c25_269] : memref<98xf32, #tpu.memory_space<smem>>
    %805 = vector.broadcast %804 : f32 to vector<1x4x22xf32>
    %806 = arith.mulf %805, %550 : vector<1x4x22xf32>
    %c32_270 = arith.constant 32 : index
    %807 = memref.load %arg2[%c32_270] : memref<98xf32, #tpu.memory_space<smem>>
    %808 = vector.broadcast %807 : f32 to vector<1x4x22xf32>
    %809 = arith.mulf %808, %552 : vector<1x4x22xf32>
    %c39_271 = arith.constant 39 : index
    %810 = memref.load %arg2[%c39_271] : memref<98xf32, #tpu.memory_space<smem>>
    %811 = vector.broadcast %810 : f32 to vector<1x4x22xf32>
    %812 = arith.mulf %811, %554 : vector<1x4x22xf32>
    %c46_272 = arith.constant 46 : index
    %813 = memref.load %arg2[%c46_272] : memref<98xf32, #tpu.memory_space<smem>>
    %814 = vector.broadcast %813 : f32 to vector<1x4x22xf32>
    %815 = arith.mulf %814, %556 : vector<1x4x22xf32>
    %c53_273 = arith.constant 53 : index
    %816 = memref.load %arg2[%c53_273] : memref<98xf32, #tpu.memory_space<smem>>
    %817 = vector.broadcast %816 : f32 to vector<1x4x22xf32>
    %818 = arith.mulf %817, %558 : vector<1x4x22xf32>
    %c60_274 = arith.constant 60 : index
    %819 = memref.load %arg2[%c60_274] : memref<98xf32, #tpu.memory_space<smem>>
    %820 = vector.broadcast %819 : f32 to vector<1x4x22xf32>
    %821 = arith.mulf %820, %560 : vector<1x4x22xf32>
    %c67_275 = arith.constant 67 : index
    %822 = memref.load %arg2[%c67_275] : memref<98xf32, #tpu.memory_space<smem>>
    %823 = vector.broadcast %822 : f32 to vector<1x4x22xf32>
    %824 = arith.mulf %823, %562 : vector<1x4x22xf32>
    %c74_276 = arith.constant 74 : index
    %825 = memref.load %arg2[%c74_276] : memref<98xf32, #tpu.memory_space<smem>>
    %826 = vector.broadcast %825 : f32 to vector<1x4x22xf32>
    %827 = arith.mulf %826, %564 : vector<1x4x22xf32>
    %c81_277 = arith.constant 81 : index
    %828 = memref.load %arg2[%c81_277] : memref<98xf32, #tpu.memory_space<smem>>
    %829 = vector.broadcast %828 : f32 to vector<1x4x22xf32>
    %830 = arith.mulf %829, %566 : vector<1x4x22xf32>
    %c88_278 = arith.constant 88 : index
    %831 = memref.load %arg2[%c88_278] : memref<98xf32, #tpu.memory_space<smem>>
    %832 = vector.broadcast %831 : f32 to vector<1x4x22xf32>
    %833 = arith.mulf %832, %568 : vector<1x4x22xf32>
    %c95_279 = arith.constant 95 : index
    %834 = memref.load %arg2[%c95_279] : memref<98xf32, #tpu.memory_space<smem>>
    %835 = vector.broadcast %834 : f32 to vector<1x4x22xf32>
    %836 = arith.mulf %835, %570 : vector<1x4x22xf32>
    %837 = arith.addf %797, %800 : vector<1x4x22xf32>
    %838 = arith.addf %803, %806 : vector<1x4x22xf32>
    %839 = arith.addf %809, %812 : vector<1x4x22xf32>
    %840 = arith.addf %815, %818 : vector<1x4x22xf32>
    %841 = arith.addf %821, %824 : vector<1x4x22xf32>
    %842 = arith.addf %827, %830 : vector<1x4x22xf32>
    %843 = arith.addf %833, %836 : vector<1x4x22xf32>
    %844 = arith.addf %837, %838 : vector<1x4x22xf32>
    %845 = arith.addf %839, %840 : vector<1x4x22xf32>
    %846 = arith.addf %841, %842 : vector<1x4x22xf32>
    %847 = arith.addf %844, %845 : vector<1x4x22xf32>
    %848 = arith.addf %846, %843 : vector<1x4x22xf32>
    %849 = arith.addf %847, %848 : vector<1x4x22xf32>
    %850 = vector.extract_strided_slice %849 {offsets = [0, 0, 4], sizes = [1, 4, 16], strides = [1, 1, 1]} : vector<1x4x22xf32> to vector<1x4x16xf32>
    %c5_280 = arith.constant 5 : index
    %851 = memref.load %arg2[%c5_280] : memref<98xf32, #tpu.memory_space<smem>>
    %852 = vector.broadcast %851 : f32 to vector<1x4x22xf32>
    %853 = arith.mulf %852, %544 : vector<1x4x22xf32>
    %c12_281 = arith.constant 12 : index
    %854 = memref.load %arg2[%c12_281] : memref<98xf32, #tpu.memory_space<smem>>
    %855 = vector.broadcast %854 : f32 to vector<1x4x22xf32>
    %856 = arith.mulf %855, %546 : vector<1x4x22xf32>
    %c19_282 = arith.constant 19 : index
    %857 = memref.load %arg2[%c19_282] : memref<98xf32, #tpu.memory_space<smem>>
    %858 = vector.broadcast %857 : f32 to vector<1x4x22xf32>
    %859 = arith.mulf %858, %548 : vector<1x4x22xf32>
    %c26_283 = arith.constant 26 : index
    %860 = memref.load %arg2[%c26_283] : memref<98xf32, #tpu.memory_space<smem>>
    %861 = vector.broadcast %860 : f32 to vector<1x4x22xf32>
    %862 = arith.mulf %861, %550 : vector<1x4x22xf32>
    %c33_284 = arith.constant 33 : index
    %863 = memref.load %arg2[%c33_284] : memref<98xf32, #tpu.memory_space<smem>>
    %864 = vector.broadcast %863 : f32 to vector<1x4x22xf32>
    %865 = arith.mulf %864, %552 : vector<1x4x22xf32>
    %c40_285 = arith.constant 40 : index
    %866 = memref.load %arg2[%c40_285] : memref<98xf32, #tpu.memory_space<smem>>
    %867 = vector.broadcast %866 : f32 to vector<1x4x22xf32>
    %868 = arith.mulf %867, %554 : vector<1x4x22xf32>
    %c47_286 = arith.constant 47 : index
    %869 = memref.load %arg2[%c47_286] : memref<98xf32, #tpu.memory_space<smem>>
    %870 = vector.broadcast %869 : f32 to vector<1x4x22xf32>
    %871 = arith.mulf %870, %556 : vector<1x4x22xf32>
    %c54_287 = arith.constant 54 : index
    %872 = memref.load %arg2[%c54_287] : memref<98xf32, #tpu.memory_space<smem>>
    %873 = vector.broadcast %872 : f32 to vector<1x4x22xf32>
    %874 = arith.mulf %873, %558 : vector<1x4x22xf32>
    %c61_288 = arith.constant 61 : index
    %875 = memref.load %arg2[%c61_288] : memref<98xf32, #tpu.memory_space<smem>>
    %876 = vector.broadcast %875 : f32 to vector<1x4x22xf32>
    %877 = arith.mulf %876, %560 : vector<1x4x22xf32>
    %c68_289 = arith.constant 68 : index
    %878 = memref.load %arg2[%c68_289] : memref<98xf32, #tpu.memory_space<smem>>
    %879 = vector.broadcast %878 : f32 to vector<1x4x22xf32>
    %880 = arith.mulf %879, %562 : vector<1x4x22xf32>
    %c75_290 = arith.constant 75 : index
    %881 = memref.load %arg2[%c75_290] : memref<98xf32, #tpu.memory_space<smem>>
    %882 = vector.broadcast %881 : f32 to vector<1x4x22xf32>
    %883 = arith.mulf %882, %564 : vector<1x4x22xf32>
    %c82_291 = arith.constant 82 : index
    %884 = memref.load %arg2[%c82_291] : memref<98xf32, #tpu.memory_space<smem>>
    %885 = vector.broadcast %884 : f32 to vector<1x4x22xf32>
    %886 = arith.mulf %885, %566 : vector<1x4x22xf32>
    %c89_292 = arith.constant 89 : index
    %887 = memref.load %arg2[%c89_292] : memref<98xf32, #tpu.memory_space<smem>>
    %888 = vector.broadcast %887 : f32 to vector<1x4x22xf32>
    %889 = arith.mulf %888, %568 : vector<1x4x22xf32>
    %c96_293 = arith.constant 96 : index
    %890 = memref.load %arg2[%c96_293] : memref<98xf32, #tpu.memory_space<smem>>
    %891 = vector.broadcast %890 : f32 to vector<1x4x22xf32>
    %892 = arith.mulf %891, %570 : vector<1x4x22xf32>
    %893 = arith.addf %853, %856 : vector<1x4x22xf32>
    %894 = arith.addf %859, %862 : vector<1x4x22xf32>
    %895 = arith.addf %865, %868 : vector<1x4x22xf32>
    %896 = arith.addf %871, %874 : vector<1x4x22xf32>
    %897 = arith.addf %877, %880 : vector<1x4x22xf32>
    %898 = arith.addf %883, %886 : vector<1x4x22xf32>
    %899 = arith.addf %889, %892 : vector<1x4x22xf32>
    %900 = arith.addf %893, %894 : vector<1x4x22xf32>
    %901 = arith.addf %895, %896 : vector<1x4x22xf32>
    %902 = arith.addf %897, %898 : vector<1x4x22xf32>
    %903 = arith.addf %900, %901 : vector<1x4x22xf32>
    %904 = arith.addf %902, %899 : vector<1x4x22xf32>
    %905 = arith.addf %903, %904 : vector<1x4x22xf32>
    %906 = vector.extract_strided_slice %905 {offsets = [0, 0, 5], sizes = [1, 4, 16], strides = [1, 1, 1]} : vector<1x4x22xf32> to vector<1x4x16xf32>
    %c6_294 = arith.constant 6 : index
    %907 = memref.load %arg2[%c6_294] : memref<98xf32, #tpu.memory_space<smem>>
    %908 = vector.broadcast %907 : f32 to vector<1x4x22xf32>
    %909 = arith.mulf %908, %544 : vector<1x4x22xf32>
    %c13_295 = arith.constant 13 : index
    %910 = memref.load %arg2[%c13_295] : memref<98xf32, #tpu.memory_space<smem>>
    %911 = vector.broadcast %910 : f32 to vector<1x4x22xf32>
    %912 = arith.mulf %911, %546 : vector<1x4x22xf32>
    %c20_296 = arith.constant 20 : index
    %913 = memref.load %arg2[%c20_296] : memref<98xf32, #tpu.memory_space<smem>>
    %914 = vector.broadcast %913 : f32 to vector<1x4x22xf32>
    %915 = arith.mulf %914, %548 : vector<1x4x22xf32>
    %c27_297 = arith.constant 27 : index
    %916 = memref.load %arg2[%c27_297] : memref<98xf32, #tpu.memory_space<smem>>
    %917 = vector.broadcast %916 : f32 to vector<1x4x22xf32>
    %918 = arith.mulf %917, %550 : vector<1x4x22xf32>
    %c34_298 = arith.constant 34 : index
    %919 = memref.load %arg2[%c34_298] : memref<98xf32, #tpu.memory_space<smem>>
    %920 = vector.broadcast %919 : f32 to vector<1x4x22xf32>
    %921 = arith.mulf %920, %552 : vector<1x4x22xf32>
    %c41_299 = arith.constant 41 : index
    %922 = memref.load %arg2[%c41_299] : memref<98xf32, #tpu.memory_space<smem>>
    %923 = vector.broadcast %922 : f32 to vector<1x4x22xf32>
    %924 = arith.mulf %923, %554 : vector<1x4x22xf32>
    %c48_300 = arith.constant 48 : index
    %925 = memref.load %arg2[%c48_300] : memref<98xf32, #tpu.memory_space<smem>>
    %926 = vector.broadcast %925 : f32 to vector<1x4x22xf32>
    %927 = arith.mulf %926, %556 : vector<1x4x22xf32>
    %c55_301 = arith.constant 55 : index
    %928 = memref.load %arg2[%c55_301] : memref<98xf32, #tpu.memory_space<smem>>
    %929 = vector.broadcast %928 : f32 to vector<1x4x22xf32>
    %930 = arith.mulf %929, %558 : vector<1x4x22xf32>
    %c62_302 = arith.constant 62 : index
    %931 = memref.load %arg2[%c62_302] : memref<98xf32, #tpu.memory_space<smem>>
    %932 = vector.broadcast %931 : f32 to vector<1x4x22xf32>
    %933 = arith.mulf %932, %560 : vector<1x4x22xf32>
    %c69_303 = arith.constant 69 : index
    %934 = memref.load %arg2[%c69_303] : memref<98xf32, #tpu.memory_space<smem>>
    %935 = vector.broadcast %934 : f32 to vector<1x4x22xf32>
    %936 = arith.mulf %935, %562 : vector<1x4x22xf32>
    %c76_304 = arith.constant 76 : index
    %937 = memref.load %arg2[%c76_304] : memref<98xf32, #tpu.memory_space<smem>>
    %938 = vector.broadcast %937 : f32 to vector<1x4x22xf32>
    %939 = arith.mulf %938, %564 : vector<1x4x22xf32>
    %c83_305 = arith.constant 83 : index
    %940 = memref.load %arg2[%c83_305] : memref<98xf32, #tpu.memory_space<smem>>
    %941 = vector.broadcast %940 : f32 to vector<1x4x22xf32>
    %942 = arith.mulf %941, %566 : vector<1x4x22xf32>
    %c90_306 = arith.constant 90 : index
    %943 = memref.load %arg2[%c90_306] : memref<98xf32, #tpu.memory_space<smem>>
    %944 = vector.broadcast %943 : f32 to vector<1x4x22xf32>
    %945 = arith.mulf %944, %568 : vector<1x4x22xf32>
    %c97_307 = arith.constant 97 : index
    %946 = memref.load %arg2[%c97_307] : memref<98xf32, #tpu.memory_space<smem>>
    %947 = vector.broadcast %946 : f32 to vector<1x4x22xf32>
    %948 = arith.mulf %947, %570 : vector<1x4x22xf32>
    %949 = arith.addf %909, %912 : vector<1x4x22xf32>
    %950 = arith.addf %915, %918 : vector<1x4x22xf32>
    %951 = arith.addf %921, %924 : vector<1x4x22xf32>
    %952 = arith.addf %927, %930 : vector<1x4x22xf32>
    %953 = arith.addf %933, %936 : vector<1x4x22xf32>
    %954 = arith.addf %939, %942 : vector<1x4x22xf32>
    %955 = arith.addf %945, %948 : vector<1x4x22xf32>
    %956 = arith.addf %949, %950 : vector<1x4x22xf32>
    %957 = arith.addf %951, %952 : vector<1x4x22xf32>
    %958 = arith.addf %953, %954 : vector<1x4x22xf32>
    %959 = arith.addf %956, %957 : vector<1x4x22xf32>
    %960 = arith.addf %958, %955 : vector<1x4x22xf32>
    %961 = arith.addf %959, %960 : vector<1x4x22xf32>
    %962 = vector.extract_strided_slice %961 {offsets = [0, 0, 6], sizes = [1, 4, 16], strides = [1, 1, 1]} : vector<1x4x22xf32> to vector<1x4x16xf32>
    %963 = arith.addf %626, %682 : vector<1x4x16xf32>
    %964 = arith.addf %738, %794 : vector<1x4x16xf32>
    %965 = arith.addf %850, %906 : vector<1x4x16xf32>
    %966 = arith.addf %963, %964 : vector<1x4x16xf32>
    %967 = arith.addf %965, %962 : vector<1x4x16xf32>
    %968 = arith.addf %966, %967 : vector<1x4x16xf32>
    %c0_308 = arith.constant 0 : index
    %969 = memref.load %arg3[%c0_308] : memref<1xf32, #tpu.memory_space<smem>>
    %970 = vector.broadcast %969 : f32 to vector<1x4x16xf32>
    %971 = arith.addf %968, %970 : vector<1x4x16xf32>
    %cst_309 = arith.constant dense<0.000000e+00> : vector<1x4xf32>
    %972 = vector.multi_reduction <add>, %971, %cst_309 [2] : vector<1x4x16xf32> to vector<1x4xf32>
    %973 = vector.shape_cast %972 : vector<1x4xf32> to vector<1x4x1xf32>
    %cst_310 = arith.constant dense<0.000000e+00> : vector<1x1xf32>
    %974 = vector.multi_reduction <add>, %973, %cst_310 [1] : vector<1x4x1xf32> to vector<1x1xf32>
    %975 = vector.shape_cast %974 : vector<1x1xf32> to vector<1x1x1xf32>
    %cst_311 = arith.constant 1.562500e-02 : f32
    %976 = vector.broadcast %cst_311 : f32 to vector<1x1x1xf32>
    %977 = arith.mulf %975, %976 : vector<1x1x1xf32>
    %978 = vector.broadcast %977 : vector<1x1x1xf32> to vector<1x4x16xf32>
    %979 = arith.subf %971, %978 : vector<1x4x16xf32>
    %980 = arith.mulf %979, %979 : vector<1x4x16xf32>
    %cst_312 = arith.constant dense<0.000000e+00> : vector<1x4xf32>
    %981 = vector.multi_reduction <add>, %980, %cst_312 [2] : vector<1x4x16xf32> to vector<1x4xf32>
    %982 = vector.shape_cast %981 : vector<1x4xf32> to vector<1x4x1xf32>
    %cst_313 = arith.constant dense<0.000000e+00> : vector<1x1xf32>
    %983 = vector.multi_reduction <add>, %982, %cst_313 [1] : vector<1x4x1xf32> to vector<1x1xf32>
    %984 = vector.shape_cast %983 : vector<1x1xf32> to vector<1x1x1xf32>
    %cst_314 = arith.constant 0.0158730168 : f32
    %985 = vector.broadcast %cst_314 : f32 to vector<1x1x1xf32>
    %986 = arith.mulf %984, %985 : vector<1x1x1xf32>
    %cst_315 = arith.constant 9.99999974E-5 : f32
    %987 = vector.broadcast %cst_315 : f32 to vector<1x1x1xf32>
    %988 = arith.addf %986, %987 : vector<1x1x1xf32>
    %cst_316 = arith.constant 4.000000e+00 : f32
    %989 = vector.broadcast %cst_316 : f32 to vector<1x1x1xf32>
    %990 = arith.mulf %989, %988 : vector<1x1x1xf32>
    %cst_317 = arith.constant 1.000000e+00 : f32
    %991 = vector.broadcast %cst_317 : f32 to vector<1x1x1xf32>
    %992 = arith.divf %991, %990 : vector<1x1x1xf32>
    %993 = vector.broadcast %992 : vector<1x1x1xf32> to vector<1x4x16xf32>
    %994 = arith.mulf %980, %993 : vector<1x4x16xf32>
    %cst_318 = arith.constant 5.000000e-01 : f32
    %995 = vector.broadcast %cst_318 : f32 to vector<1x4x16xf32>
    %996 = arith.addf %994, %995 : vector<1x4x16xf32>
    %997 = arith.negf %996 : vector<1x4x16xf32>
    %998 = math.exp %997 : vector<1x4x16xf32>
    %cst_319 = arith.constant 1.000000e+00 : f32
    %999 = vector.broadcast %cst_319 : f32 to vector<1x4x16xf32>
    %1000 = arith.addf %999, %998 : vector<1x4x16xf32>
    %1001 = arith.divf %999, %1000 : vector<1x4x16xf32>
    %1002 = arith.mulf %971, %1001 : vector<1x4x16xf32>
    %1003 = arith.negf %1002 : vector<1x4x16xf32>
    %1004 = math.exp %1003 : vector<1x4x16xf32>
    %cst_320 = arith.constant 1.000000e+00 : f32
    %1005 = vector.broadcast %cst_320 : f32 to vector<1x4x16xf32>
    %1006 = arith.addf %1005, %1004 : vector<1x4x16xf32>
    %1007 = arith.divf %1005, %1006 : vector<1x4x16xf32>
    %cst_321 = arith.constant 6.250000e-02 : f32
    %1008 = vector.broadcast %cst_321 : f32 to vector<1x4x16xf32>
    %1009 = arith.mulf %49, %1008 : vector<1x4x16xf32>
    %cst_322 = arith.constant 0.000000e+00 : f32
    %1010 = vector.broadcast %cst_322 : f32 to vector<2x1x3x22xf32>
    %cst_323 = arith.constant 0.000000e+00 : f32
    %1011 = vector.broadcast %cst_323 : f32 to vector<2x1x4x3xf32>
    %c0_324 = arith.constant 0 : index
    %c0_325 = arith.constant 0 : index
    %c0_326 = arith.constant 0 : index
    %c0_327 = arith.constant 0 : index
    %1012 = vector.load %arg10[%c0_324, %c0_325, %c0_326, %c0_327] : memref<2x1x10x22xf32, #tpu.memory_space<vmem>>, vector<2x1x3x22xf32>
    tpu.vector_store %arg10[%c0_324, %c0_325, %c0_326, %c0_327], %1010 {strides = array<i32>} : memref<2x1x10x22xf32, #tpu.memory_space<vmem>>, vector<2x1x3x22xf32>,
    %c0_328 = arith.constant 0 : index
    %c0_329 = arith.constant 0 : index
    %c7_330 = arith.constant 7 : index
    %c0_331 = arith.constant 0 : index
    %1013 = vector.load %arg10[%c0_328, %c0_329, %c7_330, %c0_331] : memref<2x1x10x22xf32, #tpu.memory_space<vmem>>, vector<2x1x3x22xf32>
    tpu.vector_store %arg10[%c0_328, %c0_329, %c7_330, %c0_331], %1010 {strides = array<i32>} : memref<2x1x10x22xf32, #tpu.memory_space<vmem>>, vector<2x1x3x22xf32>,
    %c0_332 = arith.constant 0 : index
    %c0_333 = arith.constant 0 : index
    %c3_334 = arith.constant 3 : index
    %c0_335 = arith.constant 0 : index
    %1014 = vector.load %arg10[%c0_332, %c0_333, %c3_334, %c0_335] : memref<2x1x10x22xf32, #tpu.memory_space<vmem>>, vector<2x1x4x3xf32>
    tpu.vector_store %arg10[%c0_332, %c0_333, %c3_334, %c0_335], %1011 {strides = array<i32>} : memref<2x1x10x22xf32, #tpu.memory_space<vmem>>, vector<2x1x4x3xf32>,
    %c0_336 = arith.constant 0 : index
    %c0_337 = arith.constant 0 : index
    %c3_338 = arith.constant 3 : index
    %c19_339 = arith.constant 19 : index
    %1015 = vector.load %arg10[%c0_336, %c0_337, %c3_338, %c19_339] : memref<2x1x10x22xf32, #tpu.memory_space<vmem>>, vector<2x1x4x3xf32>
    tpu.vector_store %arg10[%c0_336, %c0_337, %c3_338, %c19_339], %1011 {strides = array<i32>} : memref<2x1x10x22xf32, #tpu.memory_space<vmem>>, vector<2x1x4x3xf32>,
    %c0_340 = arith.constant 0 : index
    %c0_341 = arith.constant 0 : index
    %c3_342 = arith.constant 3 : index
    %c3_343 = arith.constant 3 : index
    %1016 = vector.load %arg10[%c0_340, %c0_341, %c3_342, %c3_343] : memref<2x1x10x22xf32, #tpu.memory_space<vmem>>, vector<1x1x4x16xf32>
    %1017 = vector.shape_cast %1016 : vector<1x1x4x16xf32> to vector<1x4x16xf32>
    %1018 = vector.shape_cast %44 : vector<1x4x16xf32> to vector<1x1x4x16xf32>
    tpu.vector_store %arg10[%c0_340, %c0_341, %c3_342, %c3_343], %1018 {strides = array<i32>} : memref<2x1x10x22xf32, #tpu.memory_space<vmem>>, vector<1x1x4x16xf32>,
    %c1_344 = arith.constant 1 : index
    %c0_345 = arith.constant 0 : index
    %c3_346 = arith.constant 3 : index
    %c3_347 = arith.constant 3 : index
    %1019 = vector.load %arg10[%c1_344, %c0_345, %c3_346, %c3_347] : memref<2x1x10x22xf32, #tpu.memory_space<vmem>>, vector<1x1x4x16xf32>
    %1020 = vector.shape_cast %1019 : vector<1x1x4x16xf32> to vector<1x4x16xf32>
    %1021 = vector.shape_cast %1009 : vector<1x4x16xf32> to vector<1x1x4x16xf32>
    tpu.vector_store %arg10[%c1_344, %c0_345, %c3_346, %c3_347], %1021 {strides = array<i32>} : memref<2x1x10x22xf32, #tpu.memory_space<vmem>>, vector<1x1x4x16xf32>,
    %c0_348 = arith.constant 0 : index
    %c0_349 = arith.constant 0 : index
    %c0_350 = arith.constant 0 : index
    %c0_351 = arith.constant 0 : index
    %1022 = vector.load %arg10[%c0_348, %c0_349, %c0_350, %c0_351] : memref<2x1x10x22xf32, #tpu.memory_space<vmem>>, vector<1x1x4x22xf32>
    %1023 = vector.shape_cast %1022 : vector<1x1x4x22xf32> to vector<1x4x22xf32>
    %c0_352 = arith.constant 0 : index
    %c0_353 = arith.constant 0 : index
    %c1_354 = arith.constant 1 : index
    %c0_355 = arith.constant 0 : index
    %1024 = vector.load %arg10[%c0_352, %c0_353, %c1_354, %c0_355] : memref<2x1x10x22xf32, #tpu.memory_space<vmem>>, vector<1x1x4x22xf32>
    %1025 = vector.shape_cast %1024 : vector<1x1x4x22xf32> to vector<1x4x22xf32>
    %c0_356 = arith.constant 0 : index
    %c0_357 = arith.constant 0 : index
    %c2_358 = arith.constant 2 : index
    %c0_359 = arith.constant 0 : index
    %1026 = vector.load %arg10[%c0_356, %c0_357, %c2_358, %c0_359] : memref<2x1x10x22xf32, #tpu.memory_space<vmem>>, vector<1x1x4x22xf32>
    %1027 = vector.shape_cast %1026 : vector<1x1x4x22xf32> to vector<1x4x22xf32>
    %c0_360 = arith.constant 0 : index
    %c0_361 = arith.constant 0 : index
    %c3_362 = arith.constant 3 : index
    %c0_363 = arith.constant 0 : index
    %1028 = vector.load %arg10[%c0_360, %c0_361, %c3_362, %c0_363] : memref<2x1x10x22xf32, #tpu.memory_space<vmem>>, vector<1x1x4x22xf32>
    %1029 = vector.shape_cast %1028 : vector<1x1x4x22xf32> to vector<1x4x22xf32>
    %c0_364 = arith.constant 0 : index
    %c0_365 = arith.constant 0 : index
    %c4_366 = arith.constant 4 : index
    %c0_367 = arith.constant 0 : index
    %1030 = vector.load %arg10[%c0_364, %c0_365, %c4_366, %c0_367] : memref<2x1x10x22xf32, #tpu.memory_space<vmem>>, vector<1x1x4x22xf32>
    %1031 = vector.shape_cast %1030 : vector<1x1x4x22xf32> to vector<1x4x22xf32>
    %c0_368 = arith.constant 0 : index
    %c0_369 = arith.constant 0 : index
    %c5_370 = arith.constant 5 : index
    %c0_371 = arith.constant 0 : index
    %1032 = vector.load %arg10[%c0_368, %c0_369, %c5_370, %c0_371] : memref<2x1x10x22xf32, #tpu.memory_space<vmem>>, vector<1x1x4x22xf32>
    %1033 = vector.shape_cast %1032 : vector<1x1x4x22xf32> to vector<1x4x22xf32>
    %c0_372 = arith.constant 0 : index
    %c0_373 = arith.constant 0 : index
    %c6_374 = arith.constant 6 : index
    %c0_375 = arith.constant 0 : index
    %1034 = vector.load %arg10[%c0_372, %c0_373, %c6_374, %c0_375] : memref<2x1x10x22xf32, #tpu.memory_space<vmem>>, vector<1x1x4x22xf32>
    %1035 = vector.shape_cast %1034 : vector<1x1x4x22xf32> to vector<1x4x22xf32>
    %c1_376 = arith.constant 1 : index
    %c0_377 = arith.constant 0 : index
    %c0_378 = arith.constant 0 : index
    %c0_379 = arith.constant 0 : index
    %1036 = vector.load %arg10[%c1_376, %c0_377, %c0_378, %c0_379] : memref<2x1x10x22xf32, #tpu.memory_space<vmem>>, vector<1x1x4x22xf32>
    %1037 = vector.shape_cast %1036 : vector<1x1x4x22xf32> to vector<1x4x22xf32>
    %c1_380 = arith.constant 1 : index
    %c0_381 = arith.constant 0 : index
    %c1_382 = arith.constant 1 : index
    %c0_383 = arith.constant 0 : index
    %1038 = vector.load %arg10[%c1_380, %c0_381, %c1_382, %c0_383] : memref<2x1x10x22xf32, #tpu.memory_space<vmem>>, vector<1x1x4x22xf32>
    %1039 = vector.shape_cast %1038 : vector<1x1x4x22xf32> to vector<1x4x22xf32>
    %c1_384 = arith.constant 1 : index
    %c0_385 = arith.constant 0 : index
    %c2_386 = arith.constant 2 : index
    %c0_387 = arith.constant 0 : index
    %1040 = vector.load %arg10[%c1_384, %c0_385, %c2_386, %c0_387] : memref<2x1x10x22xf32, #tpu.memory_space<vmem>>, vector<1x1x4x22xf32>
    %1041 = vector.shape_cast %1040 : vector<1x1x4x22xf32> to vector<1x4x22xf32>
    %c1_388 = arith.constant 1 : index
    %c0_389 = arith.constant 0 : index
    %c3_390 = arith.constant 3 : index
    %c0_391 = arith.constant 0 : index
    %1042 = vector.load %arg10[%c1_388, %c0_389, %c3_390, %c0_391] : memref<2x1x10x22xf32, #tpu.memory_space<vmem>>, vector<1x1x4x22xf32>
    %1043 = vector.shape_cast %1042 : vector<1x1x4x22xf32> to vector<1x4x22xf32>
    %c1_392 = arith.constant 1 : index
    %c0_393 = arith.constant 0 : index
    %c4_394 = arith.constant 4 : index
    %c0_395 = arith.constant 0 : index
    %1044 = vector.load %arg10[%c1_392, %c0_393, %c4_394, %c0_395] : memref<2x1x10x22xf32, #tpu.memory_space<vmem>>, vector<1x1x4x22xf32>
    %1045 = vector.shape_cast %1044 : vector<1x1x4x22xf32> to vector<1x4x22xf32>
    %c1_396 = arith.constant 1 : index
    %c0_397 = arith.constant 0 : index
    %c5_398 = arith.constant 5 : index
    %c0_399 = arith.constant 0 : index
    %1046 = vector.load %arg10[%c1_396, %c0_397, %c5_398, %c0_399] : memref<2x1x10x22xf32, #tpu.memory_space<vmem>>, vector<1x1x4x22xf32>
    %1047 = vector.shape_cast %1046 : vector<1x1x4x22xf32> to vector<1x4x22xf32>
    %c1_400 = arith.constant 1 : index
    %c0_401 = arith.constant 0 : index
    %c6_402 = arith.constant 6 : index
    %c0_403 = arith.constant 0 : index
    %1048 = vector.load %arg10[%c1_400, %c0_401, %c6_402, %c0_403] : memref<2x1x10x22xf32, #tpu.memory_space<vmem>>, vector<1x1x4x22xf32>
    %1049 = vector.shape_cast %1048 : vector<1x1x4x22xf32> to vector<1x4x22xf32>
    %c0_404 = arith.constant 0 : index
    %1050 = memref.load %arg4[%c0_404] : memref<98xf32, #tpu.memory_space<smem>>
    %1051 = vector.broadcast %1050 : f32 to vector<1x4x22xf32>
    %1052 = arith.mulf %1051, %1023 : vector<1x4x22xf32>
    %c7_405 = arith.constant 7 : index
    %1053 = memref.load %arg4[%c7_405] : memref<98xf32, #tpu.memory_space<smem>>
    %1054 = vector.broadcast %1053 : f32 to vector<1x4x22xf32>
    %1055 = arith.mulf %1054, %1025 : vector<1x4x22xf32>
    %c14_406 = arith.constant 14 : index
    %1056 = memref.load %arg4[%c14_406] : memref<98xf32, #tpu.memory_space<smem>>
    %1057 = vector.broadcast %1056 : f32 to vector<1x4x22xf32>
    %1058 = arith.mulf %1057, %1027 : vector<1x4x22xf32>
    %c21_407 = arith.constant 21 : index
    %1059 = memref.load %arg4[%c21_407] : memref<98xf32, #tpu.memory_space<smem>>
    %1060 = vector.broadcast %1059 : f32 to vector<1x4x22xf32>
    %1061 = arith.mulf %1060, %1029 : vector<1x4x22xf32>
    %c28_408 = arith.constant 28 : index
    %1062 = memref.load %arg4[%c28_408] : memref<98xf32, #tpu.memory_space<smem>>
    %1063 = vector.broadcast %1062 : f32 to vector<1x4x22xf32>
    %1064 = arith.mulf %1063, %1031 : vector<1x4x22xf32>
    %c35_409 = arith.constant 35 : index
    %1065 = memref.load %arg4[%c35_409] : memref<98xf32, #tpu.memory_space<smem>>
    %1066 = vector.broadcast %1065 : f32 to vector<1x4x22xf32>
    %1067 = arith.mulf %1066, %1033 : vector<1x4x22xf32>
    %c42_410 = arith.constant 42 : index
    %1068 = memref.load %arg4[%c42_410] : memref<98xf32, #tpu.memory_space<smem>>
    %1069 = vector.broadcast %1068 : f32 to vector<1x4x22xf32>
    %1070 = arith.mulf %1069, %1035 : vector<1x4x22xf32>
    %c49_411 = arith.constant 49 : index
    %1071 = memref.load %arg4[%c49_411] : memref<98xf32, #tpu.memory_space<smem>>
    %1072 = vector.broadcast %1071 : f32 to vector<1x4x22xf32>
    %1073 = arith.mulf %1072, %1037 : vector<1x4x22xf32>
    %c56_412 = arith.constant 56 : index
    %1074 = memref.load %arg4[%c56_412] : memref<98xf32, #tpu.memory_space<smem>>
    %1075 = vector.broadcast %1074 : f32 to vector<1x4x22xf32>
    %1076 = arith.mulf %1075, %1039 : vector<1x4x22xf32>
    %c63_413 = arith.constant 63 : index
    %1077 = memref.load %arg4[%c63_413] : memref<98xf32, #tpu.memory_space<smem>>
    %1078 = vector.broadcast %1077 : f32 to vector<1x4x22xf32>
    %1079 = arith.mulf %1078, %1041 : vector<1x4x22xf32>
    %c70_414 = arith.constant 70 : index
    %1080 = memref.load %arg4[%c70_414] : memref<98xf32, #tpu.memory_space<smem>>
    %1081 = vector.broadcast %1080 : f32 to vector<1x4x22xf32>
    %1082 = arith.mulf %1081, %1043 : vector<1x4x22xf32>
    %c77_415 = arith.constant 77 : index
    %1083 = memref.load %arg4[%c77_415] : memref<98xf32, #tpu.memory_space<smem>>
    %1084 = vector.broadcast %1083 : f32 to vector<1x4x22xf32>
    %1085 = arith.mulf %1084, %1045 : vector<1x4x22xf32>
    %c84_416 = arith.constant 84 : index
    %1086 = memref.load %arg4[%c84_416] : memref<98xf32, #tpu.memory_space<smem>>
    %1087 = vector.broadcast %1086 : f32 to vector<1x4x22xf32>
    %1088 = arith.mulf %1087, %1047 : vector<1x4x22xf32>
    %c91_417 = arith.constant 91 : index
    %1089 = memref.load %arg4[%c91_417] : memref<98xf32, #tpu.memory_space<smem>>
    %1090 = vector.broadcast %1089 : f32 to vector<1x4x22xf32>
    %1091 = arith.mulf %1090, %1049 : vector<1x4x22xf32>
    %1092 = arith.addf %1052, %1055 : vector<1x4x22xf32>
    %1093 = arith.addf %1058, %1061 : vector<1x4x22xf32>
    %1094 = arith.addf %1064, %1067 : vector<1x4x22xf32>
    %1095 = arith.addf %1070, %1073 : vector<1x4x22xf32>
    %1096 = arith.addf %1076, %1079 : vector<1x4x22xf32>
    %1097 = arith.addf %1082, %1085 : vector<1x4x22xf32>
    %1098 = arith.addf %1088, %1091 : vector<1x4x22xf32>
    %1099 = arith.addf %1092, %1093 : vector<1x4x22xf32>
    %1100 = arith.addf %1094, %1095 : vector<1x4x22xf32>
    %1101 = arith.addf %1096, %1097 : vector<1x4x22xf32>
    %1102 = arith.addf %1099, %1100 : vector<1x4x22xf32>
    %1103 = arith.addf %1101, %1098 : vector<1x4x22xf32>
    %1104 = arith.addf %1102, %1103 : vector<1x4x22xf32>
    %1105 = vector.extract_strided_slice %1104 {offsets = [0, 0, 0], sizes = [1, 4, 16], strides = [1, 1, 1]} : vector<1x4x22xf32> to vector<1x4x16xf32>
    %c1_418 = arith.constant 1 : index
    %1106 = memref.load %arg4[%c1_418] : memref<98xf32, #tpu.memory_space<smem>>
    %1107 = vector.broadcast %1106 : f32 to vector<1x4x22xf32>
    %1108 = arith.mulf %1107, %1023 : vector<1x4x22xf32>
    %c8_419 = arith.constant 8 : index
    %1109 = memref.load %arg4[%c8_419] : memref<98xf32, #tpu.memory_space<smem>>
    %1110 = vector.broadcast %1109 : f32 to vector<1x4x22xf32>
    %1111 = arith.mulf %1110, %1025 : vector<1x4x22xf32>
    %c15_420 = arith.constant 15 : index
    %1112 = memref.load %arg4[%c15_420] : memref<98xf32, #tpu.memory_space<smem>>
    %1113 = vector.broadcast %1112 : f32 to vector<1x4x22xf32>
    %1114 = arith.mulf %1113, %1027 : vector<1x4x22xf32>
    %c22_421 = arith.constant 22 : index
    %1115 = memref.load %arg4[%c22_421] : memref<98xf32, #tpu.memory_space<smem>>
    %1116 = vector.broadcast %1115 : f32 to vector<1x4x22xf32>
    %1117 = arith.mulf %1116, %1029 : vector<1x4x22xf32>
    %c29_422 = arith.constant 29 : index
    %1118 = memref.load %arg4[%c29_422] : memref<98xf32, #tpu.memory_space<smem>>
    %1119 = vector.broadcast %1118 : f32 to vector<1x4x22xf32>
    %1120 = arith.mulf %1119, %1031 : vector<1x4x22xf32>
    %c36_423 = arith.constant 36 : index
    %1121 = memref.load %arg4[%c36_423] : memref<98xf32, #tpu.memory_space<smem>>
    %1122 = vector.broadcast %1121 : f32 to vector<1x4x22xf32>
    %1123 = arith.mulf %1122, %1033 : vector<1x4x22xf32>
    %c43_424 = arith.constant 43 : index
    %1124 = memref.load %arg4[%c43_424] : memref<98xf32, #tpu.memory_space<smem>>
    %1125 = vector.broadcast %1124 : f32 to vector<1x4x22xf32>
    %1126 = arith.mulf %1125, %1035 : vector<1x4x22xf32>
    %c50_425 = arith.constant 50 : index
    %1127 = memref.load %arg4[%c50_425] : memref<98xf32, #tpu.memory_space<smem>>
    %1128 = vector.broadcast %1127 : f32 to vector<1x4x22xf32>
    %1129 = arith.mulf %1128, %1037 : vector<1x4x22xf32>
    %c57_426 = arith.constant 57 : index
    %1130 = memref.load %arg4[%c57_426] : memref<98xf32, #tpu.memory_space<smem>>
    %1131 = vector.broadcast %1130 : f32 to vector<1x4x22xf32>
    %1132 = arith.mulf %1131, %1039 : vector<1x4x22xf32>
    %c64_427 = arith.constant 64 : index
    %1133 = memref.load %arg4[%c64_427] : memref<98xf32, #tpu.memory_space<smem>>
    %1134 = vector.broadcast %1133 : f32 to vector<1x4x22xf32>
    %1135 = arith.mulf %1134, %1041 : vector<1x4x22xf32>
    %c71_428 = arith.constant 71 : index
    %1136 = memref.load %arg4[%c71_428] : memref<98xf32, #tpu.memory_space<smem>>
    %1137 = vector.broadcast %1136 : f32 to vector<1x4x22xf32>
    %1138 = arith.mulf %1137, %1043 : vector<1x4x22xf32>
    %c78_429 = arith.constant 78 : index
    %1139 = memref.load %arg4[%c78_429] : memref<98xf32, #tpu.memory_space<smem>>
    %1140 = vector.broadcast %1139 : f32 to vector<1x4x22xf32>
    %1141 = arith.mulf %1140, %1045 : vector<1x4x22xf32>
    %c85_430 = arith.constant 85 : index
    %1142 = memref.load %arg4[%c85_430] : memref<98xf32, #tpu.memory_space<smem>>
    %1143 = vector.broadcast %1142 : f32 to vector<1x4x22xf32>
    %1144 = arith.mulf %1143, %1047 : vector<1x4x22xf32>
    %c92_431 = arith.constant 92 : index
    %1145 = memref.load %arg4[%c92_431] : memref<98xf32, #tpu.memory_space<smem>>
    %1146 = vector.broadcast %1145 : f32 to vector<1x4x22xf32>
    %1147 = arith.mulf %1146, %1049 : vector<1x4x22xf32>
    %1148 = arith.addf %1108, %1111 : vector<1x4x22xf32>
    %1149 = arith.addf %1114, %1117 : vector<1x4x22xf32>
    %1150 = arith.addf %1120, %1123 : vector<1x4x22xf32>
    %1151 = arith.addf %1126, %1129 : vector<1x4x22xf32>
    %1152 = arith.addf %1132, %1135 : vector<1x4x22xf32>
    %1153 = arith.addf %1138, %1141 : vector<1x4x22xf32>
    %1154 = arith.addf %1144, %1147 : vector<1x4x22xf32>
    %1155 = arith.addf %1148, %1149 : vector<1x4x22xf32>
    %1156 = arith.addf %1150, %1151 : vector<1x4x22xf32>
    %1157 = arith.addf %1152, %1153 : vector<1x4x22xf32>
    %1158 = arith.addf %1155, %1156 : vector<1x4x22xf32>
    %1159 = arith.addf %1157, %1154 : vector<1x4x22xf32>
    %1160 = arith.addf %1158, %1159 : vector<1x4x22xf32>
    %1161 = vector.extract_strided_slice %1160 {offsets = [0, 0, 1], sizes = [1, 4, 16], strides = [1, 1, 1]} : vector<1x4x22xf32> to vector<1x4x16xf32>
    %c2_432 = arith.constant 2 : index
    %1162 = memref.load %arg4[%c2_432] : memref<98xf32, #tpu.memory_space<smem>>
    %1163 = vector.broadcast %1162 : f32 to vector<1x4x22xf32>
    %1164 = arith.mulf %1163, %1023 : vector<1x4x22xf32>
    %c9_433 = arith.constant 9 : index
    %1165 = memref.load %arg4[%c9_433] : memref<98xf32, #tpu.memory_space<smem>>
    %1166 = vector.broadcast %1165 : f32 to vector<1x4x22xf32>
    %1167 = arith.mulf %1166, %1025 : vector<1x4x22xf32>
    %c16_434 = arith.constant 16 : index
    %1168 = memref.load %arg4[%c16_434] : memref<98xf32, #tpu.memory_space<smem>>
    %1169 = vector.broadcast %1168 : f32 to vector<1x4x22xf32>
    %1170 = arith.mulf %1169, %1027 : vector<1x4x22xf32>
    %c23_435 = arith.constant 23 : index
    %1171 = memref.load %arg4[%c23_435] : memref<98xf32, #tpu.memory_space<smem>>
    %1172 = vector.broadcast %1171 : f32 to vector<1x4x22xf32>
    %1173 = arith.mulf %1172, %1029 : vector<1x4x22xf32>
    %c30_436 = arith.constant 30 : index
    %1174 = memref.load %arg4[%c30_436] : memref<98xf32, #tpu.memory_space<smem>>
    %1175 = vector.broadcast %1174 : f32 to vector<1x4x22xf32>
    %1176 = arith.mulf %1175, %1031 : vector<1x4x22xf32>
    %c37_437 = arith.constant 37 : index
    %1177 = memref.load %arg4[%c37_437] : memref<98xf32, #tpu.memory_space<smem>>
    %1178 = vector.broadcast %1177 : f32 to vector<1x4x22xf32>
    %1179 = arith.mulf %1178, %1033 : vector<1x4x22xf32>
    %c44_438 = arith.constant 44 : index
    %1180 = memref.load %arg4[%c44_438] : memref<98xf32, #tpu.memory_space<smem>>
    %1181 = vector.broadcast %1180 : f32 to vector<1x4x22xf32>
    %1182 = arith.mulf %1181, %1035 : vector<1x4x22xf32>
    %c51_439 = arith.constant 51 : index
    %1183 = memref.load %arg4[%c51_439] : memref<98xf32, #tpu.memory_space<smem>>
    %1184 = vector.broadcast %1183 : f32 to vector<1x4x22xf32>
    %1185 = arith.mulf %1184, %1037 : vector<1x4x22xf32>
    %c58_440 = arith.constant 58 : index
    %1186 = memref.load %arg4[%c58_440] : memref<98xf32, #tpu.memory_space<smem>>
    %1187 = vector.broadcast %1186 : f32 to vector<1x4x22xf32>
    %1188 = arith.mulf %1187, %1039 : vector<1x4x22xf32>
    %c65_441 = arith.constant 65 : index
    %1189 = memref.load %arg4[%c65_441] : memref<98xf32, #tpu.memory_space<smem>>
    %1190 = vector.broadcast %1189 : f32 to vector<1x4x22xf32>
    %1191 = arith.mulf %1190, %1041 : vector<1x4x22xf32>
    %c72_442 = arith.constant 72 : index
    %1192 = memref.load %arg4[%c72_442] : memref<98xf32, #tpu.memory_space<smem>>
    %1193 = vector.broadcast %1192 : f32 to vector<1x4x22xf32>
    %1194 = arith.mulf %1193, %1043 : vector<1x4x22xf32>
    %c79_443 = arith.constant 79 : index
    %1195 = memref.load %arg4[%c79_443] : memref<98xf32, #tpu.memory_space<smem>>
    %1196 = vector.broadcast %1195 : f32 to vector<1x4x22xf32>
    %1197 = arith.mulf %1196, %1045 : vector<1x4x22xf32>
    %c86_444 = arith.constant 86 : index
    %1198 = memref.load %arg4[%c86_444] : memref<98xf32, #tpu.memory_space<smem>>
    %1199 = vector.broadcast %1198 : f32 to vector<1x4x22xf32>
    %1200 = arith.mulf %1199, %1047 : vector<1x4x22xf32>
    %c93_445 = arith.constant 93 : index
    %1201 = memref.load %arg4[%c93_445] : memref<98xf32, #tpu.memory_space<smem>>
    %1202 = vector.broadcast %1201 : f32 to vector<1x4x22xf32>
    %1203 = arith.mulf %1202, %1049 : vector<1x4x22xf32>
    %1204 = arith.addf %1164, %1167 : vector<1x4x22xf32>
    %1205 = arith.addf %1170, %1173 : vector<1x4x22xf32>
    %1206 = arith.addf %1176, %1179 : vector<1x4x22xf32>
    %1207 = arith.addf %1182, %1185 : vector<1x4x22xf32>
    %1208 = arith.addf %1188, %1191 : vector<1x4x22xf32>
    %1209 = arith.addf %1194, %1197 : vector<1x4x22xf32>
    %1210 = arith.addf %1200, %1203 : vector<1x4x22xf32>
    %1211 = arith.addf %1204, %1205 : vector<1x4x22xf32>
    %1212 = arith.addf %1206, %1207 : vector<1x4x22xf32>
    %1213 = arith.addf %1208, %1209 : vector<1x4x22xf32>
    %1214 = arith.addf %1211, %1212 : vector<1x4x22xf32>
    %1215 = arith.addf %1213, %1210 : vector<1x4x22xf32>
    %1216 = arith.addf %1214, %1215 : vector<1x4x22xf32>
    %1217 = vector.extract_strided_slice %1216 {offsets = [0, 0, 2], sizes = [1, 4, 16], strides = [1, 1, 1]} : vector<1x4x22xf32> to vector<1x4x16xf32>
    %c3_446 = arith.constant 3 : index
    %1218 = memref.load %arg4[%c3_446] : memref<98xf32, #tpu.memory_space<smem>>
    %1219 = vector.broadcast %1218 : f32 to vector<1x4x22xf32>
    %1220 = arith.mulf %1219, %1023 : vector<1x4x22xf32>
    %c10_447 = arith.constant 10 : index
    %1221 = memref.load %arg4[%c10_447] : memref<98xf32, #tpu.memory_space<smem>>
    %1222 = vector.broadcast %1221 : f32 to vector<1x4x22xf32>
    %1223 = arith.mulf %1222, %1025 : vector<1x4x22xf32>
    %c17_448 = arith.constant 17 : index
    %1224 = memref.load %arg4[%c17_448] : memref<98xf32, #tpu.memory_space<smem>>
    %1225 = vector.broadcast %1224 : f32 to vector<1x4x22xf32>
    %1226 = arith.mulf %1225, %1027 : vector<1x4x22xf32>
    %c24_449 = arith.constant 24 : index
    %1227 = memref.load %arg4[%c24_449] : memref<98xf32, #tpu.memory_space<smem>>
    %1228 = vector.broadcast %1227 : f32 to vector<1x4x22xf32>
    %1229 = arith.mulf %1228, %1029 : vector<1x4x22xf32>
    %c31_450 = arith.constant 31 : index
    %1230 = memref.load %arg4[%c31_450] : memref<98xf32, #tpu.memory_space<smem>>
    %1231 = vector.broadcast %1230 : f32 to vector<1x4x22xf32>
    %1232 = arith.mulf %1231, %1031 : vector<1x4x22xf32>
    %c38_451 = arith.constant 38 : index
    %1233 = memref.load %arg4[%c38_451] : memref<98xf32, #tpu.memory_space<smem>>
    %1234 = vector.broadcast %1233 : f32 to vector<1x4x22xf32>
    %1235 = arith.mulf %1234, %1033 : vector<1x4x22xf32>
    %c45_452 = arith.constant 45 : index
    %1236 = memref.load %arg4[%c45_452] : memref<98xf32, #tpu.memory_space<smem>>
    %1237 = vector.broadcast %1236 : f32 to vector<1x4x22xf32>
    %1238 = arith.mulf %1237, %1035 : vector<1x4x22xf32>
    %c52_453 = arith.constant 52 : index
    %1239 = memref.load %arg4[%c52_453] : memref<98xf32, #tpu.memory_space<smem>>
    %1240 = vector.broadcast %1239 : f32 to vector<1x4x22xf32>
    %1241 = arith.mulf %1240, %1037 : vector<1x4x22xf32>
    %c59_454 = arith.constant 59 : index
    %1242 = memref.load %arg4[%c59_454] : memref<98xf32, #tpu.memory_space<smem>>
    %1243 = vector.broadcast %1242 : f32 to vector<1x4x22xf32>
    %1244 = arith.mulf %1243, %1039 : vector<1x4x22xf32>
    %c66_455 = arith.constant 66 : index
    %1245 = memref.load %arg4[%c66_455] : memref<98xf32, #tpu.memory_space<smem>>
    %1246 = vector.broadcast %1245 : f32 to vector<1x4x22xf32>
    %1247 = arith.mulf %1246, %1041 : vector<1x4x22xf32>
    %c73_456 = arith.constant 73 : index
    %1248 = memref.load %arg4[%c73_456] : memref<98xf32, #tpu.memory_space<smem>>
    %1249 = vector.broadcast %1248 : f32 to vector<1x4x22xf32>
    %1250 = arith.mulf %1249, %1043 : vector<1x4x22xf32>
    %c80_457 = arith.constant 80 : index
    %1251 = memref.load %arg4[%c80_457] : memref<98xf32, #tpu.memory_space<smem>>
    %1252 = vector.broadcast %1251 : f32 to vector<1x4x22xf32>
    %1253 = arith.mulf %1252, %1045 : vector<1x4x22xf32>
    %c87_458 = arith.constant 87 : index
    %1254 = memref.load %arg4[%c87_458] : memref<98xf32, #tpu.memory_space<smem>>
    %1255 = vector.broadcast %1254 : f32 to vector<1x4x22xf32>
    %1256 = arith.mulf %1255, %1047 : vector<1x4x22xf32>
    %c94_459 = arith.constant 94 : index
    %1257 = memref.load %arg4[%c94_459] : memref<98xf32, #tpu.memory_space<smem>>
    %1258 = vector.broadcast %1257 : f32 to vector<1x4x22xf32>
    %1259 = arith.mulf %1258, %1049 : vector<1x4x22xf32>
    %1260 = arith.addf %1220, %1223 : vector<1x4x22xf32>
    %1261 = arith.addf %1226, %1229 : vector<1x4x22xf32>
    %1262 = arith.addf %1232, %1235 : vector<1x4x22xf32>
    %1263 = arith.addf %1238, %1241 : vector<1x4x22xf32>
    %1264 = arith.addf %1244, %1247 : vector<1x4x22xf32>
    %1265 = arith.addf %1250, %1253 : vector<1x4x22xf32>
    %1266 = arith.addf %1256, %1259 : vector<1x4x22xf32>
    %1267 = arith.addf %1260, %1261 : vector<1x4x22xf32>
    %1268 = arith.addf %1262, %1263 : vector<1x4x22xf32>
    %1269 = arith.addf %1264, %1265 : vector<1x4x22xf32>
    %1270 = arith.addf %1267, %1268 : vector<1x4x22xf32>
    %1271 = arith.addf %1269, %1266 : vector<1x4x22xf32>
    %1272 = arith.addf %1270, %1271 : vector<1x4x22xf32>
    %1273 = vector.extract_strided_slice %1272 {offsets = [0, 0, 3], sizes = [1, 4, 16], strides = [1, 1, 1]} : vector<1x4x22xf32> to vector<1x4x16xf32>
    %c4_460 = arith.constant 4 : index
    %1274 = memref.load %arg4[%c4_460] : memref<98xf32, #tpu.memory_space<smem>>
    %1275 = vector.broadcast %1274 : f32 to vector<1x4x22xf32>
    %1276 = arith.mulf %1275, %1023 : vector<1x4x22xf32>
    %c11_461 = arith.constant 11 : index
    %1277 = memref.load %arg4[%c11_461] : memref<98xf32, #tpu.memory_space<smem>>
    %1278 = vector.broadcast %1277 : f32 to vector<1x4x22xf32>
    %1279 = arith.mulf %1278, %1025 : vector<1x4x22xf32>
    %c18_462 = arith.constant 18 : index
    %1280 = memref.load %arg4[%c18_462] : memref<98xf32, #tpu.memory_space<smem>>
    %1281 = vector.broadcast %1280 : f32 to vector<1x4x22xf32>
    %1282 = arith.mulf %1281, %1027 : vector<1x4x22xf32>
    %c25_463 = arith.constant 25 : index
    %1283 = memref.load %arg4[%c25_463] : memref<98xf32, #tpu.memory_space<smem>>
    %1284 = vector.broadcast %1283 : f32 to vector<1x4x22xf32>
    %1285 = arith.mulf %1284, %1029 : vector<1x4x22xf32>
    %c32_464 = arith.constant 32 : index
    %1286 = memref.load %arg4[%c32_464] : memref<98xf32, #tpu.memory_space<smem>>
    %1287 = vector.broadcast %1286 : f32 to vector<1x4x22xf32>
    %1288 = arith.mulf %1287, %1031 : vector<1x4x22xf32>
    %c39_465 = arith.constant 39 : index
    %1289 = memref.load %arg4[%c39_465] : memref<98xf32, #tpu.memory_space<smem>>
    %1290 = vector.broadcast %1289 : f32 to vector<1x4x22xf32>
    %1291 = arith.mulf %1290, %1033 : vector<1x4x22xf32>
    %c46_466 = arith.constant 46 : index
    %1292 = memref.load %arg4[%c46_466] : memref<98xf32, #tpu.memory_space<smem>>
    %1293 = vector.broadcast %1292 : f32 to vector<1x4x22xf32>
    %1294 = arith.mulf %1293, %1035 : vector<1x4x22xf32>
    %c53_467 = arith.constant 53 : index
    %1295 = memref.load %arg4[%c53_467] : memref<98xf32, #tpu.memory_space<smem>>
    %1296 = vector.broadcast %1295 : f32 to vector<1x4x22xf32>
    %1297 = arith.mulf %1296, %1037 : vector<1x4x22xf32>
    %c60_468 = arith.constant 60 : index
    %1298 = memref.load %arg4[%c60_468] : memref<98xf32, #tpu.memory_space<smem>>
    %1299 = vector.broadcast %1298 : f32 to vector<1x4x22xf32>
    %1300 = arith.mulf %1299, %1039 : vector<1x4x22xf32>
    %c67_469 = arith.constant 67 : index
    %1301 = memref.load %arg4[%c67_469] : memref<98xf32, #tpu.memory_space<smem>>
    %1302 = vector.broadcast %1301 : f32 to vector<1x4x22xf32>
    %1303 = arith.mulf %1302, %1041 : vector<1x4x22xf32>
    %c74_470 = arith.constant 74 : index
    %1304 = memref.load %arg4[%c74_470] : memref<98xf32, #tpu.memory_space<smem>>
    %1305 = vector.broadcast %1304 : f32 to vector<1x4x22xf32>
    %1306 = arith.mulf %1305, %1043 : vector<1x4x22xf32>
    %c81_471 = arith.constant 81 : index
    %1307 = memref.load %arg4[%c81_471] : memref<98xf32, #tpu.memory_space<smem>>
    %1308 = vector.broadcast %1307 : f32 to vector<1x4x22xf32>
    %1309 = arith.mulf %1308, %1045 : vector<1x4x22xf32>
    %c88_472 = arith.constant 88 : index
    %1310 = memref.load %arg4[%c88_472] : memref<98xf32, #tpu.memory_space<smem>>
    %1311 = vector.broadcast %1310 : f32 to vector<1x4x22xf32>
    %1312 = arith.mulf %1311, %1047 : vector<1x4x22xf32>
    %c95_473 = arith.constant 95 : index
    %1313 = memref.load %arg4[%c95_473] : memref<98xf32, #tpu.memory_space<smem>>
    %1314 = vector.broadcast %1313 : f32 to vector<1x4x22xf32>
    %1315 = arith.mulf %1314, %1049 : vector<1x4x22xf32>
    %1316 = arith.addf %1276, %1279 : vector<1x4x22xf32>
    %1317 = arith.addf %1282, %1285 : vector<1x4x22xf32>
    %1318 = arith.addf %1288, %1291 : vector<1x4x22xf32>
    %1319 = arith.addf %1294, %1297 : vector<1x4x22xf32>
    %1320 = arith.addf %1300, %1303 : vector<1x4x22xf32>
    %1321 = arith.addf %1306, %1309 : vector<1x4x22xf32>
    %1322 = arith.addf %1312, %1315 : vector<1x4x22xf32>
    %1323 = arith.addf %1316, %1317 : vector<1x4x22xf32>
    %1324 = arith.addf %1318, %1319 : vector<1x4x22xf32>
    %1325 = arith.addf %1320, %1321 : vector<1x4x22xf32>
    %1326 = arith.addf %1323, %1324 : vector<1x4x22xf32>
    %1327 = arith.addf %1325, %1322 : vector<1x4x22xf32>
    %1328 = arith.addf %1326, %1327 : vector<1x4x22xf32>
    %1329 = vector.extract_strided_slice %1328 {offsets = [0, 0, 4], sizes = [1, 4, 16], strides = [1, 1, 1]} : vector<1x4x22xf32> to vector<1x4x16xf32>
    %c5_474 = arith.constant 5 : index
    %1330 = memref.load %arg4[%c5_474] : memref<98xf32, #tpu.memory_space<smem>>
    %1331 = vector.broadcast %1330 : f32 to vector<1x4x22xf32>
    %1332 = arith.mulf %1331, %1023 : vector<1x4x22xf32>
    %c12_475 = arith.constant 12 : index
    %1333 = memref.load %arg4[%c12_475] : memref<98xf32, #tpu.memory_space<smem>>
    %1334 = vector.broadcast %1333 : f32 to vector<1x4x22xf32>
    %1335 = arith.mulf %1334, %1025 : vector<1x4x22xf32>
    %c19_476 = arith.constant 19 : index
    %1336 = memref.load %arg4[%c19_476] : memref<98xf32, #tpu.memory_space<smem>>
    %1337 = vector.broadcast %1336 : f32 to vector<1x4x22xf32>
    %1338 = arith.mulf %1337, %1027 : vector<1x4x22xf32>
    %c26_477 = arith.constant 26 : index
    %1339 = memref.load %arg4[%c26_477] : memref<98xf32, #tpu.memory_space<smem>>
    %1340 = vector.broadcast %1339 : f32 to vector<1x4x22xf32>
    %1341 = arith.mulf %1340, %1029 : vector<1x4x22xf32>
    %c33_478 = arith.constant 33 : index
    %1342 = memref.load %arg4[%c33_478] : memref<98xf32, #tpu.memory_space<smem>>
    %1343 = vector.broadcast %1342 : f32 to vector<1x4x22xf32>
    %1344 = arith.mulf %1343, %1031 : vector<1x4x22xf32>
    %c40_479 = arith.constant 40 : index
    %1345 = memref.load %arg4[%c40_479] : memref<98xf32, #tpu.memory_space<smem>>
    %1346 = vector.broadcast %1345 : f32 to vector<1x4x22xf32>
    %1347 = arith.mulf %1346, %1033 : vector<1x4x22xf32>
    %c47_480 = arith.constant 47 : index
    %1348 = memref.load %arg4[%c47_480] : memref<98xf32, #tpu.memory_space<smem>>
    %1349 = vector.broadcast %1348 : f32 to vector<1x4x22xf32>
    %1350 = arith.mulf %1349, %1035 : vector<1x4x22xf32>
    %c54_481 = arith.constant 54 : index
    %1351 = memref.load %arg4[%c54_481] : memref<98xf32, #tpu.memory_space<smem>>
    %1352 = vector.broadcast %1351 : f32 to vector<1x4x22xf32>
    %1353 = arith.mulf %1352, %1037 : vector<1x4x22xf32>
    %c61_482 = arith.constant 61 : index
    %1354 = memref.load %arg4[%c61_482] : memref<98xf32, #tpu.memory_space<smem>>
    %1355 = vector.broadcast %1354 : f32 to vector<1x4x22xf32>
    %1356 = arith.mulf %1355, %1039 : vector<1x4x22xf32>
    %c68_483 = arith.constant 68 : index
    %1357 = memref.load %arg4[%c68_483] : memref<98xf32, #tpu.memory_space<smem>>
    %1358 = vector.broadcast %1357 : f32 to vector<1x4x22xf32>
    %1359 = arith.mulf %1358, %1041 : vector<1x4x22xf32>
    %c75_484 = arith.constant 75 : index
    %1360 = memref.load %arg4[%c75_484] : memref<98xf32, #tpu.memory_space<smem>>
    %1361 = vector.broadcast %1360 : f32 to vector<1x4x22xf32>
    %1362 = arith.mulf %1361, %1043 : vector<1x4x22xf32>
    %c82_485 = arith.constant 82 : index
    %1363 = memref.load %arg4[%c82_485] : memref<98xf32, #tpu.memory_space<smem>>
    %1364 = vector.broadcast %1363 : f32 to vector<1x4x22xf32>
    %1365 = arith.mulf %1364, %1045 : vector<1x4x22xf32>
    %c89_486 = arith.constant 89 : index
    %1366 = memref.load %arg4[%c89_486] : memref<98xf32, #tpu.memory_space<smem>>
    %1367 = vector.broadcast %1366 : f32 to vector<1x4x22xf32>
    %1368 = arith.mulf %1367, %1047 : vector<1x4x22xf32>
    %c96_487 = arith.constant 96 : index
    %1369 = memref.load %arg4[%c96_487] : memref<98xf32, #tpu.memory_space<smem>>
    %1370 = vector.broadcast %1369 : f32 to vector<1x4x22xf32>
    %1371 = arith.mulf %1370, %1049 : vector<1x4x22xf32>
    %1372 = arith.addf %1332, %1335 : vector<1x4x22xf32>
    %1373 = arith.addf %1338, %1341 : vector<1x4x22xf32>
    %1374 = arith.addf %1344, %1347 : vector<1x4x22xf32>
    %1375 = arith.addf %1350, %1353 : vector<1x4x22xf32>
    %1376 = arith.addf %1356, %1359 : vector<1x4x22xf32>
    %1377 = arith.addf %1362, %1365 : vector<1x4x22xf32>
    %1378 = arith.addf %1368, %1371 : vector<1x4x22xf32>
    %1379 = arith.addf %1372, %1373 : vector<1x4x22xf32>
    %1380 = arith.addf %1374, %1375 : vector<1x4x22xf32>
    %1381 = arith.addf %1376, %1377 : vector<1x4x22xf32>
    %1382 = arith.addf %1379, %1380 : vector<1x4x22xf32>
    %1383 = arith.addf %1381, %1378 : vector<1x4x22xf32>
    %1384 = arith.addf %1382, %1383 : vector<1x4x22xf32>
    %1385 = vector.extract_strided_slice %1384 {offsets = [0, 0, 5], sizes = [1, 4, 16], strides = [1, 1, 1]} : vector<1x4x22xf32> to vector<1x4x16xf32>
    %c6_488 = arith.constant 6 : index
    %1386 = memref.load %arg4[%c6_488] : memref<98xf32, #tpu.memory_space<smem>>
    %1387 = vector.broadcast %1386 : f32 to vector<1x4x22xf32>
    %1388 = arith.mulf %1387, %1023 : vector<1x4x22xf32>
    %c13_489 = arith.constant 13 : index
    %1389 = memref.load %arg4[%c13_489] : memref<98xf32, #tpu.memory_space<smem>>
    %1390 = vector.broadcast %1389 : f32 to vector<1x4x22xf32>
    %1391 = arith.mulf %1390, %1025 : vector<1x4x22xf32>
    %c20_490 = arith.constant 20 : index
    %1392 = memref.load %arg4[%c20_490] : memref<98xf32, #tpu.memory_space<smem>>
    %1393 = vector.broadcast %1392 : f32 to vector<1x4x22xf32>
    %1394 = arith.mulf %1393, %1027 : vector<1x4x22xf32>
    %c27_491 = arith.constant 27 : index
    %1395 = memref.load %arg4[%c27_491] : memref<98xf32, #tpu.memory_space<smem>>
    %1396 = vector.broadcast %1395 : f32 to vector<1x4x22xf32>
    %1397 = arith.mulf %1396, %1029 : vector<1x4x22xf32>
    %c34_492 = arith.constant 34 : index
    %1398 = memref.load %arg4[%c34_492] : memref<98xf32, #tpu.memory_space<smem>>
    %1399 = vector.broadcast %1398 : f32 to vector<1x4x22xf32>
    %1400 = arith.mulf %1399, %1031 : vector<1x4x22xf32>
    %c41_493 = arith.constant 41 : index
    %1401 = memref.load %arg4[%c41_493] : memref<98xf32, #tpu.memory_space<smem>>
    %1402 = vector.broadcast %1401 : f32 to vector<1x4x22xf32>
    %1403 = arith.mulf %1402, %1033 : vector<1x4x22xf32>
    %c48_494 = arith.constant 48 : index
    %1404 = memref.load %arg4[%c48_494] : memref<98xf32, #tpu.memory_space<smem>>
    %1405 = vector.broadcast %1404 : f32 to vector<1x4x22xf32>
    %1406 = arith.mulf %1405, %1035 : vector<1x4x22xf32>
    %c55_495 = arith.constant 55 : index
    %1407 = memref.load %arg4[%c55_495] : memref<98xf32, #tpu.memory_space<smem>>
    %1408 = vector.broadcast %1407 : f32 to vector<1x4x22xf32>
    %1409 = arith.mulf %1408, %1037 : vector<1x4x22xf32>
    %c62_496 = arith.constant 62 : index
    %1410 = memref.load %arg4[%c62_496] : memref<98xf32, #tpu.memory_space<smem>>
    %1411 = vector.broadcast %1410 : f32 to vector<1x4x22xf32>
    %1412 = arith.mulf %1411, %1039 : vector<1x4x22xf32>
    %c69_497 = arith.constant 69 : index
    %1413 = memref.load %arg4[%c69_497] : memref<98xf32, #tpu.memory_space<smem>>
    %1414 = vector.broadcast %1413 : f32 to vector<1x4x22xf32>
    %1415 = arith.mulf %1414, %1041 : vector<1x4x22xf32>
    %c76_498 = arith.constant 76 : index
    %1416 = memref.load %arg4[%c76_498] : memref<98xf32, #tpu.memory_space<smem>>
    %1417 = vector.broadcast %1416 : f32 to vector<1x4x22xf32>
    %1418 = arith.mulf %1417, %1043 : vector<1x4x22xf32>
    %c83_499 = arith.constant 83 : index
    %1419 = memref.load %arg4[%c83_499] : memref<98xf32, #tpu.memory_space<smem>>
    %1420 = vector.broadcast %1419 : f32 to vector<1x4x22xf32>
    %1421 = arith.mulf %1420, %1045 : vector<1x4x22xf32>
    %c90_500 = arith.constant 90 : index
    %1422 = memref.load %arg4[%c90_500] : memref<98xf32, #tpu.memory_space<smem>>
    %1423 = vector.broadcast %1422 : f32 to vector<1x4x22xf32>
    %1424 = arith.mulf %1423, %1047 : vector<1x4x22xf32>
    %c97_501 = arith.constant 97 : index
    %1425 = memref.load %arg4[%c97_501] : memref<98xf32, #tpu.memory_space<smem>>
    %1426 = vector.broadcast %1425 : f32 to vector<1x4x22xf32>
    %1427 = arith.mulf %1426, %1049 : vector<1x4x22xf32>
    %1428 = arith.addf %1388, %1391 : vector<1x4x22xf32>
    %1429 = arith.addf %1394, %1397 : vector<1x4x22xf32>
    %1430 = arith.addf %1400, %1403 : vector<1x4x22xf32>
    %1431 = arith.addf %1406, %1409 : vector<1x4x22xf32>
    %1432 = arith.addf %1412, %1415 : vector<1x4x22xf32>
    %1433 = arith.addf %1418, %1421 : vector<1x4x22xf32>
    %1434 = arith.addf %1424, %1427 : vector<1x4x22xf32>
    %1435 = arith.addf %1428, %1429 : vector<1x4x22xf32>
    %1436 = arith.addf %1430, %1431 : vector<1x4x22xf32>
    %1437 = arith.addf %1432, %1433 : vector<1x4x22xf32>
    %1438 = arith.addf %1435, %1436 : vector<1x4x22xf32>
    %1439 = arith.addf %1437, %1434 : vector<1x4x22xf32>
    %1440 = arith.addf %1438, %1439 : vector<1x4x22xf32>
    %1441 = vector.extract_strided_slice %1440 {offsets = [0, 0, 6], sizes = [1, 4, 16], strides = [1, 1, 1]} : vector<1x4x22xf32> to vector<1x4x16xf32>
    %1442 = arith.addf %1105, %1161 : vector<1x4x16xf32>
    %1443 = arith.addf %1217, %1273 : vector<1x4x16xf32>
    %1444 = arith.addf %1329, %1385 : vector<1x4x16xf32>
    %1445 = arith.addf %1442, %1443 : vector<1x4x16xf32>
    %1446 = arith.addf %1444, %1441 : vector<1x4x16xf32>
    %1447 = arith.addf %1445, %1446 : vector<1x4x16xf32>
    %c0_502 = arith.constant 0 : index
    %1448 = memref.load %arg5[%c0_502] : memref<1xf32, #tpu.memory_space<smem>>
    %1449 = vector.broadcast %1448 : f32 to vector<1x4x16xf32>
    %1450 = arith.addf %1447, %1449 : vector<1x4x16xf32>
    %cst_503 = arith.constant dense<0.000000e+00> : vector<1x4xf32>
    %1451 = vector.multi_reduction <add>, %1450, %cst_503 [2] : vector<1x4x16xf32> to vector<1x4xf32>
    %1452 = vector.shape_cast %1451 : vector<1x4xf32> to vector<1x4x1xf32>
    %cst_504 = arith.constant dense<0.000000e+00> : vector<1x1xf32>
    %1453 = vector.multi_reduction <add>, %1452, %cst_504 [1] : vector<1x4x1xf32> to vector<1x1xf32>
    %1454 = vector.shape_cast %1453 : vector<1x1xf32> to vector<1x1x1xf32>
    %cst_505 = arith.constant 1.562500e-02 : f32
    %1455 = vector.broadcast %cst_505 : f32 to vector<1x1x1xf32>
    %1456 = arith.mulf %1454, %1455 : vector<1x1x1xf32>
    %1457 = vector.broadcast %1456 : vector<1x1x1xf32> to vector<1x4x16xf32>
    %1458 = arith.subf %1450, %1457 : vector<1x4x16xf32>
    %1459 = arith.mulf %1458, %1458 : vector<1x4x16xf32>
    %cst_506 = arith.constant dense<0.000000e+00> : vector<1x4xf32>
    %1460 = vector.multi_reduction <add>, %1459, %cst_506 [2] : vector<1x4x16xf32> to vector<1x4xf32>
    %1461 = vector.shape_cast %1460 : vector<1x4xf32> to vector<1x4x1xf32>
    %cst_507 = arith.constant dense<0.000000e+00> : vector<1x1xf32>
    %1462 = vector.multi_reduction <add>, %1461, %cst_507 [1] : vector<1x4x1xf32> to vector<1x1xf32>
    %1463 = vector.shape_cast %1462 : vector<1x1xf32> to vector<1x1x1xf32>
    %cst_508 = arith.constant 0.0158730168 : f32
    %1464 = vector.broadcast %cst_508 : f32 to vector<1x1x1xf32>
    %1465 = arith.mulf %1463, %1464 : vector<1x1x1xf32>
    %cst_509 = arith.constant 9.99999974E-5 : f32
    %1466 = vector.broadcast %cst_509 : f32 to vector<1x1x1xf32>
    %1467 = arith.addf %1465, %1466 : vector<1x1x1xf32>
    %cst_510 = arith.constant 4.000000e+00 : f32
    %1468 = vector.broadcast %cst_510 : f32 to vector<1x1x1xf32>
    %1469 = arith.mulf %1468, %1467 : vector<1x1x1xf32>
    %cst_511 = arith.constant 1.000000e+00 : f32
    %1470 = vector.broadcast %cst_511 : f32 to vector<1x1x1xf32>
    %1471 = arith.divf %1470, %1469 : vector<1x1x1xf32>
    %1472 = vector.broadcast %1471 : vector<1x1x1xf32> to vector<1x4x16xf32>
    %1473 = arith.mulf %1459, %1472 : vector<1x4x16xf32>
    %cst_512 = arith.constant 5.000000e-01 : f32
    %1474 = vector.broadcast %cst_512 : f32 to vector<1x4x16xf32>
    %1475 = arith.addf %1473, %1474 : vector<1x4x16xf32>
    %1476 = arith.negf %1475 : vector<1x4x16xf32>
    %1477 = math.exp %1476 : vector<1x4x16xf32>
    %cst_513 = arith.constant 1.000000e+00 : f32
    %1478 = vector.broadcast %cst_513 : f32 to vector<1x4x16xf32>
    %1479 = arith.addf %1478, %1477 : vector<1x4x16xf32>
    %1480 = arith.divf %1478, %1479 : vector<1x4x16xf32>
    %1481 = arith.mulf %1450, %1480 : vector<1x4x16xf32>
    %1482 = arith.negf %1481 : vector<1x4x16xf32>
    %1483 = math.exp %1482 : vector<1x4x16xf32>
    %cst_514 = arith.constant 1.000000e+00 : f32
    %1484 = vector.broadcast %cst_514 : f32 to vector<1x4x16xf32>
    %1485 = arith.addf %1484, %1483 : vector<1x4x16xf32>
    %1486 = arith.divf %1484, %1485 : vector<1x4x16xf32>
    %cst_515 = arith.constant 0.333333343 : f32
    %1487 = vector.broadcast %cst_515 : f32 to vector<1x16x16xf32>
    %1488 = arith.mulf %528, %1487 : vector<1x16x16xf32>
    %cst_516 = arith.constant 0.333333343 : f32
    %1489 = vector.broadcast %cst_516 : f32 to vector<1x4x16xf32>
    %1490 = arith.mulf %1007, %1489 : vector<1x4x16xf32>
    %cst_517 = arith.constant 0.333333343 : f32
    %1491 = vector.broadcast %cst_517 : f32 to vector<1x4x16xf32>
    %1492 = arith.mulf %1486, %1491 : vector<1x4x16xf32>
    %1493 = vector.extract_strided_slice %1488 {offsets = [0, 0, 0], sizes = [1, 1, 16], strides = [1, 1, 1]} : vector<1x16x16xf32> to vector<1x1x16xf32>
    %1494 = vector.shape_cast %1493 : vector<1x1x16xf32> to vector<1x16xf32>
    %1495 = vector.shape_cast %1494 : vector<1x16xf32> to vector<1x1x16xf32>
    %1496 = vector.broadcast %1495 : vector<1x1x16xf32> to vector<1x4x16xf32>
    %1497 = arith.addf %1496, %1490 : vector<1x4x16xf32>
    %1498 = vector.extract_strided_slice %1492 {offsets = [0, 0, 0], sizes = [1, 4, 1], strides = [1, 1, 1]} : vector<1x4x16xf32> to vector<1x4x1xf32>
    %1499 = vector.shape_cast %1498 : vector<1x4x1xf32> to vector<1x4xf32>
    %1500 = vector.shape_cast %1499 : vector<1x4xf32> to vector<1x4x1xf32>
    %1501 = vector.broadcast %1500 : vector<1x4x1xf32> to vector<1x4x16xf32>
    %1502 = arith.addf %1497, %1501 : vector<1x4x16xf32>
    %1503 = vector.extract_strided_slice %1488 {offsets = [0, 1, 0], sizes = [1, 1, 16], strides = [1, 1, 1]} : vector<1x16x16xf32> to vector<1x1x16xf32>
    %1504 = vector.shape_cast %1503 : vector<1x1x16xf32> to vector<1x16xf32>
    %1505 = vector.shape_cast %1504 : vector<1x16xf32> to vector<1x1x16xf32>
    %1506 = vector.broadcast %1505 : vector<1x1x16xf32> to vector<1x4x16xf32>
    %1507 = arith.addf %1506, %1490 : vector<1x4x16xf32>
    %1508 = vector.extract_strided_slice %1492 {offsets = [0, 0, 1], sizes = [1, 4, 1], strides = [1, 1, 1]} : vector<1x4x16xf32> to vector<1x4x1xf32>
    %1509 = vector.shape_cast %1508 : vector<1x4x1xf32> to vector<1x4xf32>
    %1510 = vector.shape_cast %1509 : vector<1x4xf32> to vector<1x4x1xf32>
    %1511 = vector.broadcast %1510 : vector<1x4x1xf32> to vector<1x4x16xf32>
    %1512 = arith.addf %1507, %1511 : vector<1x4x16xf32>
    %1513 = vector.extract_strided_slice %1488 {offsets = [0, 2, 0], sizes = [1, 1, 16], strides = [1, 1, 1]} : vector<1x16x16xf32> to vector<1x1x16xf32>
    %1514 = vector.shape_cast %1513 : vector<1x1x16xf32> to vector<1x16xf32>
    %1515 = vector.shape_cast %1514 : vector<1x16xf32> to vector<1x1x16xf32>
    %1516 = vector.broadcast %1515 : vector<1x1x16xf32> to vector<1x4x16xf32>
    %1517 = arith.addf %1516, %1490 : vector<1x4x16xf32>
    %1518 = vector.extract_strided_slice %1492 {offsets = [0, 0, 2], sizes = [1, 4, 1], strides = [1, 1, 1]} : vector<1x4x16xf32> to vector<1x4x1xf32>
    %1519 = vector.shape_cast %1518 : vector<1x4x1xf32> to vector<1x4xf32>
    %1520 = vector.shape_cast %1519 : vector<1x4xf32> to vector<1x4x1xf32>
    %1521 = vector.broadcast %1520 : vector<1x4x1xf32> to vector<1x4x16xf32>
    %1522 = arith.addf %1517, %1521 : vector<1x4x16xf32>
    %1523 = vector.extract_strided_slice %1488 {offsets = [0, 3, 0], sizes = [1, 1, 16], strides = [1, 1, 1]} : vector<1x16x16xf32> to vector<1x1x16xf32>
    %1524 = vector.shape_cast %1523 : vector<1x1x16xf32> to vector<1x16xf32>
    %1525 = vector.shape_cast %1524 : vector<1x16xf32> to vector<1x1x16xf32>
    %1526 = vector.broadcast %1525 : vector<1x1x16xf32> to vector<1x4x16xf32>
    %1527 = arith.addf %1526, %1490 : vector<1x4x16xf32>
    %1528 = vector.extract_strided_slice %1492 {offsets = [0, 0, 3], sizes = [1, 4, 1], strides = [1, 1, 1]} : vector<1x4x16xf32> to vector<1x4x1xf32>
    %1529 = vector.shape_cast %1528 : vector<1x4x1xf32> to vector<1x4xf32>
    %1530 = vector.shape_cast %1529 : vector<1x4xf32> to vector<1x4x1xf32>
    %1531 = vector.broadcast %1530 : vector<1x4x1xf32> to vector<1x4x16xf32>
    %1532 = arith.addf %1527, %1531 : vector<1x4x16xf32>
    %1533 = vector.extract_strided_slice %1488 {offsets = [0, 4, 0], sizes = [1, 1, 16], strides = [1, 1, 1]} : vector<1x16x16xf32> to vector<1x1x16xf32>
    %1534 = vector.shape_cast %1533 : vector<1x1x16xf32> to vector<1x16xf32>
    %1535 = vector.shape_cast %1534 : vector<1x16xf32> to vector<1x1x16xf32>
    %1536 = vector.broadcast %1535 : vector<1x1x16xf32> to vector<1x4x16xf32>
    %1537 = arith.addf %1536, %1490 : vector<1x4x16xf32>
    %1538 = vector.extract_strided_slice %1492 {offsets = [0, 0, 4], sizes = [1, 4, 1], strides = [1, 1, 1]} : vector<1x4x16xf32> to vector<1x4x1xf32>
    %1539 = vector.shape_cast %1538 : vector<1x4x1xf32> to vector<1x4xf32>
    %1540 = vector.shape_cast %1539 : vector<1x4xf32> to vector<1x4x1xf32>
    %1541 = vector.broadcast %1540 : vector<1x4x1xf32> to vector<1x4x16xf32>
    %1542 = arith.addf %1537, %1541 : vector<1x4x16xf32>
    %1543 = vector.extract_strided_slice %1488 {offsets = [0, 5, 0], sizes = [1, 1, 16], strides = [1, 1, 1]} : vector<1x16x16xf32> to vector<1x1x16xf32>
    %1544 = vector.shape_cast %1543 : vector<1x1x16xf32> to vector<1x16xf32>
    %1545 = vector.shape_cast %1544 : vector<1x16xf32> to vector<1x1x16xf32>
    %1546 = vector.broadcast %1545 : vector<1x1x16xf32> to vector<1x4x16xf32>
    %1547 = arith.addf %1546, %1490 : vector<1x4x16xf32>
    %1548 = vector.extract_strided_slice %1492 {offsets = [0, 0, 5], sizes = [1, 4, 1], strides = [1, 1, 1]} : vector<1x4x16xf32> to vector<1x4x1xf32>
    %1549 = vector.shape_cast %1548 : vector<1x4x1xf32> to vector<1x4xf32>
    %1550 = vector.shape_cast %1549 : vector<1x4xf32> to vector<1x4x1xf32>
    %1551 = vector.broadcast %1550 : vector<1x4x1xf32> to vector<1x4x16xf32>
    %1552 = arith.addf %1547, %1551 : vector<1x4x16xf32>
    %1553 = vector.extract_strided_slice %1488 {offsets = [0, 6, 0], sizes = [1, 1, 16], strides = [1, 1, 1]} : vector<1x16x16xf32> to vector<1x1x16xf32>
    %1554 = vector.shape_cast %1553 : vector<1x1x16xf32> to vector<1x16xf32>
    %1555 = vector.shape_cast %1554 : vector<1x16xf32> to vector<1x1x16xf32>
    %1556 = vector.broadcast %1555 : vector<1x1x16xf32> to vector<1x4x16xf32>
    %1557 = arith.addf %1556, %1490 : vector<1x4x16xf32>
    %1558 = vector.extract_strided_slice %1492 {offsets = [0, 0, 6], sizes = [1, 4, 1], strides = [1, 1, 1]} : vector<1x4x16xf32> to vector<1x4x1xf32>
    %1559 = vector.shape_cast %1558 : vector<1x4x1xf32> to vector<1x4xf32>
    %1560 = vector.shape_cast %1559 : vector<1x4xf32> to vector<1x4x1xf32>
    %1561 = vector.broadcast %1560 : vector<1x4x1xf32> to vector<1x4x16xf32>
    %1562 = arith.addf %1557, %1561 : vector<1x4x16xf32>
    %1563 = vector.extract_strided_slice %1488 {offsets = [0, 7, 0], sizes = [1, 1, 16], strides = [1, 1, 1]} : vector<1x16x16xf32> to vector<1x1x16xf32>
    %1564 = vector.shape_cast %1563 : vector<1x1x16xf32> to vector<1x16xf32>
    %1565 = vector.shape_cast %1564 : vector<1x16xf32> to vector<1x1x16xf32>
    %1566 = vector.broadcast %1565 : vector<1x1x16xf32> to vector<1x4x16xf32>
    %1567 = arith.addf %1566, %1490 : vector<1x4x16xf32>
    %1568 = vector.extract_strided_slice %1492 {offsets = [0, 0, 7], sizes = [1, 4, 1], strides = [1, 1, 1]} : vector<1x4x16xf32> to vector<1x4x1xf32>
    %1569 = vector.shape_cast %1568 : vector<1x4x1xf32> to vector<1x4xf32>
    %1570 = vector.shape_cast %1569 : vector<1x4xf32> to vector<1x4x1xf32>
    %1571 = vector.broadcast %1570 : vector<1x4x1xf32> to vector<1x4x16xf32>
    %1572 = arith.addf %1567, %1571 : vector<1x4x16xf32>
    %1573 = vector.extract_strided_slice %1488 {offsets = [0, 8, 0], sizes = [1, 1, 16], strides = [1, 1, 1]} : vector<1x16x16xf32> to vector<1x1x16xf32>
    %1574 = vector.shape_cast %1573 : vector<1x1x16xf32> to vector<1x16xf32>
    %1575 = vector.shape_cast %1574 : vector<1x16xf32> to vector<1x1x16xf32>
    %1576 = vector.broadcast %1575 : vector<1x1x16xf32> to vector<1x4x16xf32>
    %1577 = arith.addf %1576, %1490 : vector<1x4x16xf32>
    %1578 = vector.extract_strided_slice %1492 {offsets = [0, 0, 8], sizes = [1, 4, 1], strides = [1, 1, 1]} : vector<1x4x16xf32> to vector<1x4x1xf32>
    %1579 = vector.shape_cast %1578 : vector<1x4x1xf32> to vector<1x4xf32>
    %1580 = vector.shape_cast %1579 : vector<1x4xf32> to vector<1x4x1xf32>
    %1581 = vector.broadcast %1580 : vector<1x4x1xf32> to vector<1x4x16xf32>
    %1582 = arith.addf %1577, %1581 : vector<1x4x16xf32>
    %1583 = vector.extract_strided_slice %1488 {offsets = [0, 9, 0], sizes = [1, 1, 16], strides = [1, 1, 1]} : vector<1x16x16xf32> to vector<1x1x16xf32>
    %1584 = vector.shape_cast %1583 : vector<1x1x16xf32> to vector<1x16xf32>
    %1585 = vector.shape_cast %1584 : vector<1x16xf32> to vector<1x1x16xf32>
    %1586 = vector.broadcast %1585 : vector<1x1x16xf32> to vector<1x4x16xf32>
    %1587 = arith.addf %1586, %1490 : vector<1x4x16xf32>
    %1588 = vector.extract_strided_slice %1492 {offsets = [0, 0, 9], sizes = [1, 4, 1], strides = [1, 1, 1]} : vector<1x4x16xf32> to vector<1x4x1xf32>
    %1589 = vector.shape_cast %1588 : vector<1x4x1xf32> to vector<1x4xf32>
    %1590 = vector.shape_cast %1589 : vector<1x4xf32> to vector<1x4x1xf32>
    %1591 = vector.broadcast %1590 : vector<1x4x1xf32> to vector<1x4x16xf32>
    %1592 = arith.addf %1587, %1591 : vector<1x4x16xf32>
    %1593 = vector.extract_strided_slice %1488 {offsets = [0, 10, 0], sizes = [1, 1, 16], strides = [1, 1, 1]} : vector<1x16x16xf32> to vector<1x1x16xf32>
    %1594 = vector.shape_cast %1593 : vector<1x1x16xf32> to vector<1x16xf32>
    %1595 = vector.shape_cast %1594 : vector<1x16xf32> to vector<1x1x16xf32>
    %1596 = vector.broadcast %1595 : vector<1x1x16xf32> to vector<1x4x16xf32>
    %1597 = arith.addf %1596, %1490 : vector<1x4x16xf32>
    %1598 = vector.extract_strided_slice %1492 {offsets = [0, 0, 10], sizes = [1, 4, 1], strides = [1, 1, 1]} : vector<1x4x16xf32> to vector<1x4x1xf32>
    %1599 = vector.shape_cast %1598 : vector<1x4x1xf32> to vector<1x4xf32>
    %1600 = vector.shape_cast %1599 : vector<1x4xf32> to vector<1x4x1xf32>
    %1601 = vector.broadcast %1600 : vector<1x4x1xf32> to vector<1x4x16xf32>
    %1602 = arith.addf %1597, %1601 : vector<1x4x16xf32>
    %1603 = vector.extract_strided_slice %1488 {offsets = [0, 11, 0], sizes = [1, 1, 16], strides = [1, 1, 1]} : vector<1x16x16xf32> to vector<1x1x16xf32>
    %1604 = vector.shape_cast %1603 : vector<1x1x16xf32> to vector<1x16xf32>
    %1605 = vector.shape_cast %1604 : vector<1x16xf32> to vector<1x1x16xf32>
    %1606 = vector.broadcast %1605 : vector<1x1x16xf32> to vector<1x4x16xf32>
    %1607 = arith.addf %1606, %1490 : vector<1x4x16xf32>
    %1608 = vector.extract_strided_slice %1492 {offsets = [0, 0, 11], sizes = [1, 4, 1], strides = [1, 1, 1]} : vector<1x4x16xf32> to vector<1x4x1xf32>
    %1609 = vector.shape_cast %1608 : vector<1x4x1xf32> to vector<1x4xf32>
    %1610 = vector.shape_cast %1609 : vector<1x4xf32> to vector<1x4x1xf32>
    %1611 = vector.broadcast %1610 : vector<1x4x1xf32> to vector<1x4x16xf32>
    %1612 = arith.addf %1607, %1611 : vector<1x4x16xf32>
    %1613 = vector.extract_strided_slice %1488 {offsets = [0, 12, 0], sizes = [1, 1, 16], strides = [1, 1, 1]} : vector<1x16x16xf32> to vector<1x1x16xf32>
    %1614 = vector.shape_cast %1613 : vector<1x1x16xf32> to vector<1x16xf32>
    %1615 = vector.shape_cast %1614 : vector<1x16xf32> to vector<1x1x16xf32>
    %1616 = vector.broadcast %1615 : vector<1x1x16xf32> to vector<1x4x16xf32>
    %1617 = arith.addf %1616, %1490 : vector<1x4x16xf32>
    %1618 = vector.extract_strided_slice %1492 {offsets = [0, 0, 12], sizes = [1, 4, 1], strides = [1, 1, 1]} : vector<1x4x16xf32> to vector<1x4x1xf32>
    %1619 = vector.shape_cast %1618 : vector<1x4x1xf32> to vector<1x4xf32>
    %1620 = vector.shape_cast %1619 : vector<1x4xf32> to vector<1x4x1xf32>
    %1621 = vector.broadcast %1620 : vector<1x4x1xf32> to vector<1x4x16xf32>
    %1622 = arith.addf %1617, %1621 : vector<1x4x16xf32>
    %1623 = vector.extract_strided_slice %1488 {offsets = [0, 13, 0], sizes = [1, 1, 16], strides = [1, 1, 1]} : vector<1x16x16xf32> to vector<1x1x16xf32>
    %1624 = vector.shape_cast %1623 : vector<1x1x16xf32> to vector<1x16xf32>
    %1625 = vector.shape_cast %1624 : vector<1x16xf32> to vector<1x1x16xf32>
    %1626 = vector.broadcast %1625 : vector<1x1x16xf32> to vector<1x4x16xf32>
    %1627 = arith.addf %1626, %1490 : vector<1x4x16xf32>
    %1628 = vector.extract_strided_slice %1492 {offsets = [0, 0, 13], sizes = [1, 4, 1], strides = [1, 1, 1]} : vector<1x4x16xf32> to vector<1x4x1xf32>
    %1629 = vector.shape_cast %1628 : vector<1x4x1xf32> to vector<1x4xf32>
    %1630 = vector.shape_cast %1629 : vector<1x4xf32> to vector<1x4x1xf32>
    %1631 = vector.broadcast %1630 : vector<1x4x1xf32> to vector<1x4x16xf32>
    %1632 = arith.addf %1627, %1631 : vector<1x4x16xf32>
    %1633 = vector.extract_strided_slice %1488 {offsets = [0, 14, 0], sizes = [1, 1, 16], strides = [1, 1, 1]} : vector<1x16x16xf32> to vector<1x1x16xf32>
    %1634 = vector.shape_cast %1633 : vector<1x1x16xf32> to vector<1x16xf32>
    %1635 = vector.shape_cast %1634 : vector<1x16xf32> to vector<1x1x16xf32>
    %1636 = vector.broadcast %1635 : vector<1x1x16xf32> to vector<1x4x16xf32>
    %1637 = arith.addf %1636, %1490 : vector<1x4x16xf32>
    %1638 = vector.extract_strided_slice %1492 {offsets = [0, 0, 14], sizes = [1, 4, 1], strides = [1, 1, 1]} : vector<1x4x16xf32> to vector<1x4x1xf32>
    %1639 = vector.shape_cast %1638 : vector<1x4x1xf32> to vector<1x4xf32>
    %1640 = vector.shape_cast %1639 : vector<1x4xf32> to vector<1x4x1xf32>
    %1641 = vector.broadcast %1640 : vector<1x4x1xf32> to vector<1x4x16xf32>
    %1642 = arith.addf %1637, %1641 : vector<1x4x16xf32>
    %1643 = vector.extract_strided_slice %1488 {offsets = [0, 15, 0], sizes = [1, 1, 16], strides = [1, 1, 1]} : vector<1x16x16xf32> to vector<1x1x16xf32>
    %1644 = vector.shape_cast %1643 : vector<1x1x16xf32> to vector<1x16xf32>
    %1645 = vector.shape_cast %1644 : vector<1x16xf32> to vector<1x1x16xf32>
    %1646 = vector.broadcast %1645 : vector<1x1x16xf32> to vector<1x4x16xf32>
    %1647 = arith.addf %1646, %1490 : vector<1x4x16xf32>
    %1648 = vector.extract_strided_slice %1492 {offsets = [0, 0, 15], sizes = [1, 4, 1], strides = [1, 1, 1]} : vector<1x4x16xf32> to vector<1x4x1xf32>
    %1649 = vector.shape_cast %1648 : vector<1x4x1xf32> to vector<1x4xf32>
    %1650 = vector.shape_cast %1649 : vector<1x4xf32> to vector<1x4x1xf32>
    %1651 = vector.broadcast %1650 : vector<1x4x1xf32> to vector<1x4x16xf32>
    %1652 = arith.addf %1647, %1651 : vector<1x4x16xf32>
    %1653 = tpu.concatenate %1502, %1512, %1522, %1532, %1542, %1552, %1562, %1572, %1582, %1592, %1602, %1612, %1622, %1632, %1642, %1652 in 2 : vector<1x4x16xf32>, vector<1x4x16xf32>, vector<1x4x16xf32>, vector<1x4x16xf32>, vector<1x4x16xf32>, vector<1x4x16xf32>, vector<1x4x16xf32>, vector<1x4x16xf32>, vector<1x4x16xf32>, vector<1x4x16xf32>, vector<1x4x16xf32>, vector<1x4x16xf32>, vector<1x4x16xf32>, vector<1x4x16xf32>, vector<1x4x16xf32>, vector<1x4x16xf32> -> vector<1x4x256xf32>
    %c0_518 = arith.constant 0 : index
    %c0_519 = arith.constant 0 : index
    %c0_520 = arith.constant 0 : index
    %1654 = vector.load %arg8[%c0_518, %c0_519, %c0_520] : memref<1x4x256xf32, #tpu.memory_space<vmem>>, vector<1x4x256xf32>
    tpu.vector_store %arg8[%c0_518, %c0_519, %c0_520], %1653 {strides = array<i32>} : memref<1x4x256xf32, #tpu.memory_space<vmem>>, vector<1x4x256xf32>,
    return
  }
  func.func @transform_0(%arg0: i32) -> (i32, i32, i32, i32) {
    %c0_i32 = arith.constant 0 : i32
    %c0_i32_0 = arith.constant 0 : i32
    %c0_i32_1 = arith.constant 0 : i32
    %c0_i32_2 = arith.constant 0 : i32
    return %arg0, %c0_i32, %c0_i32_0, %c0_i32_1 : i32, i32, i32, i32
  }
  func.func @transform_1(%arg0: i32) -> i32 {
    %c0_i32 = arith.constant 0 : i32
    %c0_i32_0 = arith.constant 0 : i32
    return %c0_i32 : i32
  }
  func.func @transform_2(%arg0: i32) -> i32 {
    %c0_i32 = arith.constant 0 : i32
    %c0_i32_0 = arith.constant 0 : i32
    return %c0_i32 : i32
  }
  func.func @transform_3(%arg0: i32) -> i32 {
    %c0_i32 = arith.constant 0 : i32
    %c0_i32_0 = arith.constant 0 : i32
    return %c0_i32 : i32
  }
  func.func @transform_4(%arg0: i32) -> i32 {
    %c0_i32 = arith.constant 0 : i32
    %c0_i32_0 = arith.constant 0 : i32
    return %c0_i32 : i32
  }
  func.func @transform_5(%arg0: i32) -> i32 {
    %c0_i32 = arith.constant 0 : i32
    %c0_i32_0 = arith.constant 0 : i32
    return %c0_i32 : i32
  }
  func.func @transform_6(%arg0: i32) -> i32 {
    %c0_i32 = arith.constant 0 : i32
    %c0_i32_0 = arith.constant 0 : i32
    return %c0_i32 : i32
  }
  func.func @transform_7(%arg0: i32) -> (i32, i32, i32) {
    %c0_i32 = arith.constant 0 : i32
    %c0_i32_0 = arith.constant 0 : i32
    %c0_i32_1 = arith.constant 0 : i32
    return %arg0, %c0_i32, %c0_i32_0 : i32, i32, i32
  }
}

</mosaic_0001>

<llo_original>
// kernel: tpu_custom_call.1
$region0: #{tpu_custom_call.1}
  #allocation0 [shape = 'u32[]', space=smem, size = 0x4, offset = 0x4, fixed_abs, tag = 'smem constant byte address 0x4 - core index']
  #allocation1 [shape = 'u32[144,128]{1,0:T(1,128)}', space=vmem, size = 0x12000, scoped, tag = 'internal scratch']
  #allocation2 [shape = 'f32[2,1,10,22]{3,2,1,0:T(8,128)}', space=vmem, size = 0x4000, scoped, tag = 'scratch operand']
  #allocation3 [shape = 'f32[2,1,10,22]{3,2,1,0:T(8,128)}', space=vmem, size = 0x4000, scoped, tag = 'scratch operand']
  #allocation4 [shape = 'f32[2,1,22,22]{3,2,1,0:T(8,128)}', space=vmem, size = 0x6000, scoped, tag = 'scratch operand']
  #allocation5 [shape = 'f32[1]{0:T(128)S(6)}', space=smem, size = 0x200, scoped, tag = 'scoped memory for tpu_custom_call.1']
  #allocation6 [shape = 'f32[1]{0:T(128)S(6)}', space=smem, size = 0x200, scoped, tag = 'scoped memory for tpu_custom_call.1']
  #allocation7 [shape = 'f32[1]{0:T(128)S(6)}', space=smem, size = 0x200, scoped, tag = 'scoped memory for tpu_custom_call.1']
  %s0 = inlined_call_operand.hbm [shape: f32[2,4,16,16], index: 0, kind: input, shape index: {}]
  %s1 = inlined_call_operand.vmem [shape: f32[98], index: 1, kind: input, shape index: {}]
  %s2 = inlined_call_operand.<no memory space> [shape: f32[1], index: 2, kind: input, shape index: {}]
  %s3 = inlined_call_operand.vmem [shape: f32[98], index: 3, kind: input, shape index: {}]
  %s4 = inlined_call_operand.<no memory space> [shape: f32[1], index: 4, kind: input, shape index: {}]
  %s5 = inlined_call_operand.vmem [shape: f32[98], index: 5, kind: input, shape index: {}]
  %s6 = inlined_call_operand.<no memory space> [shape: f32[1], index: 6, kind: input, shape index: {}]
  %s7 = inlined_call_operand.hbm [shape: f32[2,4,256], index: 7, kind: output, shape index: {}]
  %s8 = sld [smem:[#allocation0]]
  $region77: #{tpu_custom_call.1} parent=0
    _
  %s10 = ssub.s32 1, %s8
  %s11 = scalar_select 0, %s10, %s8
  %12 = sst [smem:[#allocation5]] %s2
  %13 = sst [smem:[#allocation6]] %s4
  %14 = sst [smem:[#allocation7]] %s6
  $region1: #{tpu_custom_call.1} parent=0
    #allocation8 [shape = 'u8[65536]{0}', space=vmem, size = 0x10000, scoped, tag = 'input window, operand 0']
    #allocation9 [shape = 's32[2]{0}', space=sflag, size = 0x8, scoped, tag = 'scoped memory for tpu_custom_call.1']
    #allocation10 [shape = 's32[2]{0}', space=sflag, size = 0x8, scoped, tag = 'scoped memory for tpu_custom_call.1']
    #allocation11 [shape = 's32[2]{0}', space=sflag, size = 0x8, scoped, tag = 'scoped memory for tpu_custom_call.1']
    #allocation12 [shape = 'u8[512]{0}', space=smem, size = 0x200, scoped, tag = 'input window, operand 1, single buffered']
    #allocation13 [shape = 'u8[512]{0}', space=smem, size = 0x200, scoped, tag = 'input window, operand 3, single buffered']
    #allocation14 [shape = 's32[1]{0}', space=sflag, size = 0x4, scoped, tag = 'scoped memory for tpu_custom_call.1']
    #allocation15 [shape = 'u8[512]{0}', space=smem, size = 0x200, scoped, tag = 'input window, operand 5, single buffered']
    #allocation16 [shape = 'u8[8192]{0}', space=vmem, size = 0x2000, scoped, tag = 'output window, operand 0']
    %15 = vsyncpa [#allocation9], 0
    %s16 = scalar_lea.sflag [#allocation9], 1
    %17 = vsyncpa %s16, 0
    %18 = vsyncpa [#allocation11], 0
    %19 = vsyncpa [#allocation14], 0
    %20 = vsyncpa [#allocation10], 0
    %s21 = scalar_lea.sflag [#allocation10], 1
    %22 = vsyncpa %s21, 0
    loop: start=0, step=1, limit=4
    $region2: #{tpu_custom_call.1} parent=1 // loop_pre_header
      _
    $region3: #{tpu_custom_call.1} parent=1 // loop_header
      %s24 = sphi 0, %s28
      %p25 = scmp.ge.s32.totalorder %s24, 4
      %s34 = sphi 0, %s36
      %s37 = sphi 0, %s34
      %s38 = sphi 0, %s37
      %s54 = sphi 0, %s38
      %s58 = sphi 0, %s58
      %s60 = sphi 0, %s58
      %s61 = sphi 0, %s60
      %s75 = sphi 0, %s61
      %s79 = sphi 0, %s79
      %s81 = sphi 0, %s79
      %s82 = sphi 0, %s81
      %s96 = sphi 0, %s82
      %s100 = sphi 0, %s100
      %s102 = sphi 0, %s100
      %s103 = sphi 0, %s102
      %s117 = sphi 0, %s103
      %s121 = sphi 0, %s121
      %s123 = sphi 0, %s121
      %s124 = sphi 0, %s123
      %s138 = sphi 0, %s124
      %s142 = sphi 0, %s142
      %s144 = sphi 0, %s142
      %s145 = sphi 0, %s144
      %s159 = sphi 0, %s145
      %s163 = sphi 0, %s163
      %s165 = sphi 0, %s163
      %s166 = sphi 0, %s165
      %s180 = sphi 0, %s166
      %s186 = sphi 0, %s188
      %s189 = sphi 0, %s186
      %s190 = sphi 0, %s189
      %s206 = sphi 0, %s190
    $region4: #{tpu_custom_call.1} parent=1 // loop_header_branch
      %27 = sbr.rel (%p25) target = $region8
    $region5: #{tpu_custom_call.1} parent=1 // loop_body
      %s29 = ssub.s32 %s24, 1
      %s30 = ssub.s32 %s24, 2
      %s31 = sadd.s32 %s24, 1
      %s32 = ssub.s32 %s24, %s31
      %p33 = scmp.eq.s32.totalorder %s32, 0
      %s35 = sadd.s32 %s34, 1
      %s36 = scalar_select %p33, %s34, %s35
      %p39 = pneg %p33
      %p40 = scmp.eq.s32.totalorder %s24, 1
      %p41 = por %p39, %p40
      %p42 = scmp.ne.s32.totalorder %s34, %s37
      %p43 = scmp.eq.s32.totalorder %s24, 0
      %p44 = por %p42, %p43
      %p45 = scmp.ne.s32.totalorder %s34, %s37
      %p46 = scmp.eq.s32.totalorder %s29, 1
      %p47 = por %p45, %p46
      %p48 = scmp.ne.s32.totalorder %s37, %s38
      %p49 = scmp.eq.s32.totalorder %s29, 0
      %p50 = por %p48, %p49
      %p51 = scmp.ne.s32.totalorder %s37, %s38
      %p52 = scmp.eq.s32.totalorder %s30, 1
      %p53 = por %p51, %p52
      %p55 = scmp.ne.s32.totalorder %s38, %s54
      %p56 = scmp.eq.s32.totalorder %s30, 0
      %p57 = por %p55, %p56
      %s59 = sadd.s32 %s58, 1
      %p62 = scmp.eq.s32.totalorder %s24, 1
      %p63 = scmp.ne.s32.totalorder %s58, %s60
      %p64 = scmp.eq.s32.totalorder %s24, 0
      %p65 = por %p63, %p64
      %p66 = scmp.ne.s32.totalorder %s58, %s60
      %p67 = scmp.eq.s32.totalorder %s29, 1
      %p68 = por %p66, %p67
      %p69 = scmp.ne.s32.totalorder %s60, %s61
      %p70 = scmp.eq.s32.totalorder %s29, 0
      %p71 = por %p69, %p70
      %p72 = scmp.ne.s32.totalorder %s60, %s61
      %p73 = scmp.eq.s32.totalorder %s30, 1
      %p74 = por %p72, %p73
      %p76 = scmp.ne.s32.totalorder %s61, %s75
      %p77 = scmp.eq.s32.totalorder %s30, 0
      %p78 = por %p76, %p77
      %s80 = sadd.s32 %s79, 1
      %p83 = scmp.eq.s32.totalorder %s24, 1
      %p84 = scmp.ne.s32.totalorder %s79, %s81
      %p85 = scmp.eq.s32.totalorder %s24, 0
      %p86 = por %p84, %p85
      %p87 = scmp.ne.s32.totalorder %s79, %s81
      %p88 = scmp.eq.s32.totalorder %s29, 1
      %p89 = por %p87, %p88
      %p90 = scmp.ne.s32.totalorder %s81, %s82
      %p91 = scmp.eq.s32.totalorder %s29, 0
      %p92 = por %p90, %p91
      %p93 = scmp.ne.s32.totalorder %s81, %s82
      %p94 = scmp.eq.s32.totalorder %s30, 1
      %p95 = por %p93, %p94
      %p97 = scmp.ne.s32.totalorder %s82, %s96
      %p98 = scmp.eq.s32.totalorder %s30, 0
      %p99 = por %p97, %p98
      %s101 = sadd.s32 %s100, 1
      %p104 = scmp.eq.s32.totalorder %s24, 1
      %p105 = scmp.ne.s32.totalorder %s100, %s102
      %p106 = scmp.eq.s32.totalorder %s24, 0
      %p107 = por %p105, %p106
      %p108 = scmp.ne.s32.totalorder %s100, %s102
      %p109 = scmp.eq.s32.totalorder %s29, 1
      %p110 = por %p108, %p109
      %p111 = scmp.ne.s32.totalorder %s102, %s103
      %p112 = scmp.eq.s32.totalorder %s29, 0
      %p113 = por %p111, %p112
      %p114 = scmp.ne.s32.totalorder %s102, %s103
      %p115 = scmp.eq.s32.totalorder %s30, 1
      %p116 = por %p114, %p115
      %p118 = scmp.ne.s32.totalorder %s103, %s117
      %p119 = scmp.eq.s32.totalorder %s30, 0
      %p120 = por %p118, %p119
      %s122 = sadd.s32 %s121, 1
      %p125 = scmp.eq.s32.totalorder %s24, 1
      %p126 = scmp.ne.s32.totalorder %s121, %s123
      %p127 = scmp.eq.s32.totalorder %s24, 0
      %p128 = por %p126, %p127
      %p129 = scmp.ne.s32.totalorder %s121, %s123
      %p130 = scmp.eq.s32.totalorder %s29, 1
      %p131 = por %p129, %p130
      %p132 = scmp.ne.s32.totalorder %s123, %s124
      %p133 = scmp.eq.s32.totalorder %s29, 0
      %p134 = por %p132, %p133
      %p135 = scmp.ne.s32.totalorder %s123, %s124
      %p136 = scmp.eq.s32.totalorder %s30, 1
      %p137 = por %p135, %p136
      %p139 = scmp.ne.s32.totalorder %s124, %s138
      %p140 = scmp.eq.s32.totalorder %s30, 0
      %p141 = por %p139, %p140
      %s143 = sadd.s32 %s142, 1
      %p146 = scmp.eq.s32.totalorder %s24, 1
      %p147 = scmp.ne.s32.totalorder %s142, %s144
      %p148 = scmp.eq.s32.totalorder %s24, 0
      %p149 = por %p147, %p148
      %p150 = scmp.ne.s32.totalorder %s142, %s144
      %p151 = scmp.eq.s32.totalorder %s29, 1
      %p152 = por %p150, %p151
      %p153 = scmp.ne.s32.totalorder %s144, %s145
      %p154 = scmp.eq.s32.totalorder %s29, 0
      %p155 = por %p153, %p154
      %p156 = scmp.ne.s32.totalorder %s144, %s145
      %p157 = scmp.eq.s32.totalorder %s30, 1
      %p158 = por %p156, %p157
      %p160 = scmp.ne.s32.totalorder %s145, %s159
      %p161 = scmp.eq.s32.totalorder %s30, 0
      %p162 = por %p160, %p161
      %s164 = sadd.s32 %s163, 1
      %p167 = scmp.eq.s32.totalorder %s24, 1
      %p168 = scmp.ne.s32.totalorder %s163, %s165
      %p169 = scmp.eq.s32.totalorder %s24, 0
      %p170 = por %p168, %p169
      %p171 = scmp.ne.s32.totalorder %s163, %s165
      %p172 = scmp.eq.s32.totalorder %s29, 1
      %p173 = por %p171, %p172
      %p174 = scmp.ne.s32.totalorder %s165, %s166
      %p175 = scmp.eq.s32.totalorder %s29, 0
      %p176 = por %p174, %p175
      %p177 = scmp.ne.s32.totalorder %s165, %s166
      %p178 = scmp.eq.s32.totalorder %s30, 1
      %p179 = por %p177, %p178
      %p181 = scmp.ne.s32.totalorder %s166, %s180
      %p182 = scmp.eq.s32.totalorder %s30, 0
      %p183 = por %p181, %p182
      %s184 = ssub.s32 %s24, %s31
      %p185 = scmp.eq.s32.totalorder %s184, 0
      %s187 = sadd.s32 %s186, 1
      %s188 = scalar_select %p185, %s186, %s187
      %p191 = pneg %p185
      %p192 = scmp.eq.s32.totalorder %s24, 1
      %p193 = por %p191, %p192
      %p194 = scmp.ne.s32.totalorder %s186, %s189
      %p195 = scmp.eq.s32.totalorder %s24, 0
      %p196 = por %p194, %p195
      %p197 = scmp.ne.s32.totalorder %s186, %s189
      %p198 = scmp.eq.s32.totalorder %s29, 1
      %p199 = por %p197, %p198
      %p200 = scmp.ne.s32.totalorder %s189, %s190
      %p201 = scmp.eq.s32.totalorder %s29, 0
      %p202 = por %p200, %p201
      %p203 = scmp.ne.s32.totalorder %s189, %s190
      %p204 = scmp.eq.s32.totalorder %s30, 1
      %p205 = por %p203, %p204
      %p207 = scmp.ne.s32.totalorder %s190, %s206
      %p208 = scmp.eq.s32.totalorder %s30, 0
      %p209 = por %p207, %p208
      %p210 = scmp.le.s32.totalorder 1, %s24
      %p211 = scmp.lt.s32.totalorder %s24, 3
      %p212 = pnand %p210, %p211
      %p213 = pneg %p212
      // Predicated region
      $region9: #{tpu_custom_call.1} parent=5 // pred_check
        _
      $region10: #{tpu_custom_call.1} parent=5 // pred_check_branch
        %215 = sbr.rel (%p212) target = $region12
      $region11: #{tpu_custom_call.1} parent=5 // pred_region
        %s216 = ssub.s32 %s24, 1
        // Predicated region
        $region13: #{tpu_custom_call.1} parent=11 // pred_check
          %p217 = pneg %p71
        $region14: #{tpu_custom_call.1} parent=11 // pred_check_branch
          %219 = sbr.rel (%p217) target = $region16
        $region15: #{tpu_custom_call.1} parent=11 // pred_region
          %s221 = ssub.s32 16, 16
          %222 = vsyncadd [#allocation11], %s221
          %s224 = sshll.u32 %s1, 4
          %s225 = int_to_ptr.vmem [resolvable:$true] %s224
          %227 = dma.vmem_to_smem %s225, 16, [#allocation12], [#allocation11]
        $region16: #{tpu_custom_call.1} parent=11 // pred_fallthru
          _
        // Predicated region
        $region17: #{tpu_custom_call.1} parent=11 // pred_check
          %p228 = pneg %p92
        $region18: #{tpu_custom_call.1} parent=11 // pred_check_branch
          %230 = sbr.rel (%p228) target = $region20
        $region19: #{tpu_custom_call.1} parent=11 // pred_region
          _
        $region20: #{tpu_custom_call.1} parent=11 // pred_fallthru
          _
        // Predicated region
        $region21: #{tpu_custom_call.1} parent=11 // pred_check
          %p231 = pneg %p113
        $region22: #{tpu_custom_call.1} parent=11 // pred_check_branch
          %233 = sbr.rel (%p231) target = $region24
        $region23: #{tpu_custom_call.1} parent=11 // pred_region
          %s235 = ssub.s32 16, 16
          %236 = vsyncadd [#allocation14], %s235
          %s238 = sshll.u32 %s3, 4
          %s239 = int_to_ptr.vmem [resolvable:$true] %s238
          %241 = dma.vmem_to_smem %s239, 16, [#allocation13], [#allocation14]
        $region24: #{tpu_custom_call.1} parent=11 // pred_fallthru
          _
        // Predicated region
        $region25: #{tpu_custom_call.1} parent=11 // pred_check
          %p242 = pneg %p134
        $region26: #{tpu_custom_call.1} parent=11 // pred_check_branch
          %244 = sbr.rel (%p242) target = $region28
        $region27: #{tpu_custom_call.1} parent=11 // pred_region
          _
        $region28: #{tpu_custom_call.1} parent=11 // pred_fallthru
          _
        // Predicated region
        $region29: #{tpu_custom_call.1} parent=11 // pred_check
          %p245 = pneg %p155
        $region30: #{tpu_custom_call.1} parent=11 // pred_check_branch
          %247 = sbr.rel (%p245) target = $region32
        $region31: #{tpu_custom_call.1} parent=11 // pred_region
          %s249 = ssub.s32 16, 16
          %250 = vsyncadd [#allocation14], %s249
          %s252 = sshll.u32 %s5, 4
          %s253 = int_to_ptr.vmem [resolvable:$true] %s252
          %255 = dma.vmem_to_smem %s253, 16, [#allocation15], [#allocation14]
        $region32: #{tpu_custom_call.1} parent=11 // pred_fallthru
          _
        // Predicated region
        $region33: #{tpu_custom_call.1} parent=11 // pred_check
          %p256 = pneg %p176
        $region34: #{tpu_custom_call.1} parent=11 // pred_check_branch
          %258 = sbr.rel (%p256) target = $region36
        $region35: #{tpu_custom_call.1} parent=11 // pred_region
          _
        $region36: #{tpu_custom_call.1} parent=11 // pred_fallthru
          _
      $region12: #{tpu_custom_call.1} parent=5 // pred_fallthru
        _
      %p259 = scmp.lt.s32.totalorder %s24, 2
      // Predicated region
      $region37: #{tpu_custom_call.1} parent=5 // pred_check
        %p260 = pneg %p259
      $region38: #{tpu_custom_call.1} parent=5 // pred_check_branch
        %262 = sbr.rel (%p260) target = $region40
      $region39: #{tpu_custom_call.1} parent=5 // pred_region
        // Predicated region
        $region41: #{tpu_custom_call.1} parent=39 // pred_check
          %p263 = pneg %p44
        $region42: #{tpu_custom_call.1} parent=39 // pred_check_branch
          %265 = sbr.rel (%p263) target = $region44
        $region43: #{tpu_custom_call.1} parent=39 // pred_region
          %s266 = sand.u32 %s34, 1
          %s267 = scalar_lea.sflag [#allocation9], %s266
          %s268 = sand.u32 %s34, 1
          %s269 = smul.addr %s268, 64
          %s270 = scalar_lea.vmem [#allocation8], %s269
          %s272 = ssub.s32 1024, 1024
          %273 = vsyncadd %s267, %s272
          %s274 = smul.addr %s24, 8
          %s275 = smul.addr %s274, 128
          %s276 = scalar_lea.hbm %s0, %s275
          %s277 = sshll.u32 %s270, 4
          %s278 = int_to_ptr.vmem [resolvable:$true] %s277
          %283 = dma.hbm_to_vmem [thread:$0]  %s276, 1024, %s278, %s267, 128, 128, 8
        $region44: #{tpu_custom_call.1} parent=39 // pred_fallthru
          _
      $region40: #{tpu_custom_call.1} parent=5 // pred_fallthru
        _
      %p284 = scmp.le.s32.totalorder 1, %s24
      %p285 = scmp.lt.s32.totalorder %s24, 3
      %p286 = pnand %p284, %p285
      %p287 = pneg %p286
      // Predicated region
      $region45: #{tpu_custom_call.1} parent=5 // pred_check
        _
      $region46: #{tpu_custom_call.1} parent=5 // pred_check_branch
        %289 = sbr.rel (%p286) target = $region48
      $region47: #{tpu_custom_call.1} parent=5 // pred_region
        %s290 = ssub.s32 %s24, 1
        %s291 = sand.u32 %s37, 1
        %s292 = scalar_lea.sflag [#allocation9], %s291
        %s293 = sand.u32 %s37, 1
        %s294 = smul.addr %s293, 64
        %s295 = scalar_lea.vmem [#allocation8], %s294
        // Predicated region
        $region49: #{tpu_custom_call.1} parent=47 // pred_check
          %p296 = pneg %p50
        $region50: #{tpu_custom_call.1} parent=47 // pred_check_branch
          %298 = sbr.rel (%p296) target = $region52
        $region51: #{tpu_custom_call.1} parent=47 // pred_region
          %299 = dma.done %s292, 1024
        $region52: #{tpu_custom_call.1} parent=47 // pred_fallthru
          _
        // Predicated region
        $region53: #{tpu_custom_call.1} parent=47 // pred_check
          %p300 = pneg %p71
        $region54: #{tpu_custom_call.1} parent=47 // pred_check_branch
          %302 = sbr.rel (%p300) target = $region56
        $region55: #{tpu_custom_call.1} parent=47 // pred_region
          %303 = dma.done [#allocation11], 16
        $region56: #{tpu_custom_call.1} parent=47 // pred_fallthru
          _
        // Predicated region
        $region57: #{tpu_custom_call.1} parent=47 // pred_check
          %p304 = pneg %p113
        $region58: #{tpu_custom_call.1} parent=47 // pred_check_branch
          %306 = sbr.rel (%p304) target = $region60
        $region59: #{tpu_custom_call.1} parent=47 // pred_region
          %307 = dma.done [#allocation14], 16
        $region60: #{tpu_custom_call.1} parent=47 // pred_fallthru
          _
        // Predicated region
        $region61: #{tpu_custom_call.1} parent=47 // pred_check
          %p308 = pneg %p155
        $region62: #{tpu_custom_call.1} parent=47 // pred_check_branch
          %310 = sbr.rel (%p308) target = $region64
        $region63: #{tpu_custom_call.1} parent=47 // pred_region
          %311 = dma.done [#allocation14], 16
        $region64: #{tpu_custom_call.1} parent=47 // pred_fallthru
          _
        %312 = sfence
        %s313 = sand.u32 %s37, 1
        %s314 = scalar_lea.sflag [#allocation9], %s313
        %s315 = sand.u32 %s37, 1
        %s316 = smul.addr %s315, 64
        %s317 = scalar_lea.vmem [#allocation8], %s316
        %p318 = pneg %p50
        %p319 = pneg %p47
        %p320 = pneg %p71
        %p321 = pneg %p68
        %p322 = pneg %p92
        %p323 = pneg %p89
        %p324 = pneg %p113
        %p325 = pneg %p110
        %p326 = pneg %p134
        %p327 = pneg %p131
        %p328 = pneg %p155
        %p329 = pneg %p152
        %p330 = pneg %p176
        %p331 = pneg %p173
        %p332 = pneg %p202
        %p333 = pneg %p199
        %s334 = sand.u32 %s189, 1
        %s335 = scalar_lea.sflag [#allocation10], %s334
        %s336 = sand.u32 %s189, 1
        %s337 = smul.addr %s336, 8
        %s338 = scalar_lea.vmem [#allocation16], %s337
        %v339 = vld [vmem:[%s295] sm:$0xff]
        %v340 = vld [vmem:[%s295 + $0x8] sm:$0xff]
        %vm341 = vcmask 130048
        %v342 = vsel %vm341, %v339, -inf
        %v343 = vsel %vm341, %v340, -inf
        %v344 = vmax.f32 %v342, %v343
        %v345 = vrot.slane %v344, 4
        %v346 = vmax.f32 %v344, %v345
        %v347 = vrot.slane %v346, 2
        %v348 = vmax.f32 %v346, %v347
        %v349 = vrot.slane %v348, 1
        %v350 = vmax.f32 %v348, %v349
        %v351 = vsel %vm341, %v339, 0.0
        %v352 = vsel %vm341, %v340, 0.0
        %v353 = vadd.f32 %v351, %v352
        %v354 = vrot.slane %v353, 4
        %v355 = vadd.f32 %v353, %v354
        %v356 = vrot.slane %v355, 2
        %v357 = vadd.f32 %v355, %v356
        %v358 = vrot.slane %v357, 1
        %v359 = vadd.f32 %v357, %v358
        %360 = vmax.xlane.f32.xlu0 %v342
        %v361 = vpop.xlane.xlu0 %360
        %362 = vmax.xlane.f32.xlu0 %v343
        %v363 = vpop.xlane.xlu0 %362
        %364 = vadd.xlane.f32.xlu0 %v351
        %v365 = vpop.xlane.xlu0 %364
        %366 = vadd.xlane.f32.xlu0 %v352
        %v367 = vpop.xlane.xlu0 %366
        %s368 = scalar_lea.vmem %s295, 16 [#allocation8]
        %v369 = vld [vmem:[%s368] sm:$0xff]
        %v370 = vld [vmem:[%s368 + $0x8] sm:$0xff]
        %v371 = vsel %vm341, %v369, -inf
        %v372 = vsel %vm341, %v370, -inf
        %v373 = vmax.f32 %v371, %v372
        %v374 = vrot.slane %v373, 4
        %v375 = vmax.f32 %v373, %v374
        %v376 = vrot.slane %v375, 2
        %v377 = vmax.f32 %v375, %v376
        %v378 = vrot.slane %v377, 1
        %v379 = vmax.f32 %v377, %v378
        %v380 = vsel %vm341, %v369, 0.0
        %v381 = vsel %vm341, %v370, 0.0
        %v382 = vadd.f32 %v380, %v381
        %v383 = vrot.slane %v382, 4
        %v384 = vadd.f32 %v382, %v383
        %v385 = vrot.slane %v384, 2
        %v386 = vadd.f32 %v384, %v385
        %v387 = vrot.slane %v386, 1
        %v388 = vadd.f32 %v386, %v387
        %389 = vmax.xlane.f32.xlu0 %v371
        %v390 = vpop.xlane.xlu0 %389
        %391 = vmax.xlane.f32.xlu0 %v372
        %v392 = vpop.xlane.xlu0 %391
        %393 = vadd.xlane.f32.xlu0 %v380
        %v394 = vpop.xlane.xlu0 %393
        %395 = vadd.xlane.f32.xlu0 %v381
        %v396 = vpop.xlane.xlu0 %395
        %s397 = scalar_lea.vmem %s295, 32 [#allocation8]
        %v398 = vld [vmem:[%s397] sm:$0xff]
        %v399 = vld [vmem:[%s397 + $0x8] sm:$0xff]
        %v400 = vsel %vm341, %v398, -inf
        %v401 = vsel %vm341, %v399, -inf
        %v402 = vmax.f32 %v400, %v401
        %v403 = vrot.slane %v402, 4
        %v404 = vmax.f32 %v402, %v403
        %v405 = vrot.slane %v404, 2
        %v406 = vmax.f32 %v404, %v405
        %v407 = vrot.slane %v406, 1
        %v408 = vmax.f32 %v406, %v407
        %v409 = vsel %vm341, %v398, 0.0
        %v410 = vsel %vm341, %v399, 0.0
        %v411 = vadd.f32 %v409, %v410
        %v412 = vrot.slane %v411, 4
        %v413 = vadd.f32 %v411, %v412
        %v414 = vrot.slane %v413, 2
        %v415 = vadd.f32 %v413, %v414
        %v416 = vrot.slane %v415, 1
        %v417 = vadd.f32 %v415, %v416
        %418 = vmax.xlane.f32.xlu0 %v400
        %v419 = vpop.xlane.xlu0 %418
        %420 = vmax.xlane.f32.xlu0 %v401
        %v421 = vpop.xlane.xlu0 %420
        %422 = vadd.xlane.f32.xlu0 %v409
        %v423 = vpop.xlane.xlu0 %422
        %424 = vadd.xlane.f32.xlu0 %v410
        %v425 = vpop.xlane.xlu0 %424
        %s426 = scalar_lea.vmem %s295, 48 [#allocation8]
        %v427 = vld [vmem:[%s426] sm:$0xff]
        %v428 = vld [vmem:[%s426 + $0x8] sm:$0xff]
        %v429 = vsel %vm341, %v427, -inf
        %v430 = vsel %vm341, %v428, -inf
        %v431 = vmax.f32 %v429, %v430
        %v432 = vrot.slane %v431, 4
        %v433 = vmax.f32 %v431, %v432
        %v434 = vrot.slane %v433, 2
        %v435 = vmax.f32 %v433, %v434
        %v436 = vrot.slane %v435, 1
        %v437 = vmax.f32 %v435, %v436
        %v438 = vsel %vm341, %v427, 0.0
        %v439 = vsel %vm341, %v428, 0.0
        %v440 = vadd.f32 %v438, %v439
        %v441 = vrot.slane %v440, 4
        %v442 = vadd.f32 %v440, %v441
        %v443 = vrot.slane %v442, 2
        %v444 = vadd.f32 %v442, %v443
        %v445 = vrot.slane %v444, 1
        %v446 = vadd.f32 %v444, %v445
        %447 = vmax.xlane.f32.xlu0 %v429
        %v448 = vpop.xlane.xlu0 %447
        %449 = vmax.xlane.f32.xlu0 %v430
        %v450 = vpop.xlane.xlu0 %449
        %451 = vadd.xlane.f32.xlu0 %v438
        %v452 = vpop.xlane.xlu0 %451
        %453 = vadd.xlane.f32.xlu0 %v439
        %v454 = vpop.xlane.xlu0 %453
        %v455 = vmax.f32 %v339, %v369
        %v456 = vmax.f32 %v340, %v370
        %v457 = vmax.f32 %v398, %v427
        %v458 = vmax.f32 %v399, %v428
        %v459 = vmax.f32 %v455, %v457
        %v460 = vmax.f32 %v456, %v458
        %v461 = vadd.f32 %v339, %v369
        %v462 = vadd.f32 %v340, %v370
        %v463 = vadd.f32 %v398, %v427
        %v464 = vadd.f32 %v399, %v428
        %v465 = vadd.f32 %v461, %v463
        %v466 = vadd.f32 %v462, %v464
        %vm467 = vcmask 1040384
        %v468 = vsel %vm467, %v350, %v379
        %vm469 = vcmask 1041408
        %v470 = vsel %vm469, %v468, %v408
        %vm471 = vcmask 1042432
        %v472 = vsel %vm471, %v470, %v437
        %v473 = vsel %vm467, %v359, %v388
        %v474 = vsel %vm469, %v473, %v417
        %v475 = vsel %vm471, %v474, %v446
        %v478 = vlaneseq
        %v479 = vand.u32 %v478, 127
        %v480 = vlaneseq
        %v481 = vshrl.u32 %v480, 7
        %v482 = vsub.s32 %v479, %v481
        %v483 = vrot.slane %v361, %v482
        %v484 = vadd.s32 %v479, 4294967288
        %v485 = vlaneseq
        %v486 = vshrl.u32 %v485, 7
        %v487 = vsub.s32 %v484, %v486
        %v488 = vrot.slane %v363, %v487
        %vm489 = vcmask 130112
        %v490 = vsel %vm489, %v488, %v483
        %v494 = vlaneseq
        %v495 = vshrl.u32 %v494, 7
        %v496 = vsub.s32 %v479, %v495
        %v497 = vrot.slane %v390, %v496
        %v498 = vlaneseq
        %v499 = vshrl.u32 %v498, 7
        %v500 = vsub.s32 %v484, %v499
        %v501 = vrot.slane %v392, %v500
        %v502 = vsel %vm489, %v501, %v497
        %v506 = vlaneseq
        %v507 = vshrl.u32 %v506, 7
        %v508 = vsub.s32 %v479, %v507
        %v509 = vrot.slane %v419, %v508
        %v510 = vlaneseq
        %v511 = vshrl.u32 %v510, 7
        %v512 = vsub.s32 %v484, %v511
        %v513 = vrot.slane %v421, %v512
        %v514 = vsel %vm489, %v513, %v509
        %v518 = vlaneseq
        %v519 = vshrl.u32 %v518, 7
        %v520 = vsub.s32 %v479, %v519
        %v521 = vrot.slane %v448, %v520
        %v522 = vlaneseq
        %v523 = vshrl.u32 %v522, 7
        %v524 = vsub.s32 %v484, %v523
        %v525 = vrot.slane %v450, %v524
        %v526 = vsel %vm489, %v525, %v521
        %v528 = vsel %vm467, %v490, %v502
        %v529 = vsel %vm469, %v528, %v514
        %v530 = vsel %vm471, %v529, %v526
        %v533 = vlaneseq
        %v534 = vshrl.u32 %v533, 7
        %v535 = vsub.s32 %v479, %v534
        %v536 = vrot.slane %v365, %v535
        %v537 = vlaneseq
        %v538 = vshrl.u32 %v537, 7
        %v539 = vsub.s32 %v484, %v538
        %v540 = vrot.slane %v367, %v539
        %v541 = vsel %vm489, %v540, %v536
        %v545 = vlaneseq
        %v546 = vshrl.u32 %v545, 7
        %v547 = vsub.s32 %v479, %v546
        %v548 = vrot.slane %v394, %v547
        %v549 = vlaneseq
        %v550 = vshrl.u32 %v549, 7
        %v551 = vsub.s32 %v484, %v550
        %v552 = vrot.slane %v396, %v551
        %v553 = vsel %vm489, %v552, %v548
        %v557 = vlaneseq
        %v558 = vshrl.u32 %v557, 7
        %v559 = vsub.s32 %v479, %v558
        %v560 = vrot.slane %v423, %v559
        %v561 = vlaneseq
        %v562 = vshrl.u32 %v561, 7
        %v563 = vsub.s32 %v484, %v562
        %v564 = vrot.slane %v425, %v563
        %v565 = vsel %vm489, %v564, %v560
        %v569 = vlaneseq
        %v570 = vshrl.u32 %v569, 7
        %v571 = vsub.s32 %v479, %v570
        %v572 = vrot.slane %v452, %v571
        %v573 = vlaneseq
        %v574 = vshrl.u32 %v573, 7
        %v575 = vsub.s32 %v484, %v574
        %v576 = vrot.slane %v454, %v575
        %v577 = vsel %vm489, %v576, %v572
        %v579 = vsel %vm467, %v541, %v553
        %v580 = vsel %vm469, %v579, %v565
        %v581 = vsel %vm471, %v580, %v577
        %v582 = vmul.f32 %v465, 0.25
        %v583 = vmul.f32 %v466, 0.25
        %vm584 = vcmask 174080
        %585 = vst.msk [vmem:[#allocation4] sm:$0x7] %vm584, 0.0
        %586 = vst.msk [vmem:[#allocation4 + $0x18] sm:$0x7] %vm584, 0.0
        %587 = vst.msk [vmem:[#allocation4 + $0x13] sm:$0x7] %vm584, 0.0
        %588 = vst.msk [vmem:[#allocation4 + $0x2b] sm:$0x7] %vm584, 0.0
        %vm589 = vcmask 23552
        %590 = vst.msk [vmem:[#allocation4 + $0x3] sm:$0xff] %vm589, 0.0
        %591 = vst.msk [vmem:[#allocation4 + $0xb] sm:$0xff] %vm589, 0.0
        %592 = vst.msk [vmem:[#allocation4 + $0x1b] sm:$0xff] %vm589, 0.0
        %593 = vst.msk [vmem:[#allocation4 + $0x23] sm:$0xff] %vm589, 0.0
        %vm594 = vcmask 179352
        %595 = vst.msk [vmem:[#allocation4 + $0x3] sm:$0xff] %vm594, 0.0
        %596 = vst.msk [vmem:[#allocation4 + $0xb] sm:$0xff] %vm594, 0.0
        %597 = vst.msk [vmem:[#allocation4 + $0x1b] sm:$0xff] %vm594, 0.0
        %598 = vst.msk [vmem:[#allocation4 + $0x23] sm:$0xff] %vm594, 0.0
        %601 = vrot.lane.b32.xlu0 %v459, 3
        %v602 = vpop.permute.xlu0 %601
        %603 = vrot.lane.b32.xlu0 %v460, 3
        %v604 = vpop.permute.xlu0 %603
        %vm607 = vcmask 154648
        %608 = vst.msk [vmem:[#allocation4 + $0x3] sm:$0xff] %vm607, %v602
        %609 = vst.msk [vmem:[#allocation4 + $0xb] sm:$0xff] %vm607, %v604
        %612 = vrot.lane.b32.xlu0 %v582, 3
        %v613 = vpop.permute.xlu0 %612
        %614 = vrot.lane.b32.xlu0 %v583, 3
        %v615 = vpop.permute.xlu0 %614
        %s618 = scalar_lea.vmem [#allocation4], 24
        %619 = vst.msk [vmem:[%s618 + $0x3] sm:$0xff] %vm607, %v613
        %620 = vst.msk [vmem:[%s618 + $0xb] sm:$0xff] %vm607, %v615
        %v621 = vld [vmem:[#allocation4] sm:$0xff]
        %v622 = vld [vmem:[#allocation4 + $0x8] sm:$0xff]
        %v623 = vld [vmem:[#allocation4 + $0x1] sm:$0xff]
        %v624 = vld [vmem:[#allocation4 + $0x9] sm:$0xff]
        %v625 = vld [vmem:[#allocation4 + $0x2] sm:$0xff]
        %v626 = vld [vmem:[#allocation4 + $0xa] sm:$0xff]
        %v627 = vld [vmem:[#allocation4 + $0x3] sm:$0xff]
        %v628 = vld [vmem:[#allocation4 + $0xb] sm:$0xff]
        %v629 = vld [vmem:[#allocation4 + $0x4] sm:$0xff]
        %v630 = vld [vmem:[#allocation4 + $0xc] sm:$0xff]
        %v631 = vld [vmem:[#allocation4 + $0x5] sm:$0xff]
        %v632 = vld [vmem:[#allocation4 + $0xd] sm:$0xff]
        %v633 = vld [vmem:[#allocation4 + $0x6] sm:$0xff]
        %v634 = vld [vmem:[#allocation4 + $0xe] sm:$0xff]
        %v635 = vld [vmem:[%s618] sm:$0xff]
        %v636 = vld [vmem:[%s618 + $0x8] sm:$0xff]
        %v637 = vld [vmem:[%s618 + $0x1] sm:$0xff]
        %v638 = vld [vmem:[%s618 + $0x9] sm:$0xff]
        %v639 = vld [vmem:[%s618 + $0x2] sm:$0xff]
        %v640 = vld [vmem:[%s618 + $0xa] sm:$0xff]
        %v641 = vld [vmem:[%s618 + $0x3] sm:$0xff]
        %v642 = vld [vmem:[%s618 + $0xb] sm:$0xff]
        %v643 = vld [vmem:[%s618 + $0x4] sm:$0xff]
        %v644 = vld [vmem:[%s618 + $0xc] sm:$0xff]
        %v645 = vld [vmem:[%s618 + $0x5] sm:$0xff]
        %v646 = vld [vmem:[%s618 + $0xd] sm:$0xff]
        %v647 = vld [vmem:[%s618 + $0x6] sm:$0xff]
        %v648 = vld [vmem:[%s618 + $0xe] sm:$0xff]
        %s649 = sld [smem:[#allocation15]]
        %v650 = vstv %s649
        %v651 = vmul.f32 %v650, %v621
        %v652 = vmul.f32 %v650, %v622
        %s653 = sld [smem:[#allocation15 + $0x7]]
        %v654 = vstv %s653
        %v655 = vmul.f32 %v654, %v623
        %v656 = vmul.f32 %v654, %v624
        %s657 = sld [smem:[#allocation15 + $0xe]]
        %v658 = vstv %s657
        %v659 = vmul.f32 %v658, %v625
        %v660 = vmul.f32 %v658, %v626
        %s661 = sld [smem:[#allocation15 + $0x15]]
        %v662 = vstv %s661
        %v663 = vmul.f32 %v662, %v627
        %v664 = vmul.f32 %v662, %v628
        %s665 = sld [smem:[#allocation15 + $0x1c]]
        %v666 = vstv %s665
        %v667 = vmul.f32 %v666, %v629
        %v668 = vmul.f32 %v666, %v630
        %s669 = sld [smem:[#allocation15 + $0x23]]
        %v670 = vstv %s669
        %v671 = vmul.f32 %v670, %v631
        %v672 = vmul.f32 %v670, %v632
        %s673 = sld [smem:[#allocation15 + $0x2a]]
        %v674 = vstv %s673
        %v675 = vmul.f32 %v674, %v633
        %v676 = vmul.f32 %v674, %v634
        %s677 = sld [smem:[#allocation15 + $0x31]]
        %v678 = vstv %s677
        %v679 = vmul.f32 %v678, %v635
        %v680 = vmul.f32 %v678, %v636
        %s681 = sld [smem:[#allocation15 + $0x38]]
        %v682 = vstv %s681
        %v683 = vmul.f32 %v682, %v637
        %v684 = vmul.f32 %v682, %v638
        %s685 = sld [smem:[#allocation15 + $0x3f]]
        %v686 = vstv %s685
        %v687 = vmul.f32 %v686, %v639
        %v688 = vmul.f32 %v686, %v640
        %s689 = sld [smem:[#allocation15 + $0x46]]
        %v690 = vstv %s689
        %v691 = vmul.f32 %v690, %v641
        %v692 = vmul.f32 %v690, %v642
        %s693 = sld [smem:[#allocation15 + $0x4d]]
        %v694 = vstv %s693
        %v695 = vmul.f32 %v694, %v643
        %v696 = vmul.f32 %v694, %v644
        %s697 = sld [smem:[#allocation15 + $0x54]]
        %v698 = vstv %s697
        %v699 = vmul.f32 %v698, %v645
        %v700 = vmul.f32 %v698, %v646
        %s701 = sld [smem:[#allocation15 + $0x5b]]
        %v702 = vstv %s701
        %v703 = vmul.f32 %v702, %v647
        %v704 = vmul.f32 %v702, %v648
        %v705 = vadd.f32 %v651, %v655
        %v706 = vadd.f32 %v652, %v656
        %v707 = vadd.f32 %v659, %v663
        %v708 = vadd.f32 %v660, %v664
        %v709 = vadd.f32 %v667, %v671
        %v710 = vadd.f32 %v668, %v672
        %v711 = vadd.f32 %v675, %v679
        %v712 = vadd.f32 %v676, %v680
        %v713 = vadd.f32 %v683, %v687
        %v714 = vadd.f32 %v684, %v688
        %v715 = vadd.f32 %v691, %v695
        %v716 = vadd.f32 %v692, %v696
        %v717 = vadd.f32 %v699, %v703
        %v718 = vadd.f32 %v700, %v704
        %v719 = vadd.f32 %v705, %v707
        %v720 = vadd.f32 %v706, %v708
        %v721 = vadd.f32 %v709, %v711
        %v722 = vadd.f32 %v710, %v712
        %v723 = vadd.f32 %v713, %v715
        %v724 = vadd.f32 %v714, %v716
        %v725 = vadd.f32 %v719, %v721
        %v726 = vadd.f32 %v720, %v722
        %v727 = vadd.f32 %v723, %v717
        %v728 = vadd.f32 %v724, %v718
        %v729 = vadd.f32 %v725, %v727
        %v730 = vadd.f32 %v726, %v728
        %s731 = sld [smem:[#allocation15 + $0x1]]
        %v732 = vstv %s731
        %v733 = vmul.f32 %v732, %v621
        %v734 = vmul.f32 %v732, %v622
        %s735 = sld [smem:[#allocation15 + $0x8]]
        %v736 = vstv %s735
        %v737 = vmul.f32 %v736, %v623
        %v738 = vmul.f32 %v736, %v624
        %s739 = sld [smem:[#allocation15 + $0xf]]
        %v740 = vstv %s739
        %v741 = vmul.f32 %v740, %v625
        %v742 = vmul.f32 %v740, %v626
        %s743 = sld [smem:[#allocation15 + $0x16]]
        %v744 = vstv %s743
        %v745 = vmul.f32 %v744, %v627
        %v746 = vmul.f32 %v744, %v628
        %s747 = sld [smem:[#allocation15 + $0x1d]]
        %v748 = vstv %s747
        %v749 = vmul.f32 %v748, %v629
        %v750 = vmul.f32 %v748, %v630
        %s751 = sld [smem:[#allocation15 + $0x24]]
        %v752 = vstv %s751
        %v753 = vmul.f32 %v752, %v631
        %v754 = vmul.f32 %v752, %v632
        %s755 = sld [smem:[#allocation15 + $0x2b]]
        %v756 = vstv %s755
        %v757 = vmul.f32 %v756, %v633
        %v758 = vmul.f32 %v756, %v634
        %s759 = sld [smem:[#allocation15 + $0x32]]
        %v760 = vstv %s759
        %v761 = vmul.f32 %v760, %v635
        %v762 = vmul.f32 %v760, %v636
        %s763 = sld [smem:[#allocation15 + $0x39]]
        %v764 = vstv %s763
        %v765 = vmul.f32 %v764, %v637
        %v766 = vmul.f32 %v764, %v638
        %s767 = sld [smem:[#allocation15 + $0x40]]
        %v768 = vstv %s767
        %v769 = vmul.f32 %v768, %v639
        %v770 = vmul.f32 %v768, %v640
        %s771 = sld [smem:[#allocation15 + $0x47]]
        %v772 = vstv %s771
        %v773 = vmul.f32 %v772, %v641
        %v774 = vmul.f32 %v772, %v642
        %s775 = sld [smem:[#allocation15 + $0x4e]]
        %v776 = vstv %s775
        %v777 = vmul.f32 %v776, %v643
        %v778 = vmul.f32 %v776, %v644
        %s779 = sld [smem:[#allocation15 + $0x55]]
        %v780 = vstv %s779
        %v781 = vmul.f32 %v780, %v645
        %v782 = vmul.f32 %v780, %v646
        %s783 = sld [smem:[#allocation15 + $0x5c]]
        %v784 = vstv %s783
        %v785 = vmul.f32 %v784, %v647
        %v786 = vmul.f32 %v784, %v648
        %v787 = vadd.f32 %v733, %v737
        %v788 = vadd.f32 %v734, %v738
        %v789 = vadd.f32 %v741, %v745
        %v790 = vadd.f32 %v742, %v746
        %v791 = vadd.f32 %v749, %v753
        %v792 = vadd.f32 %v750, %v754
        %v793 = vadd.f32 %v757, %v761
        %v794 = vadd.f32 %v758, %v762
        %v795 = vadd.f32 %v765, %v769
        %v796 = vadd.f32 %v766, %v770
        %v797 = vadd.f32 %v773, %v777
        %v798 = vadd.f32 %v774, %v778
        %v799 = vadd.f32 %v781, %v785
        %v800 = vadd.f32 %v782, %v786
        %v801 = vadd.f32 %v787, %v789
        %v802 = vadd.f32 %v788, %v790
        %v803 = vadd.f32 %v791, %v793
        %v804 = vadd.f32 %v792, %v794
        %v805 = vadd.f32 %v795, %v797
        %v806 = vadd.f32 %v796, %v798
        %v807 = vadd.f32 %v801, %v803
        %v808 = vadd.f32 %v802, %v804
        %v809 = vadd.f32 %v805, %v799
        %v810 = vadd.f32 %v806, %v800
        %v811 = vadd.f32 %v807, %v809
        %v812 = vadd.f32 %v808, %v810
        %s813 = sld [smem:[#allocation15 + $0x2]]
        %v814 = vstv %s813
        %v815 = vmul.f32 %v814, %v621
        %v816 = vmul.f32 %v814, %v622
        %s817 = sld [smem:[#allocation15 + $0x9]]
        %v818 = vstv %s817
        %v819 = vmul.f32 %v818, %v623
        %v820 = vmul.f32 %v818, %v624
        %s821 = sld [smem:[#allocation15 + $0x10]]
        %v822 = vstv %s821
        %v823 = vmul.f32 %v822, %v625
        %v824 = vmul.f32 %v822, %v626
        %s825 = sld [smem:[#allocation15 + $0x17]]
        %v826 = vstv %s825
        %v827 = vmul.f32 %v826, %v627
        %v828 = vmul.f32 %v826, %v628
        %s829 = sld [smem:[#allocation15 + $0x1e]]
        %v830 = vstv %s829
        %v831 = vmul.f32 %v830, %v629
        %v832 = vmul.f32 %v830, %v630
        %s833 = sld [smem:[#allocation15 + $0x25]]
        %v834 = vstv %s833
        %v835 = vmul.f32 %v834, %v631
        %v836 = vmul.f32 %v834, %v632
        %s837 = sld [smem:[#allocation15 + $0x2c]]
        %v838 = vstv %s837
        %v839 = vmul.f32 %v838, %v633
        %v840 = vmul.f32 %v838, %v634
        %s841 = sld [smem:[#allocation15 + $0x33]]
        %v842 = vstv %s841
        %v843 = vmul.f32 %v842, %v635
        %v844 = vmul.f32 %v842, %v636
        %s845 = sld [smem:[#allocation15 + $0x3a]]
        %v846 = vstv %s845
        %v847 = vmul.f32 %v846, %v637
        %v848 = vmul.f32 %v846, %v638
        %s849 = sld [smem:[#allocation15 + $0x41]]
        %v850 = vstv %s849
        %v851 = vmul.f32 %v850, %v639
        %v852 = vmul.f32 %v850, %v640
        %s853 = sld [smem:[#allocation15 + $0x48]]
        %v854 = vstv %s853
        %v855 = vmul.f32 %v854, %v641
        %v856 = vmul.f32 %v854, %v642
        %s857 = sld [smem:[#allocation15 + $0x4f]]
        %v858 = vstv %s857
        %v859 = vmul.f32 %v858, %v643
        %v860 = vmul.f32 %v858, %v644
        %s861 = sld [smem:[#allocation15 + $0x56]]
        %v862 = vstv %s861
        %v863 = vmul.f32 %v862, %v645
        %v864 = vmul.f32 %v862, %v646
        %s865 = sld [smem:[#allocation15 + $0x5d]]
        %v866 = vstv %s865
        %v867 = vmul.f32 %v866, %v647
        %v868 = vmul.f32 %v866, %v648
        %v869 = vadd.f32 %v815, %v819
        %v870 = vadd.f32 %v816, %v820
        %v871 = vadd.f32 %v823, %v827
        %v872 = vadd.f32 %v824, %v828
        %v873 = vadd.f32 %v831, %v835
        %v874 = vadd.f32 %v832, %v836
        %v875 = vadd.f32 %v839, %v843
        %v876 = vadd.f32 %v840, %v844
        %v877 = vadd.f32 %v847, %v851
        %v878 = vadd.f32 %v848, %v852
        %v879 = vadd.f32 %v855, %v859
        %v880 = vadd.f32 %v856, %v860
        %v881 = vadd.f32 %v863, %v867
        %v882 = vadd.f32 %v864, %v868
        %v883 = vadd.f32 %v869, %v871
        %v884 = vadd.f32 %v870, %v872
        %v885 = vadd.f32 %v873, %v875
        %v886 = vadd.f32 %v874, %v876
        %v887 = vadd.f32 %v877, %v879
        %v888 = vadd.f32 %v878, %v880
        %v889 = vadd.f32 %v883, %v885
        %v890 = vadd.f32 %v884, %v886
        %v891 = vadd.f32 %v887, %v881
        %v892 = vadd.f32 %v888, %v882
        %v893 = vadd.f32 %v889, %v891
        %v894 = vadd.f32 %v890, %v892
        %s895 = sld [smem:[#allocation15 + $0x3]]
        %v896 = vstv %s895
        %v897 = vmul.f32 %v896, %v621
        %v898 = vmul.f32 %v896, %v622
        %s899 = sld [smem:[#allocation15 + $0xa]]
        %v900 = vstv %s899
        %v901 = vmul.f32 %v900, %v623
        %v902 = vmul.f32 %v900, %v624
        %s903 = sld [smem:[#allocation15 + $0x11]]
        %v904 = vstv %s903
        %v905 = vmul.f32 %v904, %v625
        %v906 = vmul.f32 %v904, %v626
        %s907 = sld [smem:[#allocation15 + $0x18]]
        %v908 = vstv %s907
        %v909 = vmul.f32 %v908, %v627
        %v910 = vmul.f32 %v908, %v628
        %s911 = sld [smem:[#allocation15 + $0x1f]]
        %v912 = vstv %s911
        %v913 = vmul.f32 %v912, %v629
        %v914 = vmul.f32 %v912, %v630
        %s915 = sld [smem:[#allocation15 + $0x26]]
        %v916 = vstv %s915
        %v917 = vmul.f32 %v916, %v631
        %v918 = vmul.f32 %v916, %v632
        %s919 = sld [smem:[#allocation15 + $0x2d]]
        %v920 = vstv %s919
        %v921 = vmul.f32 %v920, %v633
        %v922 = vmul.f32 %v920, %v634
        %s923 = sld [smem:[#allocation15 + $0x34]]
        %v924 = vstv %s923
        %v925 = vmul.f32 %v924, %v635
        %v926 = vmul.f32 %v924, %v636
        %s927 = sld [smem:[#allocation15 + $0x3b]]
        %v928 = vstv %s927
        %v929 = vmul.f32 %v928, %v637
        %v930 = vmul.f32 %v928, %v638
        %s931 = sld [smem:[#allocation15 + $0x42]]
        %v932 = vstv %s931
        %v933 = vmul.f32 %v932, %v639
        %v934 = vmul.f32 %v932, %v640
        %s935 = sld [smem:[#allocation15 + $0x49]]
        %v936 = vstv %s935
        %v937 = vmul.f32 %v936, %v641
        %v938 = vmul.f32 %v936, %v642
        %s939 = sld [smem:[#allocation15 + $0x50]]
        %v940 = vstv %s939
        %v941 = vmul.f32 %v940, %v643
        %v942 = vmul.f32 %v940, %v644
        %s943 = sld [smem:[#allocation15 + $0x57]]
        %v944 = vstv %s943
        %v945 = vmul.f32 %v944, %v645
        %v946 = vmul.f32 %v944, %v646
        %s947 = sld [smem:[#allocation15 + $0x5e]]
        %v948 = vstv %s947
        %v949 = vmul.f32 %v948, %v647
        %v950 = vmul.f32 %v948, %v648
        %v951 = vadd.f32 %v897, %v901
        %v952 = vadd.f32 %v898, %v902
        %v953 = vadd.f32 %v905, %v909
        %v954 = vadd.f32 %v906, %v910
        %v955 = vadd.f32 %v913, %v917
        %v956 = vadd.f32 %v914, %v918
        %v957 = vadd.f32 %v921, %v925
        %v958 = vadd.f32 %v922, %v926
        %v959 = vadd.f32 %v929, %v933
        %v960 = vadd.f32 %v930, %v934
        %v961 = vadd.f32 %v937, %v941
        %v962 = vadd.f32 %v938, %v942
        %v963 = vadd.f32 %v945, %v949
        %v964 = vadd.f32 %v946, %v950
        %v965 = vadd.f32 %v951, %v953
        %v966 = vadd.f32 %v952, %v954
        %v967 = vadd.f32 %v955, %v957
        %v968 = vadd.f32 %v956, %v958
        %v969 = vadd.f32 %v959, %v961
        %v970 = vadd.f32 %v960, %v962
        %v971 = vadd.f32 %v965, %v967
        %v972 = vadd.f32 %v966, %v968
        %v973 = vadd.f32 %v969, %v963
        %v974 = vadd.f32 %v970, %v964
        %v975 = vadd.f32 %v971, %v973
        %v976 = vadd.f32 %v972, %v974
        %s977 = sld [smem:[#allocation15 + $0x4]]
        %v978 = vstv %s977
        %v979 = vmul.f32 %v978, %v621
        %v980 = vmul.f32 %v978, %v622
        %s981 = sld [smem:[#allocation15 + $0xb]]
        %v982 = vstv %s981
        %v983 = vmul.f32 %v982, %v623
        %v984 = vmul.f32 %v982, %v624
        %s985 = sld [smem:[#allocation15 + $0x12]]
        %v986 = vstv %s985
        %v987 = vmul.f32 %v986, %v625
        %v988 = vmul.f32 %v986, %v626
        %s989 = sld [smem:[#allocation15 + $0x19]]
        %v990 = vstv %s989
        %v991 = vmul.f32 %v990, %v627
        %v992 = vmul.f32 %v990, %v628
        %s993 = sld [smem:[#allocation15 + $0x20]]
        %v994 = vstv %s993
        %v995 = vmul.f32 %v994, %v629
        %v996 = vmul.f32 %v994, %v630
        %s997 = sld [smem:[#allocation15 + $0x27]]
        %v998 = vstv %s997
        %v999 = vmul.f32 %v998, %v631
        %v1000 = vmul.f32 %v998, %v632
        %s1001 = sld [smem:[#allocation15 + $0x2e]]
        %v1002 = vstv %s1001
        %v1003 = vmul.f32 %v1002, %v633
        %v1004 = vmul.f32 %v1002, %v634
        %s1005 = sld [smem:[#allocation15 + $0x35]]
        %v1006 = vstv %s1005
        %v1007 = vmul.f32 %v1006, %v635
        %v1008 = vmul.f32 %v1006, %v636
        %s1009 = sld [smem:[#allocation15 + $0x3c]]
        %v1010 = vstv %s1009
        %v1011 = vmul.f32 %v1010, %v637
        %v1012 = vmul.f32 %v1010, %v638
        %s1013 = sld [smem:[#allocation15 + $0x43]]
        %v1014 = vstv %s1013
        %v1015 = vmul.f32 %v1014, %v639
        %v1016 = vmul.f32 %v1014, %v640
        %s1017 = sld [smem:[#allocation15 + $0x4a]]
        %v1018 = vstv %s1017
        %v1019 = vmul.f32 %v1018, %v641
        %v1020 = vmul.f32 %v1018, %v642
        %s1021 = sld [smem:[#allocation15 + $0x51]]
        %v1022 = vstv %s1021
        %v1023 = vmul.f32 %v1022, %v643
        %v1024 = vmul.f32 %v1022, %v644
        %s1025 = sld [smem:[#allocation15 + $0x58]]
        %v1026 = vstv %s1025
        %v1027 = vmul.f32 %v1026, %v645
        %v1028 = vmul.f32 %v1026, %v646
        %s1029 = sld [smem:[#allocation15 + $0x5f]]
        %v1030 = vstv %s1029
        %v1031 = vmul.f32 %v1030, %v647
        %v1032 = vmul.f32 %v1030, %v648
        %v1033 = vadd.f32 %v979, %v983
        %v1034 = vadd.f32 %v980, %v984
        %v1035 = vadd.f32 %v987, %v991
        %v1036 = vadd.f32 %v988, %v992
        %v1037 = vadd.f32 %v995, %v999
        %v1038 = vadd.f32 %v996, %v1000
        %v1039 = vadd.f32 %v1003, %v1007
        %v1040 = vadd.f32 %v1004, %v1008
        %v1041 = vadd.f32 %v1011, %v1015
        %v1042 = vadd.f32 %v1012, %v1016
        %v1043 = vadd.f32 %v1019, %v1023
        %v1044 = vadd.f32 %v1020, %v1024
        %v1045 = vadd.f32 %v1027, %v1031
        %v1046 = vadd.f32 %v1028, %v1032
        %v1047 = vadd.f32 %v1033, %v1035
        %v1048 = vadd.f32 %v1034, %v1036
        %v1049 = vadd.f32 %v1037, %v1039
        %v1050 = vadd.f32 %v1038, %v1040
        %v1051 = vadd.f32 %v1041, %v1043
        %v1052 = vadd.f32 %v1042, %v1044
        %v1053 = vadd.f32 %v1047, %v1049
        %v1054 = vadd.f32 %v1048, %v1050
        %v1055 = vadd.f32 %v1051, %v1045
        %v1056 = vadd.f32 %v1052, %v1046
        %v1057 = vadd.f32 %v1053, %v1055
        %v1058 = vadd.f32 %v1054, %v1056
        %s1059 = sld [smem:[#allocation15 + $0x5]]
        %v1060 = vstv %s1059
        %v1061 = vmul.f32 %v1060, %v621
        %v1062 = vmul.f32 %v1060, %v622
        %s1063 = sld [smem:[#allocation15 + $0xc]]
        %v1064 = vstv %s1063
        %v1065 = vmul.f32 %v1064, %v623
        %v1066 = vmul.f32 %v1064, %v624
        %s1067 = sld [smem:[#allocation15 + $0x13]]
        %v1068 = vstv %s1067
        %v1069 = vmul.f32 %v1068, %v625
        %v1070 = vmul.f32 %v1068, %v626
        %s1071 = sld [smem:[#allocation15 + $0x1a]]
        %v1072 = vstv %s1071
        %v1073 = vmul.f32 %v1072, %v627
        %v1074 = vmul.f32 %v1072, %v628
        %s1075 = sld [smem:[#allocation15 + $0x21]]
        %v1076 = vstv %s1075
        %v1077 = vmul.f32 %v1076, %v629
        %v1078 = vmul.f32 %v1076, %v630
        %s1079 = sld [smem:[#allocation15 + $0x28]]
        %v1080 = vstv %s1079
        %v1081 = vmul.f32 %v1080, %v631
        %v1082 = vmul.f32 %v1080, %v632
        %s1083 = sld [smem:[#allocation15 + $0x2f]]
        %v1084 = vstv %s1083
        %v1085 = vmul.f32 %v1084, %v633
        %v1086 = vmul.f32 %v1084, %v634
        %s1087 = sld [smem:[#allocation15 + $0x36]]
        %v1088 = vstv %s1087
        %v1089 = vmul.f32 %v1088, %v635
        %v1090 = vmul.f32 %v1088, %v636
        %s1091 = sld [smem:[#allocation15 + $0x3d]]
        %v1092 = vstv %s1091
        %v1093 = vmul.f32 %v1092, %v637
        %v1094 = vmul.f32 %v1092, %v638
        %s1095 = sld [smem:[#allocation15 + $0x44]]
        %v1096 = vstv %s1095
        %v1097 = vmul.f32 %v1096, %v639
        %v1098 = vmul.f32 %v1096, %v640
        %s1099 = sld [smem:[#allocation15 + $0x4b]]
        %v1100 = vstv %s1099
        %v1101 = vmul.f32 %v1100, %v641
        %v1102 = vmul.f32 %v1100, %v642
        %s1103 = sld [smem:[#allocation15 + $0x52]]
        %v1104 = vstv %s1103
        %v1105 = vmul.f32 %v1104, %v643
        %v1106 = vmul.f32 %v1104, %v644
        %s1107 = sld [smem:[#allocation15 + $0x59]]
        %v1108 = vstv %s1107
        %v1109 = vmul.f32 %v1108, %v645
        %v1110 = vmul.f32 %v1108, %v646
        %s1111 = sld [smem:[#allocation15 + $0x60]]
        %v1112 = vstv %s1111
        %v1113 = vmul.f32 %v1112, %v647
        %v1114 = vmul.f32 %v1112, %v648
        %v1115 = vadd.f32 %v1061, %v1065
        %v1116 = vadd.f32 %v1062, %v1066
        %v1117 = vadd.f32 %v1069, %v1073
        %v1118 = vadd.f32 %v1070, %v1074
        %v1119 = vadd.f32 %v1077, %v1081
        %v1120 = vadd.f32 %v1078, %v1082
        %v1121 = vadd.f32 %v1085, %v1089
        %v1122 = vadd.f32 %v1086, %v1090
        %v1123 = vadd.f32 %v1093, %v1097
        %v1124 = vadd.f32 %v1094, %v1098
        %v1125 = vadd.f32 %v1101, %v1105
        %v1126 = vadd.f32 %v1102, %v1106
        %v1127 = vadd.f32 %v1109, %v1113
        %v1128 = vadd.f32 %v1110, %v1114
        %v1129 = vadd.f32 %v1115, %v1117
        %v1130 = vadd.f32 %v1116, %v1118
        %v1131 = vadd.f32 %v1119, %v1121
        %v1132 = vadd.f32 %v1120, %v1122
        %v1133 = vadd.f32 %v1123, %v1125
        %v1134 = vadd.f32 %v1124, %v1126
        %v1135 = vadd.f32 %v1129, %v1131
        %v1136 = vadd.f32 %v1130, %v1132
        %v1137 = vadd.f32 %v1133, %v1127
        %v1138 = vadd.f32 %v1134, %v1128
        %v1139 = vadd.f32 %v1135, %v1137
        %v1140 = vadd.f32 %v1136, %v1138
        %s1141 = sld [smem:[#allocation15 + $0x6]]
        %v1142 = vstv %s1141
        %v1143 = vmul.f32 %v1142, %v621
        %v1144 = vmul.f32 %v1142, %v622
        %s1145 = sld [smem:[#allocation15 + $0xd]]
        %v1146 = vstv %s1145
        %v1147 = vmul.f32 %v1146, %v623
        %v1148 = vmul.f32 %v1146, %v624
        %s1149 = sld [smem:[#allocation15 + $0x14]]
        %v1150 = vstv %s1149
        %v1151 = vmul.f32 %v1150, %v625
        %v1152 = vmul.f32 %v1150, %v626
        %s1153 = sld [smem:[#allocation15 + $0x1b]]
        %v1154 = vstv %s1153
        %v1155 = vmul.f32 %v1154, %v627
        %v1156 = vmul.f32 %v1154, %v628
        %s1157 = sld [smem:[#allocation15 + $0x22]]
        %v1158 = vstv %s1157
        %v1159 = vmul.f32 %v1158, %v629
        %v1160 = vmul.f32 %v1158, %v630
        %s1161 = sld [smem:[#allocation15 + $0x29]]
        %v1162 = vstv %s1161
        %v1163 = vmul.f32 %v1162, %v631
        %v1164 = vmul.f32 %v1162, %v632
        %s1165 = sld [smem:[#allocation15 + $0x30]]
        %v1166 = vstv %s1165
        %v1167 = vmul.f32 %v1166, %v633
        %v1168 = vmul.f32 %v1166, %v634
        %s1169 = sld [smem:[#allocation15 + $0x37]]
        %v1170 = vstv %s1169
        %v1171 = vmul.f32 %v1170, %v635
        %v1172 = vmul.f32 %v1170, %v636
        %s1173 = sld [smem:[#allocation15 + $0x3e]]
        %v1174 = vstv %s1173
        %v1175 = vmul.f32 %v1174, %v637
        %v1176 = vmul.f32 %v1174, %v638
        %s1177 = sld [smem:[#allocation15 + $0x45]]
        %v1178 = vstv %s1177
        %v1179 = vmul.f32 %v1178, %v639
        %v1180 = vmul.f32 %v1178, %v640
        %s1181 = sld [smem:[#allocation15 + $0x4c]]
        %v1182 = vstv %s1181
        %v1183 = vmul.f32 %v1182, %v641
        %v1184 = vmul.f32 %v1182, %v642
        %s1185 = sld [smem:[#allocation15 + $0x53]]
        %v1186 = vstv %s1185
        %v1187 = vmul.f32 %v1186, %v643
        %v1188 = vmul.f32 %v1186, %v644
        %s1189 = sld [smem:[#allocation15 + $0x5a]]
        %v1190 = vstv %s1189
        %v1191 = vmul.f32 %v1190, %v645
        %v1192 = vmul.f32 %v1190, %v646
        %s1193 = sld [smem:[#allocation15 + $0x61]]
        %v1194 = vstv %s1193
        %v1195 = vmul.f32 %v1194, %v647
        %v1196 = vmul.f32 %v1194, %v648
        %v1197 = vadd.f32 %v1143, %v1147
        %v1198 = vadd.f32 %v1144, %v1148
        %v1199 = vadd.f32 %v1151, %v1155
        %v1200 = vadd.f32 %v1152, %v1156
        %v1201 = vadd.f32 %v1159, %v1163
        %v1202 = vadd.f32 %v1160, %v1164
        %v1203 = vadd.f32 %v1167, %v1171
        %v1204 = vadd.f32 %v1168, %v1172
        %v1205 = vadd.f32 %v1175, %v1179
        %v1206 = vadd.f32 %v1176, %v1180
        %v1207 = vadd.f32 %v1183, %v1187
        %v1208 = vadd.f32 %v1184, %v1188
        %v1209 = vadd.f32 %v1191, %v1195
        %v1210 = vadd.f32 %v1192, %v1196
        %v1211 = vadd.f32 %v1197, %v1199
        %v1212 = vadd.f32 %v1198, %v1200
        %v1213 = vadd.f32 %v1201, %v1203
        %v1214 = vadd.f32 %v1202, %v1204
        %v1215 = vadd.f32 %v1205, %v1207
        %v1216 = vadd.f32 %v1206, %v1208
        %v1217 = vadd.f32 %v1211, %v1213
        %v1218 = vadd.f32 %v1212, %v1214
        %v1219 = vadd.f32 %v1215, %v1209
        %v1220 = vadd.f32 %v1216, %v1210
        %v1221 = vadd.f32 %v1217, %v1219
        %v1222 = vadd.f32 %v1218, %v1220
        %1225 = vrot.lane.b32.xlu0 %v811, 127
        %v1226 = vpop.permute.xlu0 %1225
        %1227 = vrot.lane.b32.xlu0 %v812, 127
        %v1228 = vpop.permute.xlu0 %1227
        %v1231 = vadd.f32 %v729, %v1226
        %v1232 = vadd.f32 %v730, %v1228
        %1235 = vrot.lane.b32.xlu0 %v975, 127
        %v1236 = vpop.permute.xlu0 %1235
        %1237 = vrot.lane.b32.xlu0 %v976, 127
        %v1238 = vpop.permute.xlu0 %1237
        %v1241 = vadd.f32 %v893, %v1236
        %v1242 = vadd.f32 %v894, %v1238
        %1245 = vrot.lane.b32.xlu0 %v1139, 127
        %v1246 = vpop.permute.xlu0 %1245
        %1247 = vrot.lane.b32.xlu0 %v1140, 127
        %v1248 = vpop.permute.xlu0 %1247
        %v1251 = vadd.f32 %v1057, %v1246
        %v1252 = vadd.f32 %v1058, %v1248
        %1255 = vrot.lane.b32.xlu0 %v1241, 126
        %v1256 = vpop.permute.xlu0 %1255
        %1257 = vrot.lane.b32.xlu0 %v1242, 126
        %v1258 = vpop.permute.xlu0 %1257
        %v1261 = vadd.f32 %v1231, %v1256
        %v1262 = vadd.f32 %v1232, %v1258
        %1265 = vrot.lane.b32.xlu0 %v1221, 126
        %v1266 = vpop.permute.xlu0 %1265
        %1267 = vrot.lane.b32.xlu0 %v1222, 126
        %v1268 = vpop.permute.xlu0 %1267
        %v1271 = vadd.f32 %v1251, %v1266
        %v1272 = vadd.f32 %v1252, %v1268
        %1275 = vrot.lane.b32.xlu0 %v1271, 124
        %v1276 = vpop.permute.xlu0 %1275
        %1277 = vrot.lane.b32.xlu0 %v1272, 124
        %v1278 = vpop.permute.xlu0 %1277
        %v1281 = vadd.f32 %v1261, %v1276
        %v1282 = vadd.f32 %v1262, %v1278
        %s1283 = sld [smem:[#allocation7]]
        %v1284 = vstv %s1283
        %v1285 = vadd.f32 %v1281, %v1284
        %v1286 = vadd.f32 %v1282, %v1284
        %v1287 = vsel %vm341, %v1285, 0.0
        %1288 = vadd.xlane.f32.xlu0 %v1287
        %v1289 = vpop.xlane.xlu0 %1288
        %v1290 = vsel %vm341, %v1286, 0.0
        %1291 = vadd.xlane.f32.xlu0 %v1290
        %v1292 = vpop.xlane.xlu0 %1291
        %v1293 = vadd.f32 %v1289, %v1292
        %v1294 = vrot.slane %v1293, 4
        %v1295 = vadd.f32 %v1293, %v1294
        %v1296 = vrot.slane %v1295, 2
        %v1297 = vadd.f32 %v1295, %v1296
        %v1298 = vrot.slane %v1297, 1
        %v1299 = vadd.f32 %v1297, %v1298
        %v1300 = vmul.f32 %v1299, 0.00390625
        %v1301 = vsub.f32 %v1285, %v1300
        %v1302 = vsub.f32 %v1286, %v1300
        %v1303 = vmul.f32 %v1301, %v1301
        %v1304 = vmul.f32 %v1302, %v1302
        %v1305 = vsel %vm341, %v1303, 0.0
        %1306 = vadd.xlane.f32.xlu0 %v1305
        %v1307 = vpop.xlane.xlu0 %1306
        %v1308 = vsel %vm341, %v1304, 0.0
        %1309 = vadd.xlane.f32.xlu0 %v1308
        %v1310 = vpop.xlane.xlu0 %1309
        %v1311 = vadd.f32 %v1307, %v1310
        %v1312 = vrot.slane %v1311, 4
        %v1313 = vadd.f32 %v1311, %v1312
        %v1314 = vrot.slane %v1313, 2
        %v1315 = vadd.f32 %v1313, %v1314
        %v1316 = vrot.slane %v1315, 1
        %v1317 = vadd.f32 %v1315, %v1316
        %v1318 = vmul.f32 %v1317, 0.003921569
        %v1319 = vadd.f32 %v1318, 0.0001
        %v1320 = vmul.f32 %v1319, 4.0
        %v1321 = vrcp.pop %v1320
        %v1322 = vmul.f32 1.0, %v1321
        %v1323 = vmul.f32 %v1303, %v1322
        %v1324 = vmul.f32 %v1304, %v1322
        %v1325 = vadd.f32 %v1323, 0.5
        %v1326 = vadd.f32 %v1324, 0.5
        %v1327 = vxor.u32 %v1325, 2147483648
        %v1328 = vxor.u32 %v1326, 2147483648
        %v1329 = vmul.f32 %v1327, 1.442695
        %v1330 = vpow.pop %v1329
        %v1331 = vmul.f32 %v1328, 1.442695
        %v1332 = vpow.pop %v1331
        %v1333 = vadd.f32 %v1330, 1.0
        %v1334 = vadd.f32 %v1332, 1.0
        %v1335 = vrcp.pop %v1333
        %v1336 = vmul.f32 1.0, %v1335
        %v1337 = vrcp.pop %v1334
        %v1338 = vmul.f32 1.0, %v1337
        %v1339 = vmul.f32 %v1285, %v1336
        %v1340 = vmul.f32 %v1286, %v1338
        %v1341 = vxor.u32 %v1339, 2147483648
        %v1342 = vxor.u32 %v1340, 2147483648
        %v1343 = vmul.f32 %v1341, 1.442695
        %v1344 = vpow.pop %v1343
        %v1345 = vmul.f32 %v1342, 1.442695
        %v1346 = vpow.pop %v1345
        %v1347 = vadd.f32 %v1344, 1.0
        %v1348 = vadd.f32 %v1346, 1.0
        %v1349 = vrcp.pop %v1347
        %v1350 = vmul.f32 1.0, %v1349
        %v1351 = vrcp.pop %v1348
        %v1352 = vmul.f32 1.0, %v1351
        %v1353 = vmul.f32 %v475, 0.0625
        %1354 = vst.msk [vmem:[#allocation2] sm:$0x7] %vm584, 0.0
        %1355 = vst.msk [vmem:[#allocation2 + $0x10] sm:$0x7] %vm584, 0.0
        %1356 = vst.msk [vmem:[#allocation2 + $0x7] sm:$0x7] %vm584, 0.0
        %1357 = vst.msk [vmem:[#allocation2 + $0x17] sm:$0x7] %vm584, 0.0
        %vm1358 = vcmask 19456
        %1359 = vst.msk [vmem:[#allocation2 + $0x3] sm:$0xf] %vm1358, 0.0
        %1360 = vst.msk [vmem:[#allocation2 + $0x13] sm:$0xf] %vm1358, 0.0
        %vm1361 = vcmask 175256
        %1362 = vst.msk [vmem:[#allocation2 + $0x3] sm:$0xf] %vm1361, 0.0
        %1363 = vst.msk [vmem:[#allocation2 + $0x13] sm:$0xf] %vm1361, 0.0
        %1365 = vrot.lane.b32.xlu0 %v472, 3
        %v1366 = vpop.permute.xlu0 %1365
        %vm1368 = vcmask 150552
        %1369 = vst.msk [vmem:[#allocation2 + $0x3] sm:$0xf] %vm1368, %v1366
        %1371 = vrot.lane.b32.xlu0 %v1353, 3
        %v1372 = vpop.permute.xlu0 %1371
        %s1374 = scalar_lea.vmem [#allocation2], 16
        %1375 = vst.msk [vmem:[%s1374 + $0x3] sm:$0xf] %vm1368, %v1372
        %v1376 = vld [vmem:[#allocation2] sm:$0xf]
        %v1377 = vld [vmem:[#allocation2 + $0x1] sm:$0xf]
        %v1378 = vld [vmem:[#allocation2 + $0x2] sm:$0xf]
        %v1379 = vld [vmem:[#allocation2 + $0x3] sm:$0xf]
        %v1380 = vld [vmem:[#allocation2 + $0x4] sm:$0xf]
        %v1381 = vld [vmem:[#allocation2 + $0x5] sm:$0xf]
        %v1382 = vld [vmem:[#allocation2 + $0x6] sm:$0xf]
        %v1383 = vld [vmem:[%s1374] sm:$0xf]
        %v1384 = vld [vmem:[%s1374 + $0x1] sm:$0xf]
        %v1385 = vld [vmem:[%s1374 + $0x2] sm:$0xf]
        %v1386 = vld [vmem:[%s1374 + $0x3] sm:$0xf]
        %v1387 = vld [vmem:[%s1374 + $0x4] sm:$0xf]
        %v1388 = vld [vmem:[%s1374 + $0x5] sm:$0xf]
        %v1389 = vld [vmem:[%s1374 + $0x6] sm:$0xf]
        %s1390 = sld [smem:[#allocation12]]
        %v1391 = vstv %s1390
        %v1392 = vmul.f32 %v1391, %v1376
        %s1393 = sld [smem:[#allocation12 + $0x7]]
        %v1394 = vstv %s1393
        %v1395 = vmul.f32 %v1394, %v1377
        %s1396 = sld [smem:[#allocation12 + $0xe]]
        %v1397 = vstv %s1396
        %v1398 = vmul.f32 %v1397, %v1378
        %s1399 = sld [smem:[#allocation12 + $0x15]]
        %v1400 = vstv %s1399
        %v1401 = vmul.f32 %v1400, %v1379
        %s1402 = sld [smem:[#allocation12 + $0x1c]]
        %v1403 = vstv %s1402
        %v1404 = vmul.f32 %v1403, %v1380
        %s1405 = sld [smem:[#allocation12 + $0x23]]
        %v1406 = vstv %s1405
        %v1407 = vmul.f32 %v1406, %v1381
        %s1408 = sld [smem:[#allocation12 + $0x2a]]
        %v1409 = vstv %s1408
        %v1410 = vmul.f32 %v1409, %v1382
        %s1411 = sld [smem:[#allocation12 + $0x31]]
        %v1412 = vstv %s1411
        %v1413 = vmul.f32 %v1412, %v1383
        %s1414 = sld [smem:[#allocation12 + $0x38]]
        %v1415 = vstv %s1414
        %v1416 = vmul.f32 %v1415, %v1384
        %s1417 = sld [smem:[#allocation12 + $0x3f]]
        %v1418 = vstv %s1417
        %v1419 = vmul.f32 %v1418, %v1385
        %s1420 = sld [smem:[#allocation12 + $0x46]]
        %v1421 = vstv %s1420
        %v1422 = vmul.f32 %v1421, %v1386
        %s1423 = sld [smem:[#allocation12 + $0x4d]]
        %v1424 = vstv %s1423
        %v1425 = vmul.f32 %v1424, %v1387
        %s1426 = sld [smem:[#allocation12 + $0x54]]
        %v1427 = vstv %s1426
        %v1428 = vmul.f32 %v1427, %v1388
        %s1429 = sld [smem:[#allocation12 + $0x5b]]
        %v1430 = vstv %s1429
        %v1431 = vmul.f32 %v1430, %v1389
        %v1432 = vadd.f32 %v1392, %v1395
        %v1433 = vadd.f32 %v1398, %v1401
        %v1434 = vadd.f32 %v1404, %v1407
        %v1435 = vadd.f32 %v1410, %v1413
        %v1436 = vadd.f32 %v1416, %v1419
        %v1437 = vadd.f32 %v1422, %v1425
        %v1438 = vadd.f32 %v1428, %v1431
        %v1439 = vadd.f32 %v1432, %v1433
        %v1440 = vadd.f32 %v1434, %v1435
        %v1441 = vadd.f32 %v1436, %v1437
        %v1442 = vadd.f32 %v1439, %v1440
        %v1443 = vadd.f32 %v1441, %v1438
        %v1444 = vadd.f32 %v1442, %v1443
        %s1445 = sld [smem:[#allocation12 + $0x1]]
        %v1446 = vstv %s1445
        %v1447 = vmul.f32 %v1446, %v1376
        %s1448 = sld [smem:[#allocation12 + $0x8]]
        %v1449 = vstv %s1448
        %v1450 = vmul.f32 %v1449, %v1377
        %s1451 = sld [smem:[#allocation12 + $0xf]]
        %v1452 = vstv %s1451
        %v1453 = vmul.f32 %v1452, %v1378
        %s1454 = sld [smem:[#allocation12 + $0x16]]
        %v1455 = vstv %s1454
        %v1456 = vmul.f32 %v1455, %v1379
        %s1457 = sld [smem:[#allocation12 + $0x1d]]
        %v1458 = vstv %s1457
        %v1459 = vmul.f32 %v1458, %v1380
        %s1460 = sld [smem:[#allocation12 + $0x24]]
        %v1461 = vstv %s1460
        %v1462 = vmul.f32 %v1461, %v1381
        %s1463 = sld [smem:[#allocation12 + $0x2b]]
        %v1464 = vstv %s1463
        %v1465 = vmul.f32 %v1464, %v1382
        %s1466 = sld [smem:[#allocation12 + $0x32]]
        %v1467 = vstv %s1466
        %v1468 = vmul.f32 %v1467, %v1383
        %s1469 = sld [smem:[#allocation12 + $0x39]]
        %v1470 = vstv %s1469
        %v1471 = vmul.f32 %v1470, %v1384
        %s1472 = sld [smem:[#allocation12 + $0x40]]
        %v1473 = vstv %s1472
        %v1474 = vmul.f32 %v1473, %v1385
        %s1475 = sld [smem:[#allocation12 + $0x47]]
        %v1476 = vstv %s1475
        %v1477 = vmul.f32 %v1476, %v1386
        %s1478 = sld [smem:[#allocation12 + $0x4e]]
        %v1479 = vstv %s1478
        %v1480 = vmul.f32 %v1479, %v1387
        %s1481 = sld [smem:[#allocation12 + $0x55]]
        %v1482 = vstv %s1481
        %v1483 = vmul.f32 %v1482, %v1388
        %s1484 = sld [smem:[#allocation12 + $0x5c]]
        %v1485 = vstv %s1484
        %v1486 = vmul.f32 %v1485, %v1389
        %v1487 = vadd.f32 %v1447, %v1450
        %v1488 = vadd.f32 %v1453, %v1456
        %v1489 = vadd.f32 %v1459, %v1462
        %v1490 = vadd.f32 %v1465, %v1468
        %v1491 = vadd.f32 %v1471, %v1474
        %v1492 = vadd.f32 %v1477, %v1480
        %v1493 = vadd.f32 %v1483, %v1486
        %v1494 = vadd.f32 %v1487, %v1488
        %v1495 = vadd.f32 %v1489, %v1490
        %v1496 = vadd.f32 %v1491, %v1492
        %v1497 = vadd.f32 %v1494, %v1495
        %v1498 = vadd.f32 %v1496, %v1493
        %v1499 = vadd.f32 %v1497, %v1498
        %s1500 = sld [smem:[#allocation12 + $0x2]]
        %v1501 = vstv %s1500
        %v1502 = vmul.f32 %v1501, %v1376
        %s1503 = sld [smem:[#allocation12 + $0x9]]
        %v1504 = vstv %s1503
        %v1505 = vmul.f32 %v1504, %v1377
        %s1506 = sld [smem:[#allocation12 + $0x10]]
        %v1507 = vstv %s1506
        %v1508 = vmul.f32 %v1507, %v1378
        %s1509 = sld [smem:[#allocation12 + $0x17]]
        %v1510 = vstv %s1509
        %v1511 = vmul.f32 %v1510, %v1379
        %s1512 = sld [smem:[#allocation12 + $0x1e]]
        %v1513 = vstv %s1512
        %v1514 = vmul.f32 %v1513, %v1380
        %s1515 = sld [smem:[#allocation12 + $0x25]]
        %v1516 = vstv %s1515
        %v1517 = vmul.f32 %v1516, %v1381
        %s1518 = sld [smem:[#allocation12 + $0x2c]]
        %v1519 = vstv %s1518
        %v1520 = vmul.f32 %v1519, %v1382
        %s1521 = sld [smem:[#allocation12 + $0x33]]
        %v1522 = vstv %s1521
        %v1523 = vmul.f32 %v1522, %v1383
        %s1524 = sld [smem:[#allocation12 + $0x3a]]
        %v1525 = vstv %s1524
        %v1526 = vmul.f32 %v1525, %v1384
        %s1527 = sld [smem:[#allocation12 + $0x41]]
        %v1528 = vstv %s1527
        %v1529 = vmul.f32 %v1528, %v1385
        %s1530 = sld [smem:[#allocation12 + $0x48]]
        %v1531 = vstv %s1530
        %v1532 = vmul.f32 %v1531, %v1386
        %s1533 = sld [smem:[#allocation12 + $0x4f]]
        %v1534 = vstv %s1533
        %v1535 = vmul.f32 %v1534, %v1387
        %s1536 = sld [smem:[#allocation12 + $0x56]]
        %v1537 = vstv %s1536
        %v1538 = vmul.f32 %v1537, %v1388
        %s1539 = sld [smem:[#allocation12 + $0x5d]]
        %v1540 = vstv %s1539
        %v1541 = vmul.f32 %v1540, %v1389
        %v1542 = vadd.f32 %v1502, %v1505
        %v1543 = vadd.f32 %v1508, %v1511
        %v1544 = vadd.f32 %v1514, %v1517
        %v1545 = vadd.f32 %v1520, %v1523
        %v1546 = vadd.f32 %v1526, %v1529
        %v1547 = vadd.f32 %v1532, %v1535
        %v1548 = vadd.f32 %v1538, %v1541
        %v1549 = vadd.f32 %v1542, %v1543
        %v1550 = vadd.f32 %v1544, %v1545
        %v1551 = vadd.f32 %v1546, %v1547
        %v1552 = vadd.f32 %v1549, %v1550
        %v1553 = vadd.f32 %v1551, %v1548
        %v1554 = vadd.f32 %v1552, %v1553
        %s1555 = sld [smem:[#allocation12 + $0x3]]
        %v1556 = vstv %s1555
        %v1557 = vmul.f32 %v1556, %v1376
        %s1558 = sld [smem:[#allocation12 + $0xa]]
        %v1559 = vstv %s1558
        %v1560 = vmul.f32 %v1559, %v1377
        %s1561 = sld [smem:[#allocation12 + $0x11]]
        %v1562 = vstv %s1561
        %v1563 = vmul.f32 %v1562, %v1378
        %s1564 = sld [smem:[#allocation12 + $0x18]]
        %v1565 = vstv %s1564
        %v1566 = vmul.f32 %v1565, %v1379
        %s1567 = sld [smem:[#allocation12 + $0x1f]]
        %v1568 = vstv %s1567
        %v1569 = vmul.f32 %v1568, %v1380
        %s1570 = sld [smem:[#allocation12 + $0x26]]
        %v1571 = vstv %s1570
        %v1572 = vmul.f32 %v1571, %v1381
        %s1573 = sld [smem:[#allocation12 + $0x2d]]
        %v1574 = vstv %s1573
        %v1575 = vmul.f32 %v1574, %v1382
        %s1576 = sld [smem:[#allocation12 + $0x34]]
        %v1577 = vstv %s1576
        %v1578 = vmul.f32 %v1577, %v1383
        %s1579 = sld [smem:[#allocation12 + $0x3b]]
        %v1580 = vstv %s1579
        %v1581 = vmul.f32 %v1580, %v1384
        %s1582 = sld [smem:[#allocation12 + $0x42]]
        %v1583 = vstv %s1582
        %v1584 = vmul.f32 %v1583, %v1385
        %s1585 = sld [smem:[#allocation12 + $0x49]]
        %v1586 = vstv %s1585
        %v1587 = vmul.f32 %v1586, %v1386
        %s1588 = sld [smem:[#allocation12 + $0x50]]
        %v1589 = vstv %s1588
        %v1590 = vmul.f32 %v1589, %v1387
        %s1591 = sld [smem:[#allocation12 + $0x57]]
        %v1592 = vstv %s1591
        %v1593 = vmul.f32 %v1592, %v1388
        %s1594 = sld [smem:[#allocation12 + $0x5e]]
        %v1595 = vstv %s1594
        %v1596 = vmul.f32 %v1595, %v1389
        %v1597 = vadd.f32 %v1557, %v1560
        %v1598 = vadd.f32 %v1563, %v1566
        %v1599 = vadd.f32 %v1569, %v1572
        %v1600 = vadd.f32 %v1575, %v1578
        %v1601 = vadd.f32 %v1581, %v1584
        %v1602 = vadd.f32 %v1587, %v1590
        %v1603 = vadd.f32 %v1593, %v1596
        %v1604 = vadd.f32 %v1597, %v1598
        %v1605 = vadd.f32 %v1599, %v1600
        %v1606 = vadd.f32 %v1601, %v1602
        %v1607 = vadd.f32 %v1604, %v1605
        %v1608 = vadd.f32 %v1606, %v1603
        %v1609 = vadd.f32 %v1607, %v1608
        %s1610 = sld [smem:[#allocation12 + $0x4]]
        %v1611 = vstv %s1610
        %v1612 = vmul.f32 %v1611, %v1376
        %s1613 = sld [smem:[#allocation12 + $0xb]]
        %v1614 = vstv %s1613
        %v1615 = vmul.f32 %v1614, %v1377
        %s1616 = sld [smem:[#allocation12 + $0x12]]
        %v1617 = vstv %s1616
        %v1618 = vmul.f32 %v1617, %v1378
        %s1619 = sld [smem:[#allocation12 + $0x19]]
        %v1620 = vstv %s1619
        %v1621 = vmul.f32 %v1620, %v1379
        %s1622 = sld [smem:[#allocation12 + $0x20]]
        %v1623 = vstv %s1622
        %v1624 = vmul.f32 %v1623, %v1380
        %s1625 = sld [smem:[#allocation12 + $0x27]]
        %v1626 = vstv %s1625
        %v1627 = vmul.f32 %v1626, %v1381
        %s1628 = sld [smem:[#allocation12 + $0x2e]]
        %v1629 = vstv %s1628
        %v1630 = vmul.f32 %v1629, %v1382
        %s1631 = sld [smem:[#allocation12 + $0x35]]
        %v1632 = vstv %s1631
        %v1633 = vmul.f32 %v1632, %v1383
        %s1634 = sld [smem:[#allocation12 + $0x3c]]
        %v1635 = vstv %s1634
        %v1636 = vmul.f32 %v1635, %v1384
        %s1637 = sld [smem:[#allocation12 + $0x43]]
        %v1638 = vstv %s1637
        %v1639 = vmul.f32 %v1638, %v1385
        %s1640 = sld [smem:[#allocation12 + $0x4a]]
        %v1641 = vstv %s1640
        %v1642 = vmul.f32 %v1641, %v1386
        %s1643 = sld [smem:[#allocation12 + $0x51]]
        %v1644 = vstv %s1643
        %v1645 = vmul.f32 %v1644, %v1387
        %s1646 = sld [smem:[#allocation12 + $0x58]]
        %v1647 = vstv %s1646
        %v1648 = vmul.f32 %v1647, %v1388
        %s1649 = sld [smem:[#allocation12 + $0x5f]]
        %v1650 = vstv %s1649
        %v1651 = vmul.f32 %v1650, %v1389
        %v1652 = vadd.f32 %v1612, %v1615
        %v1653 = vadd.f32 %v1618, %v1621
        %v1654 = vadd.f32 %v1624, %v1627
        %v1655 = vadd.f32 %v1630, %v1633
        %v1656 = vadd.f32 %v1636, %v1639
        %v1657 = vadd.f32 %v1642, %v1645
        %v1658 = vadd.f32 %v1648, %v1651
        %v1659 = vadd.f32 %v1652, %v1653
        %v1660 = vadd.f32 %v1654, %v1655
        %v1661 = vadd.f32 %v1656, %v1657
        %v1662 = vadd.f32 %v1659, %v1660
        %v1663 = vadd.f32 %v1661, %v1658
        %v1664 = vadd.f32 %v1662, %v1663
        %s1665 = sld [smem:[#allocation12 + $0x5]]
        %v1666 = vstv %s1665
        %v1667 = vmul.f32 %v1666, %v1376
        %s1668 = sld [smem:[#allocation12 + $0xc]]
        %v1669 = vstv %s1668
        %v1670 = vmul.f32 %v1669, %v1377
        %s1671 = sld [smem:[#allocation12 + $0x13]]
        %v1672 = vstv %s1671
        %v1673 = vmul.f32 %v1672, %v1378
        %s1674 = sld [smem:[#allocation12 + $0x1a]]
        %v1675 = vstv %s1674
        %v1676 = vmul.f32 %v1675, %v1379
        %s1677 = sld [smem:[#allocation12 + $0x21]]
        %v1678 = vstv %s1677
        %v1679 = vmul.f32 %v1678, %v1380
        %s1680 = sld [smem:[#allocation12 + $0x28]]
        %v1681 = vstv %s1680
        %v1682 = vmul.f32 %v1681, %v1381
        %s1683 = sld [smem:[#allocation12 + $0x2f]]
        %v1684 = vstv %s1683
        %v1685 = vmul.f32 %v1684, %v1382
        %s1686 = sld [smem:[#allocation12 + $0x36]]
        %v1687 = vstv %s1686
        %v1688 = vmul.f32 %v1687, %v1383
        %s1689 = sld [smem:[#allocation12 + $0x3d]]
        %v1690 = vstv %s1689
        %v1691 = vmul.f32 %v1690, %v1384
        %s1692 = sld [smem:[#allocation12 + $0x44]]
        %v1693 = vstv %s1692
        %v1694 = vmul.f32 %v1693, %v1385
        %s1695 = sld [smem:[#allocation12 + $0x4b]]
        %v1696 = vstv %s1695
        %v1697 = vmul.f32 %v1696, %v1386
        %s1698 = sld [smem:[#allocation12 + $0x52]]
        %v1699 = vstv %s1698
        %v1700 = vmul.f32 %v1699, %v1387
        %s1701 = sld [smem:[#allocation12 + $0x59]]
        %v1702 = vstv %s1701
        %v1703 = vmul.f32 %v1702, %v1388
        %s1704 = sld [smem:[#allocation12 + $0x60]]
        %v1705 = vstv %s1704
        %v1706 = vmul.f32 %v1705, %v1389
        %v1707 = vadd.f32 %v1667, %v1670
        %v1708 = vadd.f32 %v1673, %v1676
        %v1709 = vadd.f32 %v1679, %v1682
        %v1710 = vadd.f32 %v1685, %v1688
        %v1711 = vadd.f32 %v1691, %v1694
        %v1712 = vadd.f32 %v1697, %v1700
        %v1713 = vadd.f32 %v1703, %v1706
        %v1714 = vadd.f32 %v1707, %v1708
        %v1715 = vadd.f32 %v1709, %v1710
        %v1716 = vadd.f32 %v1711, %v1712
        %v1717 = vadd.f32 %v1714, %v1715
        %v1718 = vadd.f32 %v1716, %v1713
        %v1719 = vadd.f32 %v1717, %v1718
        %s1720 = sld [smem:[#allocation12 + $0x6]]
        %v1721 = vstv %s1720
        %v1722 = vmul.f32 %v1721, %v1376
        %s1723 = sld [smem:[#allocation12 + $0xd]]
        %v1724 = vstv %s1723
        %v1725 = vmul.f32 %v1724, %v1377
        %s1726 = sld [smem:[#allocation12 + $0x14]]
        %v1727 = vstv %s1726
        %v1728 = vmul.f32 %v1727, %v1378
        %s1729 = sld [smem:[#allocation12 + $0x1b]]
        %v1730 = vstv %s1729
        %v1731 = vmul.f32 %v1730, %v1379
        %s1732 = sld [smem:[#allocation12 + $0x22]]
        %v1733 = vstv %s1732
        %v1734 = vmul.f32 %v1733, %v1380
        %s1735 = sld [smem:[#allocation12 + $0x29]]
        %v1736 = vstv %s1735
        %v1737 = vmul.f32 %v1736, %v1381
        %s1738 = sld [smem:[#allocation12 + $0x30]]
        %v1739 = vstv %s1738
        %v1740 = vmul.f32 %v1739, %v1382
        %s1741 = sld [smem:[#allocation12 + $0x37]]
        %v1742 = vstv %s1741
        %v1743 = vmul.f32 %v1742, %v1383
        %s1744 = sld [smem:[#allocation12 + $0x3e]]
        %v1745 = vstv %s1744
        %v1746 = vmul.f32 %v1745, %v1384
        %s1747 = sld [smem:[#allocation12 + $0x45]]
        %v1748 = vstv %s1747
        %v1749 = vmul.f32 %v1748, %v1385
        %s1750 = sld [smem:[#allocation12 + $0x4c]]
        %v1751 = vstv %s1750
        %v1752 = vmul.f32 %v1751, %v1386
        %s1753 = sld [smem:[#allocation12 + $0x53]]
        %v1754 = vstv %s1753
        %v1755 = vmul.f32 %v1754, %v1387
        %s1756 = sld [smem:[#allocation12 + $0x5a]]
        %v1757 = vstv %s1756
        %v1758 = vmul.f32 %v1757, %v1388
        %s1759 = sld [smem:[#allocation12 + $0x61]]
        %v1760 = vstv %s1759
        %v1761 = vmul.f32 %v1760, %v1389
        %v1762 = vadd.f32 %v1722, %v1725
        %v1763 = vadd.f32 %v1728, %v1731
        %v1764 = vadd.f32 %v1734, %v1737
        %v1765 = vadd.f32 %v1740, %v1743
        %v1766 = vadd.f32 %v1746, %v1749
        %v1767 = vadd.f32 %v1752, %v1755
        %v1768 = vadd.f32 %v1758, %v1761
        %v1769 = vadd.f32 %v1762, %v1763
        %v1770 = vadd.f32 %v1764, %v1765
        %v1771 = vadd.f32 %v1766, %v1767
        %v1772 = vadd.f32 %v1769, %v1770
        %v1773 = vadd.f32 %v1771, %v1768
        %v1774 = vadd.f32 %v1772, %v1773
        %1776 = vrot.lane.b32.xlu0 %v1499, 127
        %v1777 = vpop.permute.xlu0 %1776
        %v1779 = vadd.f32 %v1444, %v1777
        %1781 = vrot.lane.b32.xlu0 %v1609, 127
        %v1782 = vpop.permute.xlu0 %1781
        %v1784 = vadd.f32 %v1554, %v1782
        %1786 = vrot.lane.b32.xlu0 %v1719, 127
        %v1787 = vpop.permute.xlu0 %1786
        %v1789 = vadd.f32 %v1664, %v1787
        %1791 = vrot.lane.b32.xlu0 %v1784, 126
        %v1792 = vpop.permute.xlu0 %1791
        %v1794 = vadd.f32 %v1779, %v1792
        %1796 = vrot.lane.b32.xlu0 %v1774, 126
        %v1797 = vpop.permute.xlu0 %1796
        %v1799 = vadd.f32 %v1789, %v1797
        %1801 = vrot.lane.b32.xlu0 %v1799, 124
        %v1802 = vpop.permute.xlu0 %1801
        %v1804 = vadd.f32 %v1794, %v1802
        %s1805 = sld [smem:[#allocation5]]
        %v1806 = vstv %s1805
        %v1807 = vadd.f32 %v1804, %v1806
        %vm1808 = vcmask 125952
        %v1809 = vsel %vm1808, %v1807, 0.0
        %1810 = vadd.xlane.f32.xlu0 %v1809
        %v1811 = vpop.xlane.xlu0 %1810
        %vm1812 = vcmask 1043456
        %v1813 = vsel %vm1812, %v1811, 0.0
        %v1814 = vrot.slane %v1813, 4
        %v1815 = vadd.f32 %v1813, %v1814
        %v1816 = vrot.slane %v1815, 2
        %v1817 = vadd.f32 %v1815, %v1816
        %v1818 = vrot.slane %v1817, 1
        %v1819 = vadd.f32 %v1817, %v1818
        %v1820 = vmul.f32 %v1819, 0.015625
        %v1821 = vsub.f32 %v1807, %v1820
        %v1822 = vmul.f32 %v1821, %v1821
        %v1823 = vsel %vm1808, %v1822, 0.0
        %1824 = vadd.xlane.f32.xlu0 %v1823
        %v1825 = vpop.xlane.xlu0 %1824
        %v1826 = vsel %vm1812, %v1825, 0.0
        %v1827 = vrot.slane %v1826, 4
        %v1828 = vadd.f32 %v1826, %v1827
        %v1829 = vrot.slane %v1828, 2
        %v1830 = vadd.f32 %v1828, %v1829
        %v1831 = vrot.slane %v1830, 1
        %v1832 = vadd.f32 %v1830, %v1831
        %v1833 = vmul.f32 %v1832, 0.015873017
        %v1834 = vadd.f32 %v1833, 0.0001
        %v1835 = vmul.f32 %v1834, 4.0
        %v1836 = vrcp.pop %v1835
        %v1837 = vmul.f32 1.0, %v1836
        %v1838 = vmul.f32 %v1822, %v1837
        %v1839 = vadd.f32 %v1838, 0.5
        %v1840 = vxor.u32 %v1839, 2147483648
        %v1841 = vmul.f32 %v1840, 1.442695
        %v1842 = vpow.pop %v1841
        %v1843 = vadd.f32 %v1842, 1.0
        %v1844 = vrcp.pop %v1843
        %v1845 = vmul.f32 1.0, %v1844
        %v1846 = vmul.f32 %v1807, %v1845
        %v1847 = vxor.u32 %v1846, 2147483648
        %v1848 = vmul.f32 %v1847, 1.442695
        %v1849 = vpow.pop %v1848
        %v1850 = vadd.f32 %v1849, 1.0
        %v1851 = vrcp.pop %v1850
        %v1852 = vmul.f32 1.0, %v1851
        %v1853 = vmul.f32 %v581, 0.0625
        %1854 = vst.msk [vmem:[#allocation3] sm:$0x7] %vm584, 0.0
        %1855 = vst.msk [vmem:[#allocation3 + $0x10] sm:$0x7] %vm584, 0.0
        %1856 = vst.msk [vmem:[#allocation3 + $0x7] sm:$0x7] %vm584, 0.0
        %1857 = vst.msk [vmem:[#allocation3 + $0x17] sm:$0x7] %vm584, 0.0
        %1858 = vst.msk [vmem:[#allocation3 + $0x3] sm:$0xf] %vm1358, 0.0
        %1859 = vst.msk [vmem:[#allocation3 + $0x13] sm:$0xf] %vm1358, 0.0
        %1860 = vst.msk [vmem:[#allocation3 + $0x3] sm:$0xf] %vm1361, 0.0
        %1861 = vst.msk [vmem:[#allocation3 + $0x13] sm:$0xf] %vm1361, 0.0
        %1863 = vrot.lane.b32.xlu0 %v530, 3
        %v1864 = vpop.permute.xlu0 %1863
        %1866 = vst.msk [vmem:[#allocation3 + $0x3] sm:$0xf] %vm1368, %v1864
        %1868 = vrot.lane.b32.xlu0 %v1853, 3
        %v1869 = vpop.permute.xlu0 %1868
        %s1871 = scalar_lea.vmem [#allocation3], 16
        %1872 = vst.msk [vmem:[%s1871 + $0x3] sm:$0xf] %vm1368, %v1869
        %v1873 = vld [vmem:[#allocation3] sm:$0xf]
        %v1874 = vld [vmem:[#allocation3 + $0x1] sm:$0xf]
        %v1875 = vld [vmem:[#allocation3 + $0x2] sm:$0xf]
        %v1876 = vld [vmem:[#allocation3 + $0x3] sm:$0xf]
        %v1877 = vld [vmem:[#allocation3 + $0x4] sm:$0xf]
        %v1878 = vld [vmem:[#allocation3 + $0x5] sm:$0xf]
        %v1879 = vld [vmem:[#allocation3 + $0x6] sm:$0xf]
        %v1880 = vld [vmem:[%s1871] sm:$0xf]
        %v1881 = vld [vmem:[%s1871 + $0x1] sm:$0xf]
        %v1882 = vld [vmem:[%s1871 + $0x2] sm:$0xf]
        %v1883 = vld [vmem:[%s1871 + $0x3] sm:$0xf]
        %v1884 = vld [vmem:[%s1871 + $0x4] sm:$0xf]
        %v1885 = vld [vmem:[%s1871 + $0x5] sm:$0xf]
        %v1886 = vld [vmem:[%s1871 + $0x6] sm:$0xf]
        %s1887 = sld [smem:[#allocation13]]
        %v1888 = vstv %s1887
        %v1889 = vmul.f32 %v1888, %v1873
        %s1890 = sld [smem:[#allocation13 + $0x7]]
        %v1891 = vstv %s1890
        %v1892 = vmul.f32 %v1891, %v1874
        %s1893 = sld [smem:[#allocation13 + $0xe]]
        %v1894 = vstv %s1893
        %v1895 = vmul.f32 %v1894, %v1875
        %s1896 = sld [smem:[#allocation13 + $0x15]]
        %v1897 = vstv %s1896
        %v1898 = vmul.f32 %v1897, %v1876
        %s1899 = sld [smem:[#allocation13 + $0x1c]]
        %v1900 = vstv %s1899
        %v1901 = vmul.f32 %v1900, %v1877
        %s1902 = sld [smem:[#allocation13 + $0x23]]
        %v1903 = vstv %s1902
        %v1904 = vmul.f32 %v1903, %v1878
        %s1905 = sld [smem:[#allocation13 + $0x2a]]
        %v1906 = vstv %s1905
        %v1907 = vmul.f32 %v1906, %v1879
        %s1908 = sld [smem:[#allocation13 + $0x31]]
        %v1909 = vstv %s1908
        %v1910 = vmul.f32 %v1909, %v1880
        %s1911 = sld [smem:[#allocation13 + $0x38]]
        %v1912 = vstv %s1911
        %v1913 = vmul.f32 %v1912, %v1881
        %s1914 = sld [smem:[#allocation13 + $0x3f]]
        %v1915 = vstv %s1914
        %v1916 = vmul.f32 %v1915, %v1882
        %s1917 = sld [smem:[#allocation13 + $0x46]]
        %v1918 = vstv %s1917
        %v1919 = vmul.f32 %v1918, %v1883
        %s1920 = sld [smem:[#allocation13 + $0x4d]]
        %v1921 = vstv %s1920
        %v1922 = vmul.f32 %v1921, %v1884
        %s1923 = sld [smem:[#allocation13 + $0x54]]
        %v1924 = vstv %s1923
        %v1925 = vmul.f32 %v1924, %v1885
        %s1926 = sld [smem:[#allocation13 + $0x5b]]
        %v1927 = vstv %s1926
        %v1928 = vmul.f32 %v1927, %v1886
        %v1929 = vadd.f32 %v1889, %v1892
        %v1930 = vadd.f32 %v1895, %v1898
        %v1931 = vadd.f32 %v1901, %v1904
        %v1932 = vadd.f32 %v1907, %v1910
        %v1933 = vadd.f32 %v1913, %v1916
        %v1934 = vadd.f32 %v1919, %v1922
        %v1935 = vadd.f32 %v1925, %v1928
        %v1936 = vadd.f32 %v1929, %v1930
        %v1937 = vadd.f32 %v1931, %v1932
        %v1938 = vadd.f32 %v1933, %v1934
        %v1939 = vadd.f32 %v1936, %v1937
        %v1940 = vadd.f32 %v1938, %v1935
        %v1941 = vadd.f32 %v1939, %v1940
        %s1942 = sld [smem:[#allocation13 + $0x1]]
        %v1943 = vstv %s1942
        %v1944 = vmul.f32 %v1943, %v1873
        %s1945 = sld [smem:[#allocation13 + $0x8]]
        %v1946 = vstv %s1945
        %v1947 = vmul.f32 %v1946, %v1874
        %s1948 = sld [smem:[#allocation13 + $0xf]]
        %v1949 = vstv %s1948
        %v1950 = vmul.f32 %v1949, %v1875
        %s1951 = sld [smem:[#allocation13 + $0x16]]
        %v1952 = vstv %s1951
        %v1953 = vmul.f32 %v1952, %v1876
        %s1954 = sld [smem:[#allocation13 + $0x1d]]
        %v1955 = vstv %s1954
        %v1956 = vmul.f32 %v1955, %v1877
        %s1957 = sld [smem:[#allocation13 + $0x24]]
        %v1958 = vstv %s1957
        %v1959 = vmul.f32 %v1958, %v1878
        %s1960 = sld [smem:[#allocation13 + $0x2b]]
        %v1961 = vstv %s1960
        %v1962 = vmul.f32 %v1961, %v1879
        %s1963 = sld [smem:[#allocation13 + $0x32]]
        %v1964 = vstv %s1963
        %v1965 = vmul.f32 %v1964, %v1880
        %s1966 = sld [smem:[#allocation13 + $0x39]]
        %v1967 = vstv %s1966
        %v1968 = vmul.f32 %v1967, %v1881
        %s1969 = sld [smem:[#allocation13 + $0x40]]
        %v1970 = vstv %s1969
        %v1971 = vmul.f32 %v1970, %v1882
        %s1972 = sld [smem:[#allocation13 + $0x47]]
        %v1973 = vstv %s1972
        %v1974 = vmul.f32 %v1973, %v1883
        %s1975 = sld [smem:[#allocation13 + $0x4e]]
        %v1976 = vstv %s1975
        %v1977 = vmul.f32 %v1976, %v1884
        %s1978 = sld [smem:[#allocation13 + $0x55]]
        %v1979 = vstv %s1978
        %v1980 = vmul.f32 %v1979, %v1885
        %s1981 = sld [smem:[#allocation13 + $0x5c]]
        %v1982 = vstv %s1981
        %v1983 = vmul.f32 %v1982, %v1886
        %v1984 = vadd.f32 %v1944, %v1947
        %v1985 = vadd.f32 %v1950, %v1953
        %v1986 = vadd.f32 %v1956, %v1959
        %v1987 = vadd.f32 %v1962, %v1965
        %v1988 = vadd.f32 %v1968, %v1971
        %v1989 = vadd.f32 %v1974, %v1977
        %v1990 = vadd.f32 %v1980, %v1983
        %v1991 = vadd.f32 %v1984, %v1985
        %v1992 = vadd.f32 %v1986, %v1987
        %v1993 = vadd.f32 %v1988, %v1989
        %v1994 = vadd.f32 %v1991, %v1992
        %v1995 = vadd.f32 %v1993, %v1990
        %v1996 = vadd.f32 %v1994, %v1995
        %s1997 = sld [smem:[#allocation13 + $0x2]]
        %v1998 = vstv %s1997
        %v1999 = vmul.f32 %v1998, %v1873
        %s2000 = sld [smem:[#allocation13 + $0x9]]
        %v2001 = vstv %s2000
        %v2002 = vmul.f32 %v2001, %v1874
        %s2003 = sld [smem:[#allocation13 + $0x10]]
        %v2004 = vstv %s2003
        %v2005 = vmul.f32 %v2004, %v1875
        %s2006 = sld [smem:[#allocation13 + $0x17]]
        %v2007 = vstv %s2006
        %v2008 = vmul.f32 %v2007, %v1876
        %s2009 = sld [smem:[#allocation13 + $0x1e]]
        %v2010 = vstv %s2009
        %v2011 = vmul.f32 %v2010, %v1877
        %s2012 = sld [smem:[#allocation13 + $0x25]]
        %v2013 = vstv %s2012
        %v2014 = vmul.f32 %v2013, %v1878
        %s2015 = sld [smem:[#allocation13 + $0x2c]]
        %v2016 = vstv %s2015
        %v2017 = vmul.f32 %v2016, %v1879
        %s2018 = sld [smem:[#allocation13 + $0x33]]
        %v2019 = vstv %s2018
        %v2020 = vmul.f32 %v2019, %v1880
        %s2021 = sld [smem:[#allocation13 + $0x3a]]
        %v2022 = vstv %s2021
        %v2023 = vmul.f32 %v2022, %v1881
        %s2024 = sld [smem:[#allocation13 + $0x41]]
        %v2025 = vstv %s2024
        %v2026 = vmul.f32 %v2025, %v1882
        %s2027 = sld [smem:[#allocation13 + $0x48]]
        %v2028 = vstv %s2027
        %v2029 = vmul.f32 %v2028, %v1883
        %s2030 = sld [smem:[#allocation13 + $0x4f]]
        %v2031 = vstv %s2030
        %v2032 = vmul.f32 %v2031, %v1884
        %s2033 = sld [smem:[#allocation13 + $0x56]]
        %v2034 = vstv %s2033
        %v2035 = vmul.f32 %v2034, %v1885
        %s2036 = sld [smem:[#allocation13 + $0x5d]]
        %v2037 = vstv %s2036
        %v2038 = vmul.f32 %v2037, %v1886
        %v2039 = vadd.f32 %v1999, %v2002
        %v2040 = vadd.f32 %v2005, %v2008
        %v2041 = vadd.f32 %v2011, %v2014
        %v2042 = vadd.f32 %v2017, %v2020
        %v2043 = vadd.f32 %v2023, %v2026
        %v2044 = vadd.f32 %v2029, %v2032
        %v2045 = vadd.f32 %v2035, %v2038
        %v2046 = vadd.f32 %v2039, %v2040
        %v2047 = vadd.f32 %v2041, %v2042
        %v2048 = vadd.f32 %v2043, %v2044
        %v2049 = vadd.f32 %v2046, %v2047
        %v2050 = vadd.f32 %v2048, %v2045
        %v2051 = vadd.f32 %v2049, %v2050
        %s2052 = sld [smem:[#allocation13 + $0x3]]
        %v2053 = vstv %s2052
        %v2054 = vmul.f32 %v2053, %v1873
        %s2055 = sld [smem:[#allocation13 + $0xa]]
        %v2056 = vstv %s2055
        %v2057 = vmul.f32 %v2056, %v1874
        %s2058 = sld [smem:[#allocation13 + $0x11]]
        %v2059 = vstv %s2058
        %v2060 = vmul.f32 %v2059, %v1875
        %s2061 = sld [smem:[#allocation13 + $0x18]]
        %v2062 = vstv %s2061
        %v2063 = vmul.f32 %v2062, %v1876
        %s2064 = sld [smem:[#allocation13 + $0x1f]]
        %v2065 = vstv %s2064
        %v2066 = vmul.f32 %v2065, %v1877
        %s2067 = sld [smem:[#allocation13 + $0x26]]
        %v2068 = vstv %s2067
        %v2069 = vmul.f32 %v2068, %v1878
        %s2070 = sld [smem:[#allocation13 + $0x2d]]
        %v2071 = vstv %s2070
        %v2072 = vmul.f32 %v2071, %v1879
        %s2073 = sld [smem:[#allocation13 + $0x34]]
        %v2074 = vstv %s2073
        %v2075 = vmul.f32 %v2074, %v1880
        %s2076 = sld [smem:[#allocation13 + $0x3b]]
        %v2077 = vstv %s2076
        %v2078 = vmul.f32 %v2077, %v1881
        %s2079 = sld [smem:[#allocation13 + $0x42]]
        %v2080 = vstv %s2079
        %v2081 = vmul.f32 %v2080, %v1882
        %s2082 = sld [smem:[#allocation13 + $0x49]]
        %v2083 = vstv %s2082
        %v2084 = vmul.f32 %v2083, %v1883
        %s2085 = sld [smem:[#allocation13 + $0x50]]
        %v2086 = vstv %s2085
        %v2087 = vmul.f32 %v2086, %v1884
        %s2088 = sld [smem:[#allocation13 + $0x57]]
        %v2089 = vstv %s2088
        %v2090 = vmul.f32 %v2089, %v1885
        %s2091 = sld [smem:[#allocation13 + $0x5e]]
        %v2092 = vstv %s2091
        %v2093 = vmul.f32 %v2092, %v1886
        %v2094 = vadd.f32 %v2054, %v2057
        %v2095 = vadd.f32 %v2060, %v2063
        %v2096 = vadd.f32 %v2066, %v2069
        %v2097 = vadd.f32 %v2072, %v2075
        %v2098 = vadd.f32 %v2078, %v2081
        %v2099 = vadd.f32 %v2084, %v2087
        %v2100 = vadd.f32 %v2090, %v2093
        %v2101 = vadd.f32 %v2094, %v2095
        %v2102 = vadd.f32 %v2096, %v2097
        %v2103 = vadd.f32 %v2098, %v2099
        %v2104 = vadd.f32 %v2101, %v2102
        %v2105 = vadd.f32 %v2103, %v2100
        %v2106 = vadd.f32 %v2104, %v2105
        %s2107 = sld [smem:[#allocation13 + $0x4]]
        %v2108 = vstv %s2107
        %v2109 = vmul.f32 %v2108, %v1873
        %s2110 = sld [smem:[#allocation13 + $0xb]]
        %v2111 = vstv %s2110
        %v2112 = vmul.f32 %v2111, %v1874
        %s2113 = sld [smem:[#allocation13 + $0x12]]
        %v2114 = vstv %s2113
        %v2115 = vmul.f32 %v2114, %v1875
        %s2116 = sld [smem:[#allocation13 + $0x19]]
        %v2117 = vstv %s2116
        %v2118 = vmul.f32 %v2117, %v1876
        %s2119 = sld [smem:[#allocation13 + $0x20]]
        %v2120 = vstv %s2119
        %v2121 = vmul.f32 %v2120, %v1877
        %s2122 = sld [smem:[#allocation13 + $0x27]]
        %v2123 = vstv %s2122
        %v2124 = vmul.f32 %v2123, %v1878
        %s2125 = sld [smem:[#allocation13 + $0x2e]]
        %v2126 = vstv %s2125
        %v2127 = vmul.f32 %v2126, %v1879
        %s2128 = sld [smem:[#allocation13 + $0x35]]
        %v2129 = vstv %s2128
        %v2130 = vmul.f32 %v2129, %v1880
        %s2131 = sld [smem:[#allocation13 + $0x3c]]
        %v2132 = vstv %s2131
        %v2133 = vmul.f32 %v2132, %v1881
        %s2134 = sld [smem:[#allocation13 + $0x43]]
        %v2135 = vstv %s2134
        %v2136 = vmul.f32 %v2135, %v1882
        %s2137 = sld [smem:[#allocation13 + $0x4a]]
        %v2138 = vstv %s2137
        %v2139 = vmul.f32 %v2138, %v1883
        %s2140 = sld [smem:[#allocation13 + $0x51]]
        %v2141 = vstv %s2140
        %v2142 = vmul.f32 %v2141, %v1884
        %s2143 = sld [smem:[#allocation13 + $0x58]]
        %v2144 = vstv %s2143
        %v2145 = vmul.f32 %v2144, %v1885
        %s2146 = sld [smem:[#allocation13 + $0x5f]]
        %v2147 = vstv %s2146
        %v2148 = vmul.f32 %v2147, %v1886
        %v2149 = vadd.f32 %v2109, %v2112
        %v2150 = vadd.f32 %v2115, %v2118
        %v2151 = vadd.f32 %v2121, %v2124
        %v2152 = vadd.f32 %v2127, %v2130
        %v2153 = vadd.f32 %v2133, %v2136
        %v2154 = vadd.f32 %v2139, %v2142
        %v2155 = vadd.f32 %v2145, %v2148
        %v2156 = vadd.f32 %v2149, %v2150
        %v2157 = vadd.f32 %v2151, %v2152
        %v2158 = vadd.f32 %v2153, %v2154
        %v2159 = vadd.f32 %v2156, %v2157
        %v2160 = vadd.f32 %v2158, %v2155
        %v2161 = vadd.f32 %v2159, %v2160
        %s2162 = sld [smem:[#allocation13 + $0x5]]
        %v2163 = vstv %s2162
        %v2164 = vmul.f32 %v2163, %v1873
        %s2165 = sld [smem:[#allocation13 + $0xc]]
        %v2166 = vstv %s2165
        %v2167 = vmul.f32 %v2166, %v1874
        %s2168 = sld [smem:[#allocation13 + $0x13]]
        %v2169 = vstv %s2168
        %v2170 = vmul.f32 %v2169, %v1875
        %s2171 = sld [smem:[#allocation13 + $0x1a]]
        %v2172 = vstv %s2171
        %v2173 = vmul.f32 %v2172, %v1876
        %s2174 = sld [smem:[#allocation13 + $0x21]]
        %v2175 = vstv %s2174
        %v2176 = vmul.f32 %v2175, %v1877
        %s2177 = sld [smem:[#allocation13 + $0x28]]
        %v2178 = vstv %s2177
        %v2179 = vmul.f32 %v2178, %v1878
        %s2180 = sld [smem:[#allocation13 + $0x2f]]
        %v2181 = vstv %s2180
        %v2182 = vmul.f32 %v2181, %v1879
        %s2183 = sld [smem:[#allocation13 + $0x36]]
        %v2184 = vstv %s2183
        %v2185 = vmul.f32 %v2184, %v1880
        %s2186 = sld [smem:[#allocation13 + $0x3d]]
        %v2187 = vstv %s2186
        %v2188 = vmul.f32 %v2187, %v1881
        %s2189 = sld [smem:[#allocation13 + $0x44]]
        %v2190 = vstv %s2189
        %v2191 = vmul.f32 %v2190, %v1882
        %s2192 = sld [smem:[#allocation13 + $0x4b]]
        %v2193 = vstv %s2192
        %v2194 = vmul.f32 %v2193, %v1883
        %s2195 = sld [smem:[#allocation13 + $0x52]]
        %v2196 = vstv %s2195
        %v2197 = vmul.f32 %v2196, %v1884
        %s2198 = sld [smem:[#allocation13 + $0x59]]
        %v2199 = vstv %s2198
        %v2200 = vmul.f32 %v2199, %v1885
        %s2201 = sld [smem:[#allocation13 + $0x60]]
        %v2202 = vstv %s2201
        %v2203 = vmul.f32 %v2202, %v1886
        %v2204 = vadd.f32 %v2164, %v2167
        %v2205 = vadd.f32 %v2170, %v2173
        %v2206 = vadd.f32 %v2176, %v2179
        %v2207 = vadd.f32 %v2182, %v2185
        %v2208 = vadd.f32 %v2188, %v2191
        %v2209 = vadd.f32 %v2194, %v2197
        %v2210 = vadd.f32 %v2200, %v2203
        %v2211 = vadd.f32 %v2204, %v2205
        %v2212 = vadd.f32 %v2206, %v2207
        %v2213 = vadd.f32 %v2208, %v2209
        %v2214 = vadd.f32 %v2211, %v2212
        %v2215 = vadd.f32 %v2213, %v2210
        %v2216 = vadd.f32 %v2214, %v2215
        %s2217 = sld [smem:[#allocation13 + $0x6]]
        %v2218 = vstv %s2217
        %v2219 = vmul.f32 %v2218, %v1873
        %s2220 = sld [smem:[#allocation13 + $0xd]]
        %v2221 = vstv %s2220
        %v2222 = vmul.f32 %v2221, %v1874
        %s2223 = sld [smem:[#allocation13 + $0x14]]
        %v2224 = vstv %s2223
        %v2225 = vmul.f32 %v2224, %v1875
        %s2226 = sld [smem:[#allocation13 + $0x1b]]
        %v2227 = vstv %s2226
        %v2228 = vmul.f32 %v2227, %v1876
        %s2229 = sld [smem:[#allocation13 + $0x22]]
        %v2230 = vstv %s2229
        %v2231 = vmul.f32 %v2230, %v1877
        %s2232 = sld [smem:[#allocation13 + $0x29]]
        %v2233 = vstv %s2232
        %v2234 = vmul.f32 %v2233, %v1878
        %s2235 = sld [smem:[#allocation13 + $0x30]]
        %v2236 = vstv %s2235
        %v2237 = vmul.f32 %v2236, %v1879
        %s2238 = sld [smem:[#allocation13 + $0x37]]
        %v2239 = vstv %s2238
        %v2240 = vmul.f32 %v2239, %v1880
        %s2241 = sld [smem:[#allocation13 + $0x3e]]
        %v2242 = vstv %s2241
        %v2243 = vmul.f32 %v2242, %v1881
        %s2244 = sld [smem:[#allocation13 + $0x45]]
        %v2245 = vstv %s2244
        %v2246 = vmul.f32 %v2245, %v1882
        %s2247 = sld [smem:[#allocation13 + $0x4c]]
        %v2248 = vstv %s2247
        %v2249 = vmul.f32 %v2248, %v1883
        %s2250 = sld [smem:[#allocation13 + $0x53]]
        %v2251 = vstv %s2250
        %v2252 = vmul.f32 %v2251, %v1884
        %s2253 = sld [smem:[#allocation13 + $0x5a]]
        %v2254 = vstv %s2253
        %v2255 = vmul.f32 %v2254, %v1885
        %s2256 = sld [smem:[#allocation13 + $0x61]]
        %v2257 = vstv %s2256
        %v2258 = vmul.f32 %v2257, %v1886
        %v2259 = vadd.f32 %v2219, %v2222
        %v2260 = vadd.f32 %v2225, %v2228
        %v2261 = vadd.f32 %v2231, %v2234
        %v2262 = vadd.f32 %v2237, %v2240
        %v2263 = vadd.f32 %v2243, %v2246
        %v2264 = vadd.f32 %v2249, %v2252
        %v2265 = vadd.f32 %v2255, %v2258
        %v2266 = vadd.f32 %v2259, %v2260
        %v2267 = vadd.f32 %v2261, %v2262
        %v2268 = vadd.f32 %v2263, %v2264
        %v2269 = vadd.f32 %v2266, %v2267
        %v2270 = vadd.f32 %v2268, %v2265
        %v2271 = vadd.f32 %v2269, %v2270
        %2273 = vrot.lane.b32.xlu0 %v1996, 127
        %v2274 = vpop.permute.xlu0 %2273
        %v2276 = vadd.f32 %v1941, %v2274
        %2278 = vrot.lane.b32.xlu0 %v2106, 127
        %v2279 = vpop.permute.xlu0 %2278
        %v2281 = vadd.f32 %v2051, %v2279
        %2283 = vrot.lane.b32.xlu0 %v2216, 127
        %v2284 = vpop.permute.xlu0 %2283
        %v2286 = vadd.f32 %v2161, %v2284
        %2288 = vrot.lane.b32.xlu0 %v2281, 126
        %v2289 = vpop.permute.xlu0 %2288
        %v2291 = vadd.f32 %v2276, %v2289
        %2293 = vrot.lane.b32.xlu0 %v2271, 126
        %v2294 = vpop.permute.xlu0 %2293
        %v2296 = vadd.f32 %v2286, %v2294
        %2298 = vrot.lane.b32.xlu0 %v2296, 124
        %v2299 = vpop.permute.xlu0 %2298
        %v2301 = vadd.f32 %v2291, %v2299
        %s2302 = sld [smem:[#allocation6]]
        %v2303 = vstv %s2302
        %v2304 = vadd.f32 %v2301, %v2303
        %v2305 = vsel %vm1808, %v2304, 0.0
        %2306 = vadd.xlane.f32.xlu0 %v2305
        %v2307 = vpop.xlane.xlu0 %2306
        %v2308 = vsel %vm1812, %v2307, 0.0
        %v2309 = vrot.slane %v2308, 4
        %v2310 = vadd.f32 %v2308, %v2309
        %v2311 = vrot.slane %v2310, 2
        %v2312 = vadd.f32 %v2310, %v2311
        %v2313 = vrot.slane %v2312, 1
        %v2314 = vadd.f32 %v2312, %v2313
        %v2315 = vmul.f32 %v2314, 0.015625
        %v2316 = vsub.f32 %v2304, %v2315
        %v2317 = vmul.f32 %v2316, %v2316
        %v2318 = vsel %vm1808, %v2317, 0.0
        %2319 = vadd.xlane.f32.xlu0 %v2318
        %v2320 = vpop.xlane.xlu0 %2319
        %v2321 = vsel %vm1812, %v2320, 0.0
        %v2322 = vrot.slane %v2321, 4
        %v2323 = vadd.f32 %v2321, %v2322
        %v2324 = vrot.slane %v2323, 2
        %v2325 = vadd.f32 %v2323, %v2324
        %v2326 = vrot.slane %v2325, 1
        %v2327 = vadd.f32 %v2325, %v2326
        %v2328 = vmul.f32 %v2327, 0.015873017
        %v2329 = vadd.f32 %v2328, 0.0001
        %v2330 = vmul.f32 %v2329, 4.0
        %v2331 = vrcp.pop %v2330
        %v2332 = vmul.f32 1.0, %v2331
        %v2333 = vmul.f32 %v2317, %v2332
        %v2334 = vadd.f32 %v2333, 0.5
        %v2335 = vxor.u32 %v2334, 2147483648
        %v2336 = vmul.f32 %v2335, 1.442695
        %v2337 = vpow.pop %v2336
        %v2338 = vadd.f32 %v2337, 1.0
        %v2339 = vrcp.pop %v2338
        %v2340 = vmul.f32 1.0, %v2339
        %v2341 = vmul.f32 %v2304, %v2340
        %v2342 = vxor.u32 %v2341, 2147483648
        %v2343 = vmul.f32 %v2342, 1.442695
        %v2344 = vpow.pop %v2343
        %v2345 = vadd.f32 %v2344, 1.0
        %v2346 = vrcp.pop %v2345
        %v2347 = vmul.f32 1.0, %v2346
        %v2348 = vmul.f32 %v1350, 0.33333334
        %v2349 = vmul.f32 %v1352, 0.33333334
        %v2350 = vmul.f32 %v1852, 0.33333334
        %v2351 = vmul.f32 %v2347, 0.33333334
        %v2352 = vlaneseq
        %v2353 = vshrl.u32 %v2352, 7
        %v2354 = vsub.s32 0, %v2353
        %v2355 = vrot.slane %v2348, %v2354
        %v2356 = vadd.f32 %v2355, %v2350
        %2358 = vset.pattern.permute.xlu0 0
        %2359 = vperm.xlu0 %2358, %v2351
        %v2360 = vpop.permute.xlu0 %2359
        %v2362 = vadd.f32 %v2356, %v2360
        %v2363 = vlaneseq
        %v2364 = vshrl.u32 %v2363, 7
        %v2365 = vsub.s32 1, %v2364
        %v2366 = vrot.slane %v2348, %v2365
        %v2367 = vadd.f32 %v2366, %v2350
        %2368 = vset.pattern.permute.xlu0 1
        %2369 = vperm.xlu0 %2368, %v2351
        %v2370 = vpop.permute.xlu0 %2369
        %v2372 = vadd.f32 %v2367, %v2370
        %v2373 = vlaneseq
        %v2374 = vshrl.u32 %v2373, 7
        %v2375 = vsub.s32 2, %v2374
        %v2376 = vrot.slane %v2348, %v2375
        %v2377 = vadd.f32 %v2376, %v2350
        %2378 = vset.pattern.permute.xlu0 2
        %2379 = vperm.xlu0 %2378, %v2351
        %v2380 = vpop.permute.xlu0 %2379
        %v2382 = vadd.f32 %v2377, %v2380
        %v2383 = vlaneseq
        %v2384 = vshrl.u32 %v2383, 7
        %v2385 = vsub.s32 3, %v2384
        %v2386 = vrot.slane %v2348, %v2385
        %v2387 = vadd.f32 %v2386, %v2350
        %2388 = vset.pattern.permute.xlu0 3
        %2389 = vperm.xlu0 %2388, %v2351
        %v2390 = vpop.permute.xlu0 %2389
        %v2392 = vadd.f32 %v2387, %v2390
        %v2393 = vlaneseq
        %v2394 = vshrl.u32 %v2393, 7
        %v2395 = vsub.s32 4, %v2394
        %v2396 = vrot.slane %v2348, %v2395
        %v2397 = vadd.f32 %v2396, %v2350
        %2398 = vset.pattern.permute.xlu0 4
        %2399 = vperm.xlu0 %2398, %v2351
        %v2400 = vpop.permute.xlu0 %2399
        %v2402 = vadd.f32 %v2397, %v2400
        %v2403 = vlaneseq
        %v2404 = vshrl.u32 %v2403, 7
        %v2405 = vsub.s32 5, %v2404
        %v2406 = vrot.slane %v2348, %v2405
        %v2407 = vadd.f32 %v2406, %v2350
        %2408 = vset.pattern.permute.xlu0 5
        %2409 = vperm.xlu0 %2408, %v2351
        %v2410 = vpop.permute.xlu0 %2409
        %v2412 = vadd.f32 %v2407, %v2410
        %v2413 = vlaneseq
        %v2414 = vshrl.u32 %v2413, 7
        %v2415 = vsub.s32 6, %v2414
        %v2416 = vrot.slane %v2348, %v2415
        %v2417 = vadd.f32 %v2416, %v2350
        %2418 = vset.pattern.permute.xlu0 6
        %2419 = vperm.xlu0 %2418, %v2351
        %v2420 = vpop.permute.xlu0 %2419
        %v2422 = vadd.f32 %v2417, %v2420
        %v2423 = vlaneseq
        %v2424 = vshrl.u32 %v2423, 7
        %v2425 = vsub.s32 7, %v2424
        %v2426 = vrot.slane %v2348, %v2425
        %v2427 = vadd.f32 %v2426, %v2350
        %2428 = vset.pattern.permute.xlu0 7
        %2429 = vperm.xlu0 %2428, %v2351
        %v2430 = vpop.permute.xlu0 %2429
        %v2432 = vadd.f32 %v2427, %v2430
        %v2433 = vlaneseq
        %v2434 = vshrl.u32 %v2433, 7
        %v2435 = vsub.s32 0, %v2434
        %v2436 = vrot.slane %v2349, %v2435
        %v2437 = vadd.f32 %v2436, %v2350
        %2438 = vset.pattern.permute.xlu0 8
        %2439 = vperm.xlu0 %2438, %v2351
        %v2440 = vpop.permute.xlu0 %2439
        %v2442 = vadd.f32 %v2437, %v2440
        %v2443 = vlaneseq
        %v2444 = vshrl.u32 %v2443, 7
        %v2445 = vsub.s32 1, %v2444
        %v2446 = vrot.slane %v2349, %v2445
        %v2447 = vadd.f32 %v2446, %v2350
        %2448 = vset.pattern.permute.xlu0 9
        %2449 = vperm.xlu0 %2448, %v2351
        %v2450 = vpop.permute.xlu0 %2449
        %v2452 = vadd.f32 %v2447, %v2450
        %v2453 = vlaneseq
        %v2454 = vshrl.u32 %v2453, 7
        %v2455 = vsub.s32 2, %v2454
        %v2456 = vrot.slane %v2349, %v2455
        %v2457 = vadd.f32 %v2456, %v2350
        %2458 = vset.pattern.permute.xlu0 10
        %2459 = vperm.xlu0 %2458, %v2351
        %v2460 = vpop.permute.xlu0 %2459
        %v2462 = vadd.f32 %v2457, %v2460
        %v2463 = vlaneseq
        %v2464 = vshrl.u32 %v2463, 7
        %v2465 = vsub.s32 3, %v2464
        %v2466 = vrot.slane %v2349, %v2465
        %v2467 = vadd.f32 %v2466, %v2350
        %2468 = vset.pattern.permute.xlu0 11
        %2469 = vperm.xlu0 %2468, %v2351
        %v2470 = vpop.permute.xlu0 %2469
        %v2472 = vadd.f32 %v2467, %v2470
        %v2473 = vlaneseq
        %v2474 = vshrl.u32 %v2473, 7
        %v2475 = vsub.s32 4, %v2474
        %v2476 = vrot.slane %v2349, %v2475
        %v2477 = vadd.f32 %v2476, %v2350
        %2478 = vset.pattern.permute.xlu0 12
        %2479 = vperm.xlu0 %2478, %v2351
        %v2480 = vpop.permute.xlu0 %2479
        %v2482 = vadd.f32 %v2477, %v2480
        %v2483 = vlaneseq
        %v2484 = vshrl.u32 %v2483, 7
        %v2485 = vsub.s32 5, %v2484
        %v2486 = vrot.slane %v2349, %v2485
        %v2487 = vadd.f32 %v2486, %v2350
        %2488 = vset.pattern.permute.xlu0 13
        %2489 = vperm.xlu0 %2488, %v2351
        %v2490 = vpop.permute.xlu0 %2489
        %v2492 = vadd.f32 %v2487, %v2490
        %v2493 = vlaneseq
        %v2494 = vshrl.u32 %v2493, 7
        %v2495 = vsub.s32 6, %v2494
        %v2496 = vrot.slane %v2349, %v2495
        %v2497 = vadd.f32 %v2496, %v2350
        %2498 = vset.pattern.permute.xlu0 14
        %2499 = vperm.xlu0 %2498, %v2351
        %v2500 = vpop.permute.xlu0 %2499
        %v2502 = vadd.f32 %v2497, %v2500
        %v2503 = vlaneseq
        %v2504 = vshrl.u32 %v2503, 7
        %v2505 = vsub.s32 7, %v2504
        %v2506 = vrot.slane %v2349, %v2505
        %v2507 = vadd.f32 %v2506, %v2350
        %2508 = vset.pattern.permute.xlu0 15
        %2509 = vperm.xlu0 %2508, %v2351
        %v2510 = vpop.permute.xlu0 %2509
        %v2512 = vadd.f32 %v2507, %v2510
        %2514 = vrot.lane.b32.xlu0 %v2372, 16
        %v2515 = vpop.permute.xlu0 %2514
        %2518 = vrot.lane.b32.xlu0 %v2382, 32
        %v2519 = vpop.permute.xlu0 %2518
        %2522 = vrot.lane.b32.xlu0 %v2392, 48
        %v2523 = vpop.permute.xlu0 %2522
        %2526 = vrot.lane.b32.xlu0 %v2402, 64
        %v2527 = vpop.permute.xlu0 %2526
        %2530 = vrot.lane.b32.xlu0 %v2412, 80
        %v2531 = vpop.permute.xlu0 %2530
        %2534 = vrot.lane.b32.xlu0 %v2422, 96
        %v2535 = vpop.permute.xlu0 %2534
        %2538 = vrot.lane.b32.xlu0 %v2432, 112
        %v2539 = vpop.permute.xlu0 %2538
        %2542 = vrot.lane.b32.xlu0 %v2452, 16
        %v2543 = vpop.permute.xlu0 %2542
        %2546 = vrot.lane.b32.xlu0 %v2462, 32
        %v2547 = vpop.permute.xlu0 %2546
        %2550 = vrot.lane.b32.xlu0 %v2472, 48
        %v2551 = vpop.permute.xlu0 %2550
        %2554 = vrot.lane.b32.xlu0 %v2482, 64
        %v2555 = vpop.permute.xlu0 %2554
        %2558 = vrot.lane.b32.xlu0 %v2492, 80
        %v2559 = vpop.permute.xlu0 %2558
        %2562 = vrot.lane.b32.xlu0 %v2502, 96
        %v2563 = vpop.permute.xlu0 %2562
        %2566 = vrot.lane.b32.xlu0 %v2512, 112
        %v2567 = vpop.permute.xlu0 %2566
        %v2569 = vsel %vm341, %v2362, %v2515
        %vm2570 = vcmask 261120
        %v2571 = vsel %vm2570, %v2569, %v2519
        %vm2572 = vcmask 392192
        %v2573 = vsel %vm2572, %v2571, %v2523
        %vm2574 = vcmask 523264
        %v2575 = vsel %vm2574, %v2573, %v2527
        %vm2576 = vcmask 654336
        %v2577 = vsel %vm2576, %v2575, %v2531
        %vm2578 = vcmask 785408
        %v2579 = vsel %vm2578, %v2577, %v2535
        %vm2580 = vcmask 916480
        %v2581 = vsel %vm2580, %v2579, %v2539
        %v2582 = vsel %vm341, %v2442, %v2543
        %v2583 = vsel %vm2570, %v2582, %v2547
        %v2584 = vsel %vm2572, %v2583, %v2551
        %v2585 = vsel %vm2574, %v2584, %v2555
        %v2586 = vsel %vm2576, %v2585, %v2559
        %v2587 = vsel %vm2578, %v2586, %v2563
        %v2588 = vsel %vm2580, %v2587, %v2567
        %v2591 = vcombine.low %v2581, %v2588
        %2593 = vst [vmem:[%s338] sm:$0xff] %v2591
        %s2594 = sand.u32 %s189, 1
        %s2595 = scalar_lea.sflag [#allocation10], %s2594
        %s2596 = sand.u32 %s189, 1
        %s2597 = smul.addr %s2596, 8
        %s2598 = scalar_lea.vmem [#allocation16], %s2597
        // Predicated region
        $region65: #{tpu_custom_call.1} parent=47 // pred_check
          %p2599 = pneg %p199
        $region66: #{tpu_custom_call.1} parent=47 // pred_check_branch
          %2601 = sbr.rel (%p2599) target = $region68
        $region67: #{tpu_custom_call.1} parent=47 // pred_region
          %s2603 = ssub.s32 128, 128
          %2604 = vsyncadd %s2595, %s2603
          %s2605 = smul.addr %s29, 2
          %s2606 = smul.addr %s2605, 64
          %s2607 = scalar_lea.hbm %s7, %s2606
          %s2609 = sshll.u32 %s2598, 4
          %s2610 = int_to_ptr.vmem [resolvable:$true] %s2609
          %2612 = dma.vmem_to_hbm [thread:$0]  %s2610, 128, %s2607, %s2595
        $region68: #{tpu_custom_call.1} parent=47 // pred_fallthru
          _
      $region48: #{tpu_custom_call.1} parent=5 // pred_fallthru
        _
      %p2613 = scmp.le.s32.totalorder 2, %s24
      // Predicated region
      $region69: #{tpu_custom_call.1} parent=5 // pred_check
        %p2614 = pneg %p2613
      $region70: #{tpu_custom_call.1} parent=5 // pred_check_branch
        %2616 = sbr.rel (%p2614) target = $region72
      $region71: #{tpu_custom_call.1} parent=5 // pred_region
        %s2617 = ssub.s32 %s24, 2
        // Predicated region
        $region73: #{tpu_custom_call.1} parent=71 // pred_check
          %p2618 = pneg %p205
        $region74: #{tpu_custom_call.1} parent=71 // pred_check_branch
          %2620 = sbr.rel (%p2618) target = $region76
        $region75: #{tpu_custom_call.1} parent=71 // pred_region
          %s2621 = sand.u32 %s190, 1
          %s2622 = scalar_lea.sflag [#allocation10], %s2621
          %s2623 = sand.u32 %s190, 1
          %s2624 = smul.addr %s2623, 8
          %s2625 = scalar_lea.vmem [#allocation16], %s2624
          %2626 = dma.done %s2622, 128
        $region76: #{tpu_custom_call.1} parent=71 // pred_fallthru
          _
      $region72: #{tpu_custom_call.1} parent=5 // pred_fallthru
        _
    $region6: #{tpu_custom_call.1} parent=1 // loop_footer
      %s28 = sadd.s32 1, %s24
    $region7: #{tpu_custom_call.1} parent=1 // loop_footer_branch
      %23 = sbr.rel target = $region3
    $region8: #{tpu_custom_call.1} parent=1 // loop_exit
      _
    %2627 = vsyncpa [#allocation9], 1
    %s2628 = scalar_lea.sflag [#allocation9], 1
    %2629 = vsyncpa %s2628, 1
    %2630 = vsyncpa [#allocation10], 1
    %s2631 = scalar_lea.sflag [#allocation10], 1
    %2632 = vsyncpa %s2631, 1
    %2633 = vsyncpa [#allocation11], 1
    %s2634 = scalar_lea.sflag [#allocation11], 1
    %2635 = vsyncpa %s2634, 1
    %2636 = vsyncpa [#allocation14], 1

</llo_original>
